<compile_context>
chip_gen: v7x
topology: tpu7x:2x2x1
jax: 0.10.0
libtpu: 0.0.40
codegen_flags: <defaults>
</compile_context>

<pallas_src>
import math

import jax
import jax.numpy as jnp
from jax.experimental import pallas as pl
from jax.experimental.pallas import tpu as pltpu

# ----------------------------- small config ---------------------------------
B = 2          # batch
S = 8          # sequence length (stands in for max_length=128)
H = 32         # hidden size (pearl_small uses 384)
NH = 2         # attention heads
DH = H // NH   # head dim
FF = 64        # FFN intermediate size
VOCAB = 100    # vocab size (synthetic)
NLAYERS = 2    # encoder layers
EPS = 1e-12    # BERT layernorm eps

# TODO(synk): the HuggingFace tokenizer (string -> input_ids/attention_mask)
# and the pretrained pearl_small checkpoint have no Pallas equivalent; inputs
# here are already tokenized and weights are synthetic.


# ------------------------------ fused kernel ---------------------------------
def _layernorm(y, g, b):
    mu = jnp.mean(y, axis=-1, keepdims=True)
    d = y - mu
    var = jnp.mean(d * d, axis=-1, keepdims=True)
    return d * jax.lax.rsqrt(var + jnp.float32(EPS)) * g + b


def _gelu(y):
    # TODO(synk): HF BERT uses exact erf GELU; tanh approximation used here.
    c = jnp.float32(0.7978845608028654)  # sqrt(2/pi)
    return 0.5 * y * (1.0 + jnp.tanh(c * (y + 0.044715 * y * y * y)))


def _fused_forward_kernel(emb_ref, mask_ref, emb_g_ref, emb_b_ref,
                          wqkv_ref, bqkv_ref, wo_ref, bo_ref,
                          ln1_g_ref, ln1_b_ref, w1_ref, b1_ref,
                          w2_ref, b2_ref, ln2_g_ref, ln2_b_ref,
                          out_ref, attn_ref):
    """Whole encoder forward (post-embedding) + masked average pool, fused."""
    mask = mask_ref[...]                                   # (B, S) in {0, 1}
    key_bias = (1.0 - mask) * jnp.float32(-1e9)            # additive key mask
    scale = jnp.float32(1.0 / math.sqrt(DH))

    # Embedding layernorm (no residual -> no zero tensor DMA'd from HBM).
    x = _layernorm(emb_ref[...], emb_g_ref[...], emb_b_ref[...])   # (B*S, H)

    for l in range(NLAYERS):
        # Fused QKV projection: one (B*S, H) @ (H, 3H) MXU pass.
        qkv = (jnp.dot(x, wqkv_ref[l], preferred_element_type=jnp.float32)
               + bqkv_ref[l])                               # (B*S, 3H)
        wo_l = wo_ref[l]                                    # (H, H)

        # Self-attention, statically unrolled over (batch, head).  The head
        # merge is folded into the output projection:
        #   attn_out_b = sum_h ctx_bh @ wo[h*DH:(h+1)*DH, :]
        for b in range(B):
            r0, r1 = b * S, (b + 1) * S
            bias_b = key_bias[b:b + 1, :]                   # (1, S)
            acc = jnp.zeros((S, H), jnp.float32)
            for h in range(NH):
                q = qkv[r0:r1, h * DH:(h + 1) * DH]                 # (S, DH)
                k = qkv[r0:r1, H + h * DH:H + (h + 1) * DH]         # (S, DH)
                v = qkv[r0:r1, 2 * H + h * DH:2 * H + (h + 1) * DH]  # (S, DH)
                s = (jnp.dot(q, k.T, preferred_element_type=jnp.float32)
                     * scale + bias_b)                      # (S, S)
                m = jnp.max(s, axis=-1, keepdims=True)
                p = jnp.exp(s - m)
                p = p * pl.reciprocal(
                    jnp.sum(p, axis=-1, keepdims=True), approx=True)
                ctx = jnp.dot(p, v, preferred_element_type=jnp.float32)  # (S, DH)
                acc = acc + jnp.dot(ctx, wo_l[h * DH:(h + 1) * DH, :],
                                    preferred_element_type=jnp.float32)
            attn_ref[pl.ds(b * S, S), :] = acc

        attn_out = attn_ref[...] + bo_ref[l]                # (B*S, H)
        x = _layernorm(attn_out + x, ln1_g_ref[l], ln1_b_ref[l])

        ff = _gelu(jnp.dot(x, w1_ref[l], preferred_element_type=jnp.float32)
                   + b1_ref[l])
        ff = (jnp.dot(ff, w2_ref[l], preferred_element_type=jnp.float32)
              + b2_ref[l])
        x = _layernorm(ff + x, ln2_g_ref[l], ln2_b_ref[l])

    # Masked average pooling fused into the same kernel:
    #   sum_s(h * mask) / sum_s(mask)   (matches PearlSmallModel.average_pool;
    #   the division is unguarded on purpose, like the PyTorch reference).
    for b in range(B):
        x_b = x[b * S:(b + 1) * S, :]                       # (S, H)
        m_b = mask[b:b + 1, :]                              # (1, S)
        num = jnp.dot(m_b, x_b, preferred_element_type=jnp.float32)  # (1, H)
        den = jnp.sum(m_b, axis=-1, keepdims=True)          # (1, 1)
        out_ref[pl.ds(b, 1), :] = num / den


# ----------------------------- parameter setup --------------------------------
def init_params(seed=42):
    key = jax.random.PRNGKey(seed)

    def nxt():
        nonlocal key
        key, sub = jax.random.split(key)
        return sub

    def w(shape):
        return (0.02 * jax.random.normal(nxt(), shape)).astype(jnp.float32)

    params = {
        "word_emb": w((VOCAB, H)),
        "pos_emb": w((S, H)),
        "type_emb": w((2, H)),
        "emb_ln_g": jnp.ones((H,), jnp.float32),
        "emb_ln_b": jnp.zeros((H,), jnp.float32),
        "layers": [],
    }
    for _ in range(NLAYERS):
        params["layers"].append({
            "wq": w((H, H)), "bq": jnp.zeros((H,), jnp.float32),
            "wk": w((H, H)), "bk": jnp.zeros((H,), jnp.float32),
            "wv": w((H, H)), "bv": jnp.zeros((H,), jnp.float32),
            "wo": w((H, H)), "bo": jnp.zeros((H,), jnp.float32),
            "ln1_g": jnp.ones((H,), jnp.float32),
            "ln1_b": jnp.zeros((H,), jnp.float32),
            "w1": w((H, FF)), "b1": jnp.zeros((FF,), jnp.float32),
            "w2": w((FF, H)), "b2": jnp.zeros((H,), jnp.float32),
            "ln2_g": jnp.ones((H,), jnp.float32),
            "ln2_b": jnp.zeros((H,), jnp.float32),
        })
    return params


def pack_params(params):
    """Stack per-layer weights along a leading layer axis and fuse QKV."""
    ls = params["layers"]

    def stack(fn):
        return jnp.stack([fn(lp) for lp in ls], axis=0)

    return {
        "word_emb": params["word_emb"],
        "pos_emb": params["pos_emb"],
        "type_emb": params["type_emb"],
        "emb_g": params["emb_ln_g"].reshape(1, H),
        "emb_b": params["emb_ln_b"].reshape(1, H),
        "wqkv": stack(lambda lp: jnp.concatenate(
            [lp["wq"], lp["wk"], lp["wv"]], axis=1)),              # (L, H, 3H)
        "bqkv": stack(lambda lp: jnp.concatenate(
            [lp["bq"], lp["bk"], lp["bv"]]).reshape(1, 3 * H)),    # (L, 1, 3H)
        "wo": stack(lambda lp: lp["wo"]),                          # (L, H, H)
        "bo": stack(lambda lp: lp["bo"].reshape(1, H)),
        "ln1_g": stack(lambda lp: lp["ln1_g"].reshape(1, H)),
        "ln1_b": stack(lambda lp: lp["ln1_b"].reshape(1, H)),
        "w1": stack(lambda lp: lp["w1"]),                          # (L, H, FF)
        "b1": stack(lambda lp: lp["b1"].reshape(1, FF)),
        "w2": stack(lambda lp: lp["w2"]),                          # (L, FF, H)
        "b2": stack(lambda lp: lp["b2"].reshape(1, H)),
        "ln2_g": stack(lambda lp: lp["ln2_g"].reshape(1, H)),
        "ln2_b": stack(lambda lp: lp["ln2_b"].reshape(1, H)),
    }


# ------------------------------- forward pass ---------------------------------
def _full_spec(shape):
    n = len(shape)
    return pl.BlockSpec(shape, lambda i, n=n: (0,) * n)


def pearl_small_forward(packed, input_ids, attention_mask):
    mask_f32 = attention_mask.astype(jnp.float32)            # (B, S)

    # Embedding gather is glue (single XLA take); everything after it runs in
    # one fused Pallas kernel.
    emb = (jnp.take(packed["word_emb"], input_ids, axis=0)    # (B, S, H)
           + packed["pos_emb"][None, :, :]
           + packed["type_emb"][0][None, None, :]).reshape(B * S, H)

    operands = (
        emb, mask_f32, packed["emb_g"], packed["emb_b"],
        packed["wqkv"], packed["bqkv"], packed["wo"], packed["bo"],
        packed["ln1_g"], packed["ln1_b"], packed["w1"], packed["b1"],
        packed["w2"], packed["b2"], packed["ln2_g"], packed["ln2_b"],
    )
    return pl.pallas_call(
        _fused_forward_kernel,
        out_shape=jax.ShapeDtypeStruct((B, H), jnp.float32),
        grid=(1,),
        in_specs=[_full_spec(op.shape) for op in operands],
        out_specs=pl.BlockSpec((B, H), lambda i: (0, 0)),
        scratch_shapes=[pltpu.VMEM((B * S, H), jnp.float32)],
    )(*operands)


# ----------------------------------- main --------------------------------------
if __name__ == "__main__":
    params = init_params(seed=42)
    packed = pack_params(params)

    key = jax.random.PRNGKey(0)
    input_ids = jax.random.randint(key, (B, S), 0, VOCAB, dtype=jnp.int32)

    # Deterministic attention mask: sequence 0 has 8 real tokens, sequence 1 has 5.
    lengths = jnp.array([8, 5], dtype=jnp.int32)
    positions = jnp.arange(S, dtype=jnp.int32)[None, :]
    attention_mask = (positions < lengths[:, None]).astype(jnp.int32)   # (B, S)

    forward = jax.jit(pearl_small_forward)
    phrase_vec = forward(packed, input_ids, attention_mask)
    phrase_vec = jax.block_until_ready(phrase_vec)

    assert phrase_vec.shape == (B, H)
    assert bool(jnp.all(jnp.isfinite(phrase_vec)))
    print("KERNEL_OK")
</pallas_src>

<mosaic_0001>
module attributes {stable_mosaic.version = 11 : i64} {
  func.func @_fused_forward_kernel(%arg0: i32, %arg1: memref<16x32xf32, #tpu.memory_space<vmem>>, %arg2: memref<2x8xf32, #tpu.memory_space<vmem>>, %arg3: memref<1x32xf32, #tpu.memory_space<vmem>>, %arg4: memref<1x32xf32, #tpu.memory_space<vmem>>, %arg5: memref<2x32x96xf32, #tpu.memory_space<vmem>>, %arg6: memref<2x1x96xf32, #tpu.memory_space<vmem>>, %arg7: memref<2x32x32xf32, #tpu.memory_space<vmem>>, %arg8: memref<2x1x32xf32, #tpu.memory_space<vmem>>, %arg9: memref<2x1x32xf32, #tpu.memory_space<vmem>>, %arg10: memref<2x1x32xf32, #tpu.memory_space<vmem>>, %arg11: memref<2x32x64xf32, #tpu.memory_space<vmem>>, %arg12: memref<2x1x64xf32, #tpu.memory_space<vmem>>, %arg13: memref<2x64x32xf32, #tpu.memory_space<vmem>>, %arg14: memref<2x1x32xf32, #tpu.memory_space<vmem>>, %arg15: memref<2x1x32xf32, #tpu.memory_space<vmem>>, %arg16: memref<2x1x32xf32, #tpu.memory_space<vmem>>, %arg17: memref<2x32xf32, #tpu.memory_space<vmem>>, %arg18: memref<16x32xf32, #tpu.memory_space<vmem>>) attributes {dimension_semantics = [#tpu.dimension_semantics<arbitrary>], iteration_bounds = array<i64: 1>, scalar_prefetch = 0 : i64, scratch_operands = 1 : i64, tpu.core_type = #tpu.core_type<tc>, window_params = [{pipeline_mode = #tpu.pipeline_mode<synchronous>, transform_indices = @transform_0, window_bounds = array<i64: 16, 32>}, {pipeline_mode = #tpu.pipeline_mode<synchronous>, transform_indices = @transform_1, window_bounds = array<i64: 2, 8>}, {pipeline_mode = #tpu.pipeline_mode<synchronous>, transform_indices = @transform_2, window_bounds = array<i64: 1, 32>}, {pipeline_mode = #tpu.pipeline_mode<synchronous>, transform_indices = @transform_3, window_bounds = array<i64: 1, 32>}, {pipeline_mode = #tpu.pipeline_mode<synchronous>, transform_indices = @transform_4, window_bounds = array<i64: 2, 32, 96>}, {pipeline_mode = #tpu.pipeline_mode<synchronous>, transform_indices = @transform_5, window_bounds = array<i64: 2, 1, 96>}, {pipeline_mode = #tpu.pipeline_mode<synchronous>, transform_indices = @transform_6, window_bounds = array<i64: 2, 32, 32>}, {pipeline_mode = #tpu.pipeline_mode<synchronous>, transform_indices = @transform_7, window_bounds = array<i64: 2, 1, 32>}, {pipeline_mode = #tpu.pipeline_mode<synchronous>, transform_indices = @transform_8, window_bounds = array<i64: 2, 1, 32>}, {pipeline_mode = #tpu.pipeline_mode<synchronous>, transform_indices = @transform_9, window_bounds = array<i64: 2, 1, 32>}, {pipeline_mode = #tpu.pipeline_mode<synchronous>, transform_indices = @transform_10, window_bounds = array<i64: 2, 32, 64>}, {pipeline_mode = #tpu.pipeline_mode<synchronous>, transform_indices = @transform_11, window_bounds = array<i64: 2, 1, 64>}, {pipeline_mode = #tpu.pipeline_mode<synchronous>, transform_indices = @transform_12, window_bounds = array<i64: 2, 64, 32>}, {pipeline_mode = #tpu.pipeline_mode<synchronous>, transform_indices = @transform_13, window_bounds = array<i64: 2, 1, 32>}, {pipeline_mode = #tpu.pipeline_mode<synchronous>, transform_indices = @transform_14, window_bounds = array<i64: 2, 1, 32>}, {pipeline_mode = #tpu.pipeline_mode<synchronous>, transform_indices = @transform_15, window_bounds = array<i64: 2, 1, 32>}, {pipeline_mode = #tpu.pipeline_mode<synchronous>, transform_indices = @transform_16, window_bounds = array<i64: 2, 32>}]} {
    %c0 = arith.constant 0 : index
    %c0_0 = arith.constant 0 : index
    %0 = vector.load %arg2[%c0, %c0_0] : memref<2x8xf32, #tpu.memory_space<vmem>>, vector<2x8xf32>
    %cst = arith.constant 1.000000e+00 : f32
    %1 = vector.broadcast %cst : f32 to vector<2x8xf32>
    %2 = arith.subf %1, %0 : vector<2x8xf32>
    %cst_1 = arith.constant -1.000000e+09 : f32
    %3 = vector.broadcast %cst_1 : f32 to vector<2x8xf32>
    %4 = arith.mulf %2, %3 : vector<2x8xf32>
    %c0_2 = arith.constant 0 : index
    %c0_3 = arith.constant 0 : index
    %5 = vector.load %arg1[%c0_2, %c0_3] : memref<16x32xf32, #tpu.memory_space<vmem>>, vector<16x32xf32>
    %c0_4 = arith.constant 0 : index
    %c0_5 = arith.constant 0 : index
    %6 = vector.load %arg3[%c0_4, %c0_5] : memref<1x32xf32, #tpu.memory_space<vmem>>, vector<1x32xf32>
    %c0_6 = arith.constant 0 : index
    %c0_7 = arith.constant 0 : index
    %7 = vector.load %arg4[%c0_6, %c0_7] : memref<1x32xf32, #tpu.memory_space<vmem>>, vector<1x32xf32>
    %cst_8 = arith.constant dense<0.000000e+00> : vector<16xf32>
    %8 = vector.multi_reduction <add>, %5, %cst_8 [1] : vector<16x32xf32> to vector<16xf32>
    %9 = vector.shape_cast %8 : vector<16xf32> to vector<16x1xf32>
    %cst_9 = arith.constant 3.200000e+01 : f32
    %10 = vector.broadcast %cst_9 : f32 to vector<16x1xf32>
    %11 = arith.divf %9, %10 : vector<16x1xf32>
    %12 = vector.broadcast %11 : vector<16x1xf32> to vector<16x32xf32>
    %13 = arith.subf %5, %12 : vector<16x32xf32>
    %14 = arith.mulf %13, %13 : vector<16x32xf32>
    %cst_10 = arith.constant dense<0.000000e+00> : vector<16xf32>
    %15 = vector.multi_reduction <add>, %14, %cst_10 [1] : vector<16x32xf32> to vector<16xf32>
    %16 = vector.shape_cast %15 : vector<16xf32> to vector<16x1xf32>
    %cst_11 = arith.constant 3.200000e+01 : f32
    %17 = vector.broadcast %cst_11 : f32 to vector<16x1xf32>
    %18 = arith.divf %16, %17 : vector<16x1xf32>
    %cst_12 = arith.constant 9.99999996E-13 : f32
    %19 = vector.broadcast %cst_12 : f32 to vector<16x1xf32>
    %20 = arith.addf %18, %19 : vector<16x1xf32>
    %21 = math.rsqrt %20 : vector<16x1xf32>
    %22 = vector.broadcast %21 : vector<16x1xf32> to vector<16x32xf32>
    %23 = arith.mulf %13, %22 : vector<16x32xf32>
    %24 = vector.broadcast %6 : vector<1x32xf32> to vector<16x32xf32>
    %25 = arith.mulf %23, %24 : vector<16x32xf32>
    %26 = vector.broadcast %7 : vector<1x32xf32> to vector<16x32xf32>
    %27 = arith.addf %25, %26 : vector<16x32xf32>
    %c0_13 = arith.constant 0 : index
    %c0_14 = arith.constant 0 : index
    %c0_15 = arith.constant 0 : index
    %28 = vector.load %arg5[%c0_13, %c0_14, %c0_15] : memref<2x32x96xf32, #tpu.memory_space<vmem>>, vector<1x32x96xf32>
    %29 = vector.shape_cast %28 : vector<1x32x96xf32> to vector<32x96xf32>
    %cst_16 = arith.constant dense<0.000000e+00> : vector<16x96xf32>
    %30 = tpu.matmul %27, %29, %cst_16 {dimension_numbers = #tpu.dot_dimension_numbers<[1], [0], [0], [1], [0, 0, 1, 1], [], []>} : vector<16x32xf32>, vector<32x96xf32>, vector<16x96xf32> -> vector<16x96xf32>
    %c0_17 = arith.constant 0 : index
    %c0_18 = arith.constant 0 : index
    %c0_19 = arith.constant 0 : index
    %31 = vector.load %arg6[%c0_17, %c0_18, %c0_19] : memref<2x1x96xf32, #tpu.memory_space<vmem>>, vector<1x1x96xf32>
    %32 = vector.shape_cast %31 : vector<1x1x96xf32> to vector<1x96xf32>
    %33 = vector.broadcast %32 : vector<1x96xf32> to vector<16x96xf32>
    %34 = arith.addf %30, %33 : vector<16x96xf32>
    %c0_20 = arith.constant 0 : index
    %c0_21 = arith.constant 0 : index
    %c0_22 = arith.constant 0 : index
    %35 = vector.load %arg7[%c0_20, %c0_21, %c0_22] : memref<2x32x32xf32, #tpu.memory_space<vmem>>, vector<1x32x32xf32>
    %36 = vector.shape_cast %35 : vector<1x32x32xf32> to vector<32x32xf32>
    %37 = vector.extract_strided_slice %4 {offsets = [0, 0], sizes = [1, 8], strides = [1, 1]} : vector<2x8xf32> to vector<1x8xf32>
    %cst_23 = arith.constant 0.000000e+00 : f32
    %38 = vector.broadcast %cst_23 : f32 to vector<8x32xf32>
    %39 = vector.extract_strided_slice %34 {offsets = [0, 0], sizes = [8, 16], strides = [1, 1]} : vector<16x96xf32> to vector<8x16xf32>
    %40 = vector.extract_strided_slice %34 {offsets = [0, 32], sizes = [8, 16], strides = [1, 1]} : vector<16x96xf32> to vector<8x16xf32>
    %41 = vector.extract_strided_slice %34 {offsets = [0, 64], sizes = [8, 16], strides = [1, 1]} : vector<16x96xf32> to vector<8x16xf32>
    %42 = tpu.transpose %40, [1, 0] : vector<8x16xf32> -> vector<16x8xf32>
    %cst_24 = arith.constant dense<0.000000e+00> : vector<8x8xf32>
    %43 = tpu.matmul %39, %42, %cst_24 {dimension_numbers = #tpu.dot_dimension_numbers<[1], [0], [0], [1], [0, 0, 1, 1], [], []>} : vector<8x16xf32>, vector<16x8xf32>, vector<8x8xf32> -> vector<8x8xf32>
    %cst_25 = arith.constant 2.500000e-01 : f32
    %44 = vector.broadcast %cst_25 : f32 to vector<8x8xf32>
    %45 = arith.mulf %43, %44 : vector<8x8xf32>
    %46 = vector.broadcast %37 : vector<1x8xf32> to vector<8x8xf32>
    %47 = arith.addf %45, %46 : vector<8x8xf32>
    %cst_26 = arith.constant dense<0xFF800000> : vector<8xf32>
    %48 = vector.multi_reduction <maximumf>, %47, %cst_26 [1] : vector<8x8xf32> to vector<8xf32>
    %49 = vector.shape_cast %48 : vector<8xf32> to vector<8x1xf32>
    %50 = vector.broadcast %49 : vector<8x1xf32> to vector<8x8xf32>
    %51 = arith.subf %47, %50 : vector<8x8xf32>
    %52 = math.exp %51 : vector<8x8xf32>
    %cst_27 = arith.constant dense<0.000000e+00> : vector<8xf32>
    %53 = vector.multi_reduction <add>, %52, %cst_27 [1] : vector<8x8xf32> to vector<8xf32>
    %54 = vector.shape_cast %53 : vector<8xf32> to vector<8x1xf32>
    %55 = tpu.reciprocal %54 {approx = true} : vector<8x1xf32> -> vector<8x1xf32>
    %56 = vector.broadcast %55 : vector<8x1xf32> to vector<8x8xf32>
    %57 = arith.mulf %52, %56 : vector<8x8xf32>
    %cst_28 = arith.constant dense<0.000000e+00> : vector<8x16xf32>
    %58 = tpu.matmul %57, %41, %cst_28 {dimension_numbers = #tpu.dot_dimension_numbers<[1], [0], [0], [1], [0, 0, 1, 1], [], []>} : vector<8x8xf32>, vector<8x16xf32>, vector<8x16xf32> -> vector<8x16xf32>
    %59 = vector.extract_strided_slice %36 {offsets = [0, 0], sizes = [16, 32], strides = [1, 1]} : vector<32x32xf32> to vector<16x32xf32>
    %cst_29 = arith.constant dense<0.000000e+00> : vector<8x32xf32>
    %60 = tpu.matmul %58, %59, %cst_29 {dimension_numbers = #tpu.dot_dimension_numbers<[1], [0], [0], [1], [0, 0, 1, 1], [], []>} : vector<8x16xf32>, vector<16x32xf32>, vector<8x32xf32> -> vector<8x32xf32>
    %61 = arith.addf %38, %60 : vector<8x32xf32>
    %62 = vector.extract_strided_slice %34 {offsets = [0, 16], sizes = [8, 16], strides = [1, 1]} : vector<16x96xf32> to vector<8x16xf32>
    %63 = vector.extract_strided_slice %34 {offsets = [0, 48], sizes = [8, 16], strides = [1, 1]} : vector<16x96xf32> to vector<8x16xf32>
    %64 = vector.extract_strided_slice %34 {offsets = [0, 80], sizes = [8, 16], strides = [1, 1]} : vector<16x96xf32> to vector<8x16xf32>
    %65 = tpu.transpose %63, [1, 0] : vector<8x16xf32> -> vector<16x8xf32>
    %cst_30 = arith.constant dense<0.000000e+00> : vector<8x8xf32>
    %66 = tpu.matmul %62, %65, %cst_30 {dimension_numbers = #tpu.dot_dimension_numbers<[1], [0], [0], [1], [0, 0, 1, 1], [], []>} : vector<8x16xf32>, vector<16x8xf32>, vector<8x8xf32> -> vector<8x8xf32>
    %cst_31 = arith.constant 2.500000e-01 : f32
    %67 = vector.broadcast %cst_31 : f32 to vector<8x8xf32>
    %68 = arith.mulf %66, %67 : vector<8x8xf32>
    %69 = vector.broadcast %37 : vector<1x8xf32> to vector<8x8xf32>
    %70 = arith.addf %68, %69 : vector<8x8xf32>
    %cst_32 = arith.constant dense<0xFF800000> : vector<8xf32>
    %71 = vector.multi_reduction <maximumf>, %70, %cst_32 [1] : vector<8x8xf32> to vector<8xf32>
    %72 = vector.shape_cast %71 : vector<8xf32> to vector<8x1xf32>
    %73 = vector.broadcast %72 : vector<8x1xf32> to vector<8x8xf32>
    %74 = arith.subf %70, %73 : vector<8x8xf32>
    %75 = math.exp %74 : vector<8x8xf32>
    %cst_33 = arith.constant dense<0.000000e+00> : vector<8xf32>
    %76 = vector.multi_reduction <add>, %75, %cst_33 [1] : vector<8x8xf32> to vector<8xf32>
    %77 = vector.shape_cast %76 : vector<8xf32> to vector<8x1xf32>
    %78 = tpu.reciprocal %77 {approx = true} : vector<8x1xf32> -> vector<8x1xf32>
    %79 = vector.broadcast %78 : vector<8x1xf32> to vector<8x8xf32>
    %80 = arith.mulf %75, %79 : vector<8x8xf32>
    %cst_34 = arith.constant dense<0.000000e+00> : vector<8x16xf32>
    %81 = tpu.matmul %80, %64, %cst_34 {dimension_numbers = #tpu.dot_dimension_numbers<[1], [0], [0], [1], [0, 0, 1, 1], [], []>} : vector<8x8xf32>, vector<8x16xf32>, vector<8x16xf32> -> vector<8x16xf32>
    %82 = vector.extract_strided_slice %36 {offsets = [16, 0], sizes = [16, 32], strides = [1, 1]} : vector<32x32xf32> to vector<16x32xf32>
    %cst_35 = arith.constant dense<0.000000e+00> : vector<8x32xf32>
    %83 = tpu.matmul %81, %82, %cst_35 {dimension_numbers = #tpu.dot_dimension_numbers<[1], [0], [0], [1], [0, 0, 1, 1], [], []>} : vector<8x16xf32>, vector<16x32xf32>, vector<8x32xf32> -> vector<8x32xf32>
    %84 = arith.addf %61, %83 : vector<8x32xf32>
    %c0_36 = arith.constant 0 : index
    %c0_37 = arith.constant 0 : index
    %85 = vector.load %arg18[%c0_36, %c0_37] : memref<16x32xf32, #tpu.memory_space<vmem>>, vector<8x32xf32>
    tpu.vector_store %arg18[%c0_36, %c0_37], %84 {strides = array<i32>} : memref<16x32xf32, #tpu.memory_space<vmem>>, vector<8x32xf32>,
    %86 = vector.extract_strided_slice %4 {offsets = [1, 0], sizes = [1, 8], strides = [1, 1]} : vector<2x8xf32> to vector<1x8xf32>
    %cst_38 = arith.constant 0.000000e+00 : f32
    %87 = vector.broadcast %cst_38 : f32 to vector<8x32xf32>
    %88 = vector.extract_strided_slice %34 {offsets = [8, 0], sizes = [8, 16], strides = [1, 1]} : vector<16x96xf32> to vector<8x16xf32>
    %89 = vector.extract_strided_slice %34 {offsets = [8, 32], sizes = [8, 16], strides = [1, 1]} : vector<16x96xf32> to vector<8x16xf32>
    %90 = vector.extract_strided_slice %34 {offsets = [8, 64], sizes = [8, 16], strides = [1, 1]} : vector<16x96xf32> to vector<8x16xf32>
    %91 = tpu.transpose %89, [1, 0] : vector<8x16xf32> -> vector<16x8xf32>
    %cst_39 = arith.constant dense<0.000000e+00> : vector<8x8xf32>
    %92 = tpu.matmul %88, %91, %cst_39 {dimension_numbers = #tpu.dot_dimension_numbers<[1], [0], [0], [1], [0, 0, 1, 1], [], []>} : vector<8x16xf32>, vector<16x8xf32>, vector<8x8xf32> -> vector<8x8xf32>
    %cst_40 = arith.constant 2.500000e-01 : f32
    %93 = vector.broadcast %cst_40 : f32 to vector<8x8xf32>
    %94 = arith.mulf %92, %93 : vector<8x8xf32>
    %95 = vector.broadcast %86 : vector<1x8xf32> to vector<8x8xf32>
    %96 = arith.addf %94, %95 : vector<8x8xf32>
    %cst_41 = arith.constant dense<0xFF800000> : vector<8xf32>
    %97 = vector.multi_reduction <maximumf>, %96, %cst_41 [1] : vector<8x8xf32> to vector<8xf32>
    %98 = vector.shape_cast %97 : vector<8xf32> to vector<8x1xf32>
    %99 = vector.broadcast %98 : vector<8x1xf32> to vector<8x8xf32>
    %100 = arith.subf %96, %99 : vector<8x8xf32>
    %101 = math.exp %100 : vector<8x8xf32>
    %cst_42 = arith.constant dense<0.000000e+00> : vector<8xf32>
    %102 = vector.multi_reduction <add>, %101, %cst_42 [1] : vector<8x8xf32> to vector<8xf32>
    %103 = vector.shape_cast %102 : vector<8xf32> to vector<8x1xf32>
    %104 = tpu.reciprocal %103 {approx = true} : vector<8x1xf32> -> vector<8x1xf32>
    %105 = vector.broadcast %104 : vector<8x1xf32> to vector<8x8xf32>
    %106 = arith.mulf %101, %105 : vector<8x8xf32>
    %cst_43 = arith.constant dense<0.000000e+00> : vector<8x16xf32>
    %107 = tpu.matmul %106, %90, %cst_43 {dimension_numbers = #tpu.dot_dimension_numbers<[1], [0], [0], [1], [0, 0, 1, 1], [], []>} : vector<8x8xf32>, vector<8x16xf32>, vector<8x16xf32> -> vector<8x16xf32>
    %108 = vector.extract_strided_slice %36 {offsets = [0, 0], sizes = [16, 32], strides = [1, 1]} : vector<32x32xf32> to vector<16x32xf32>
    %cst_44 = arith.constant dense<0.000000e+00> : vector<8x32xf32>
    %109 = tpu.matmul %107, %108, %cst_44 {dimension_numbers = #tpu.dot_dimension_numbers<[1], [0], [0], [1], [0, 0, 1, 1], [], []>} : vector<8x16xf32>, vector<16x32xf32>, vector<8x32xf32> -> vector<8x32xf32>
    %110 = arith.addf %87, %109 : vector<8x32xf32>
    %111 = vector.extract_strided_slice %34 {offsets = [8, 16], sizes = [8, 16], strides = [1, 1]} : vector<16x96xf32> to vector<8x16xf32>
    %112 = vector.extract_strided_slice %34 {offsets = [8, 48], sizes = [8, 16], strides = [1, 1]} : vector<16x96xf32> to vector<8x16xf32>
    %113 = vector.extract_strided_slice %34 {offsets = [8, 80], sizes = [8, 16], strides = [1, 1]} : vector<16x96xf32> to vector<8x16xf32>
    %114 = tpu.transpose %112, [1, 0] : vector<8x16xf32> -> vector<16x8xf32>
    %cst_45 = arith.constant dense<0.000000e+00> : vector<8x8xf32>
    %115 = tpu.matmul %111, %114, %cst_45 {dimension_numbers = #tpu.dot_dimension_numbers<[1], [0], [0], [1], [0, 0, 1, 1], [], []>} : vector<8x16xf32>, vector<16x8xf32>, vector<8x8xf32> -> vector<8x8xf32>
    %cst_46 = arith.constant 2.500000e-01 : f32
    %116 = vector.broadcast %cst_46 : f32 to vector<8x8xf32>
    %117 = arith.mulf %115, %116 : vector<8x8xf32>
    %118 = vector.broadcast %86 : vector<1x8xf32> to vector<8x8xf32>
    %119 = arith.addf %117, %118 : vector<8x8xf32>
    %cst_47 = arith.constant dense<0xFF800000> : vector<8xf32>
    %120 = vector.multi_reduction <maximumf>, %119, %cst_47 [1] : vector<8x8xf32> to vector<8xf32>
    %121 = vector.shape_cast %120 : vector<8xf32> to vector<8x1xf32>
    %122 = vector.broadcast %121 : vector<8x1xf32> to vector<8x8xf32>
    %123 = arith.subf %119, %122 : vector<8x8xf32>
    %124 = math.exp %123 : vector<8x8xf32>
    %cst_48 = arith.constant dense<0.000000e+00> : vector<8xf32>
    %125 = vector.multi_reduction <add>, %124, %cst_48 [1] : vector<8x8xf32> to vector<8xf32>
    %126 = vector.shape_cast %125 : vector<8xf32> to vector<8x1xf32>
    %127 = tpu.reciprocal %126 {approx = true} : vector<8x1xf32> -> vector<8x1xf32>
    %128 = vector.broadcast %127 : vector<8x1xf32> to vector<8x8xf32>
    %129 = arith.mulf %124, %128 : vector<8x8xf32>
    %cst_49 = arith.constant dense<0.000000e+00> : vector<8x16xf32>
    %130 = tpu.matmul %129, %113, %cst_49 {dimension_numbers = #tpu.dot_dimension_numbers<[1], [0], [0], [1], [0, 0, 1, 1], [], []>} : vector<8x8xf32>, vector<8x16xf32>, vector<8x16xf32> -> vector<8x16xf32>
    %131 = vector.extract_strided_slice %36 {offsets = [16, 0], sizes = [16, 32], strides = [1, 1]} : vector<32x32xf32> to vector<16x32xf32>
    %cst_50 = arith.constant dense<0.000000e+00> : vector<8x32xf32>
    %132 = tpu.matmul %130, %131, %cst_50 {dimension_numbers = #tpu.dot_dimension_numbers<[1], [0], [0], [1], [0, 0, 1, 1], [], []>} : vector<8x16xf32>, vector<16x32xf32>, vector<8x32xf32> -> vector<8x32xf32>
    %133 = arith.addf %110, %132 : vector<8x32xf32>
    %c8 = arith.constant 8 : index
    %c0_51 = arith.constant 0 : index
    %134 = vector.load %arg18[%c8, %c0_51] : memref<16x32xf32, #tpu.memory_space<vmem>>, vector<8x32xf32>
    tpu.vector_store %arg18[%c8, %c0_51], %133 {strides = array<i32>} : memref<16x32xf32, #tpu.memory_space<vmem>>, vector<8x32xf32>,
    %c0_52 = arith.constant 0 : index
    %c0_53 = arith.constant 0 : index
    %135 = vector.load %arg18[%c0_52, %c0_53] : memref<16x32xf32, #tpu.memory_space<vmem>>, vector<16x32xf32>
    %c0_54 = arith.constant 0 : index
    %c0_55 = arith.constant 0 : index
    %c0_56 = arith.constant 0 : index
    %136 = vector.load %arg8[%c0_54, %c0_55, %c0_56] : memref<2x1x32xf32, #tpu.memory_space<vmem>>, vector<1x1x32xf32>
    %137 = vector.shape_cast %136 : vector<1x1x32xf32> to vector<1x32xf32>
    %138 = vector.broadcast %137 : vector<1x32xf32> to vector<16x32xf32>
    %139 = arith.addf %135, %138 : vector<16x32xf32>
    %140 = arith.addf %139, %27 : vector<16x32xf32>
    %c0_57 = arith.constant 0 : index
    %c0_58 = arith.constant 0 : index
    %c0_59 = arith.constant 0 : index
    %141 = vector.load %arg9[%c0_57, %c0_58, %c0_59] : memref<2x1x32xf32, #tpu.memory_space<vmem>>, vector<1x1x32xf32>
    %142 = vector.shape_cast %141 : vector<1x1x32xf32> to vector<1x32xf32>
    %c0_60 = arith.constant 0 : index
    %c0_61 = arith.constant 0 : index
    %c0_62 = arith.constant 0 : index
    %143 = vector.load %arg10[%c0_60, %c0_61, %c0_62] : memref<2x1x32xf32, #tpu.memory_space<vmem>>, vector<1x1x32xf32>
    %144 = vector.shape_cast %143 : vector<1x1x32xf32> to vector<1x32xf32>
    %cst_63 = arith.constant dense<0.000000e+00> : vector<16xf32>
    %145 = vector.multi_reduction <add>, %140, %cst_63 [1] : vector<16x32xf32> to vector<16xf32>
    %146 = vector.shape_cast %145 : vector<16xf32> to vector<16x1xf32>
    %cst_64 = arith.constant 3.200000e+01 : f32
    %147 = vector.broadcast %cst_64 : f32 to vector<16x1xf32>
    %148 = arith.divf %146, %147 : vector<16x1xf32>
    %149 = vector.broadcast %148 : vector<16x1xf32> to vector<16x32xf32>
    %150 = arith.subf %140, %149 : vector<16x32xf32>
    %151 = arith.mulf %150, %150 : vector<16x32xf32>
    %cst_65 = arith.constant dense<0.000000e+00> : vector<16xf32>
    %152 = vector.multi_reduction <add>, %151, %cst_65 [1] : vector<16x32xf32> to vector<16xf32>
    %153 = vector.shape_cast %152 : vector<16xf32> to vector<16x1xf32>
    %cst_66 = arith.constant 3.200000e+01 : f32
    %154 = vector.broadcast %cst_66 : f32 to vector<16x1xf32>
    %155 = arith.divf %153, %154 : vector<16x1xf32>
    %cst_67 = arith.constant 9.99999996E-13 : f32
    %156 = vector.broadcast %cst_67 : f32 to vector<16x1xf32>
    %157 = arith.addf %155, %156 : vector<16x1xf32>
    %158 = math.rsqrt %157 : vector<16x1xf32>
    %159 = vector.broadcast %158 : vector<16x1xf32> to vector<16x32xf32>
    %160 = arith.mulf %150, %159 : vector<16x32xf32>
    %161 = vector.broadcast %142 : vector<1x32xf32> to vector<16x32xf32>
    %162 = arith.mulf %160, %161 : vector<16x32xf32>
    %163 = vector.broadcast %144 : vector<1x32xf32> to vector<16x32xf32>
    %164 = arith.addf %162, %163 : vector<16x32xf32>
    %c0_68 = arith.constant 0 : index
    %c0_69 = arith.constant 0 : index
    %c0_70 = arith.constant 0 : index
    %165 = vector.load %arg11[%c0_68, %c0_69, %c0_70] : memref<2x32x64xf32, #tpu.memory_space<vmem>>, vector<1x32x64xf32>
    %166 = vector.shape_cast %165 : vector<1x32x64xf32> to vector<32x64xf32>
    %cst_71 = arith.constant dense<0.000000e+00> : vector<16x64xf32>
    %167 = tpu.matmul %164, %166, %cst_71 {dimension_numbers = #tpu.dot_dimension_numbers<[1], [0], [0], [1], [0, 0, 1, 1], [], []>} : vector<16x32xf32>, vector<32x64xf32>, vector<16x64xf32> -> vector<16x64xf32>
    %c0_72 = arith.constant 0 : index
    %c0_73 = arith.constant 0 : index
    %c0_74 = arith.constant 0 : index
    %168 = vector.load %arg12[%c0_72, %c0_73, %c0_74] : memref<2x1x64xf32, #tpu.memory_space<vmem>>, vector<1x1x64xf32>
    %169 = vector.shape_cast %168 : vector<1x1x64xf32> to vector<1x64xf32>
    %170 = vector.broadcast %169 : vector<1x64xf32> to vector<16x64xf32>
    %171 = arith.addf %167, %170 : vector<16x64xf32>
    %cst_75 = arith.constant 5.000000e-01 : f32
    %172 = vector.broadcast %cst_75 : f32 to vector<16x64xf32>
    %173 = arith.mulf %172, %171 : vector<16x64xf32>
    %cst_76 = arith.constant 4.471500e-02 : f32
    %174 = vector.broadcast %cst_76 : f32 to vector<16x64xf32>
    %175 = arith.mulf %174, %171 : vector<16x64xf32>
    %176 = arith.mulf %175, %171 : vector<16x64xf32>
    %177 = arith.mulf %176, %171 : vector<16x64xf32>
    %178 = arith.addf %171, %177 : vector<16x64xf32>
    %cst_77 = arith.constant 0.797884583 : f32
    %179 = vector.broadcast %cst_77 : f32 to vector<16x64xf32>
    %180 = arith.mulf %179, %178 : vector<16x64xf32>
    %181 = math.tanh %180 : vector<16x64xf32>
    %cst_78 = arith.constant 1.000000e+00 : f32
    %182 = vector.broadcast %cst_78 : f32 to vector<16x64xf32>
    %183 = arith.addf %182, %181 : vector<16x64xf32>
    %184 = arith.mulf %173, %183 : vector<16x64xf32>
    %c0_79 = arith.constant 0 : index
    %c0_80 = arith.constant 0 : index
    %c0_81 = arith.constant 0 : index
    %185 = vector.load %arg13[%c0_79, %c0_80, %c0_81] : memref<2x64x32xf32, #tpu.memory_space<vmem>>, vector<1x64x32xf32>
    %186 = vector.shape_cast %185 : vector<1x64x32xf32> to vector<64x32xf32>
    %cst_82 = arith.constant dense<0.000000e+00> : vector<16x32xf32>
    %187 = tpu.matmul %184, %186, %cst_82 {dimension_numbers = #tpu.dot_dimension_numbers<[1], [0], [0], [1], [0, 0, 1, 1], [], []>} : vector<16x64xf32>, vector<64x32xf32>, vector<16x32xf32> -> vector<16x32xf32>
    %c0_83 = arith.constant 0 : index
    %c0_84 = arith.constant 0 : index
    %c0_85 = arith.constant 0 : index
    %188 = vector.load %arg14[%c0_83, %c0_84, %c0_85] : memref<2x1x32xf32, #tpu.memory_space<vmem>>, vector<1x1x32xf32>
    %189 = vector.shape_cast %188 : vector<1x1x32xf32> to vector<1x32xf32>
    %190 = vector.broadcast %189 : vector<1x32xf32> to vector<16x32xf32>
    %191 = arith.addf %187, %190 : vector<16x32xf32>
    %192 = arith.addf %191, %164 : vector<16x32xf32>
    %c0_86 = arith.constant 0 : index
    %c0_87 = arith.constant 0 : index
    %c0_88 = arith.constant 0 : index
    %193 = vector.load %arg15[%c0_86, %c0_87, %c0_88] : memref<2x1x32xf32, #tpu.memory_space<vmem>>, vector<1x1x32xf32>
    %194 = vector.shape_cast %193 : vector<1x1x32xf32> to vector<1x32xf32>
    %c0_89 = arith.constant 0 : index
    %c0_90 = arith.constant 0 : index
    %c0_91 = arith.constant 0 : index
    %195 = vector.load %arg16[%c0_89, %c0_90, %c0_91] : memref<2x1x32xf32, #tpu.memory_space<vmem>>, vector<1x1x32xf32>
    %196 = vector.shape_cast %195 : vector<1x1x32xf32> to vector<1x32xf32>
    %cst_92 = arith.constant dense<0.000000e+00> : vector<16xf32>
    %197 = vector.multi_reduction <add>, %192, %cst_92 [1] : vector<16x32xf32> to vector<16xf32>
    %198 = vector.shape_cast %197 : vector<16xf32> to vector<16x1xf32>
    %cst_93 = arith.constant 3.200000e+01 : f32
    %199 = vector.broadcast %cst_93 : f32 to vector<16x1xf32>
    %200 = arith.divf %198, %199 : vector<16x1xf32>
    %201 = vector.broadcast %200 : vector<16x1xf32> to vector<16x32xf32>
    %202 = arith.subf %192, %201 : vector<16x32xf32>
    %203 = arith.mulf %202, %202 : vector<16x32xf32>
    %cst_94 = arith.constant dense<0.000000e+00> : vector<16xf32>
    %204 = vector.multi_reduction <add>, %203, %cst_94 [1] : vector<16x32xf32> to vector<16xf32>
    %205 = vector.shape_cast %204 : vector<16xf32> to vector<16x1xf32>
    %cst_95 = arith.constant 3.200000e+01 : f32
    %206 = vector.broadcast %cst_95 : f32 to vector<16x1xf32>
    %207 = arith.divf %205, %206 : vector<16x1xf32>
    %cst_96 = arith.constant 9.99999996E-13 : f32
    %208 = vector.broadcast %cst_96 : f32 to vector<16x1xf32>
    %209 = arith.addf %207, %208 : vector<16x1xf32>
    %210 = math.rsqrt %209 : vector<16x1xf32>
    %211 = vector.broadcast %210 : vector<16x1xf32> to vector<16x32xf32>
    %212 = arith.mulf %202, %211 : vector<16x32xf32>
    %213 = vector.broadcast %194 : vector<1x32xf32> to vector<16x32xf32>
    %214 = arith.mulf %212, %213 : vector<16x32xf32>
    %215 = vector.broadcast %196 : vector<1x32xf32> to vector<16x32xf32>
    %216 = arith.addf %214, %215 : vector<16x32xf32>
    %c1 = arith.constant 1 : index
    %c0_97 = arith.constant 0 : index
    %c0_98 = arith.constant 0 : index
    %217 = vector.load %arg5[%c1, %c0_97, %c0_98] : memref<2x32x96xf32, #tpu.memory_space<vmem>>, vector<1x32x96xf32>
    %218 = vector.shape_cast %217 : vector<1x32x96xf32> to vector<32x96xf32>
    %cst_99 = arith.constant dense<0.000000e+00> : vector<16x96xf32>
    %219 = tpu.matmul %216, %218, %cst_99 {dimension_numbers = #tpu.dot_dimension_numbers<[1], [0], [0], [1], [0, 0, 1, 1], [], []>} : vector<16x32xf32>, vector<32x96xf32>, vector<16x96xf32> -> vector<16x96xf32>
    %c1_100 = arith.constant 1 : index
    %c0_101 = arith.constant 0 : index
    %c0_102 = arith.constant 0 : index
    %220 = vector.load %arg6[%c1_100, %c0_101, %c0_102] : memref<2x1x96xf32, #tpu.memory_space<vmem>>, vector<1x1x96xf32>
    %221 = vector.shape_cast %220 : vector<1x1x96xf32> to vector<1x96xf32>
    %222 = vector.broadcast %221 : vector<1x96xf32> to vector<16x96xf32>
    %223 = arith.addf %219, %222 : vector<16x96xf32>
    %c1_103 = arith.constant 1 : index
    %c0_104 = arith.constant 0 : index
    %c0_105 = arith.constant 0 : index
    %224 = vector.load %arg7[%c1_103, %c0_104, %c0_105] : memref<2x32x32xf32, #tpu.memory_space<vmem>>, vector<1x32x32xf32>
    %225 = vector.shape_cast %224 : vector<1x32x32xf32> to vector<32x32xf32>
    %226 = vector.extract_strided_slice %4 {offsets = [0, 0], sizes = [1, 8], strides = [1, 1]} : vector<2x8xf32> to vector<1x8xf32>
    %cst_106 = arith.constant 0.000000e+00 : f32
    %227 = vector.broadcast %cst_106 : f32 to vector<8x32xf32>
    %228 = vector.extract_strided_slice %223 {offsets = [0, 0], sizes = [8, 16], strides = [1, 1]} : vector<16x96xf32> to vector<8x16xf32>
    %229 = vector.extract_strided_slice %223 {offsets = [0, 32], sizes = [8, 16], strides = [1, 1]} : vector<16x96xf32> to vector<8x16xf32>
    %230 = vector.extract_strided_slice %223 {offsets = [0, 64], sizes = [8, 16], strides = [1, 1]} : vector<16x96xf32> to vector<8x16xf32>
    %231 = tpu.transpose %229, [1, 0] : vector<8x16xf32> -> vector<16x8xf32>
    %cst_107 = arith.constant dense<0.000000e+00> : vector<8x8xf32>
    %232 = tpu.matmul %228, %231, %cst_107 {dimension_numbers = #tpu.dot_dimension_numbers<[1], [0], [0], [1], [0, 0, 1, 1], [], []>} : vector<8x16xf32>, vector<16x8xf32>, vector<8x8xf32> -> vector<8x8xf32>
    %cst_108 = arith.constant 2.500000e-01 : f32
    %233 = vector.broadcast %cst_108 : f32 to vector<8x8xf32>
    %234 = arith.mulf %232, %233 : vector<8x8xf32>
    %235 = vector.broadcast %226 : vector<1x8xf32> to vector<8x8xf32>
    %236 = arith.addf %234, %235 : vector<8x8xf32>
    %cst_109 = arith.constant dense<0xFF800000> : vector<8xf32>
    %237 = vector.multi_reduction <maximumf>, %236, %cst_109 [1] : vector<8x8xf32> to vector<8xf32>
    %238 = vector.shape_cast %237 : vector<8xf32> to vector<8x1xf32>
    %239 = vector.broadcast %238 : vector<8x1xf32> to vector<8x8xf32>
    %240 = arith.subf %236, %239 : vector<8x8xf32>
    %241 = math.exp %240 : vector<8x8xf32>
    %cst_110 = arith.constant dense<0.000000e+00> : vector<8xf32>
    %242 = vector.multi_reduction <add>, %241, %cst_110 [1] : vector<8x8xf32> to vector<8xf32>
    %243 = vector.shape_cast %242 : vector<8xf32> to vector<8x1xf32>
    %244 = tpu.reciprocal %243 {approx = true} : vector<8x1xf32> -> vector<8x1xf32>
    %245 = vector.broadcast %244 : vector<8x1xf32> to vector<8x8xf32>
    %246 = arith.mulf %241, %245 : vector<8x8xf32>
    %cst_111 = arith.constant dense<0.000000e+00> : vector<8x16xf32>
    %247 = tpu.matmul %246, %230, %cst_111 {dimension_numbers = #tpu.dot_dimension_numbers<[1], [0], [0], [1], [0, 0, 1, 1], [], []>} : vector<8x8xf32>, vector<8x16xf32>, vector<8x16xf32> -> vector<8x16xf32>
    %248 = vector.extract_strided_slice %225 {offsets = [0, 0], sizes = [16, 32], strides = [1, 1]} : vector<32x32xf32> to vector<16x32xf32>
    %cst_112 = arith.constant dense<0.000000e+00> : vector<8x32xf32>
    %249 = tpu.matmul %247, %248, %cst_112 {dimension_numbers = #tpu.dot_dimension_numbers<[1], [0], [0], [1], [0, 0, 1, 1], [], []>} : vector<8x16xf32>, vector<16x32xf32>, vector<8x32xf32> -> vector<8x32xf32>
    %250 = arith.addf %227, %249 : vector<8x32xf32>
    %251 = vector.extract_strided_slice %223 {offsets = [0, 16], sizes = [8, 16], strides = [1, 1]} : vector<16x96xf32> to vector<8x16xf32>
    %252 = vector.extract_strided_slice %223 {offsets = [0, 48], sizes = [8, 16], strides = [1, 1]} : vector<16x96xf32> to vector<8x16xf32>
    %253 = vector.extract_strided_slice %223 {offsets = [0, 80], sizes = [8, 16], strides = [1, 1]} : vector<16x96xf32> to vector<8x16xf32>
    %254 = tpu.transpose %252, [1, 0] : vector<8x16xf32> -> vector<16x8xf32>
    %cst_113 = arith.constant dense<0.000000e+00> : vector<8x8xf32>
    %255 = tpu.matmul %251, %254, %cst_113 {dimension_numbers = #tpu.dot_dimension_numbers<[1], [0], [0], [1], [0, 0, 1, 1], [], []>} : vector<8x16xf32>, vector<16x8xf32>, vector<8x8xf32> -> vector<8x8xf32>
    %cst_114 = arith.constant 2.500000e-01 : f32
    %256 = vector.broadcast %cst_114 : f32 to vector<8x8xf32>
    %257 = arith.mulf %255, %256 : vector<8x8xf32>
    %258 = vector.broadcast %226 : vector<1x8xf32> to vector<8x8xf32>
    %259 = arith.addf %257, %258 : vector<8x8xf32>
    %cst_115 = arith.constant dense<0xFF800000> : vector<8xf32>
    %260 = vector.multi_reduction <maximumf>, %259, %cst_115 [1] : vector<8x8xf32> to vector<8xf32>
    %261 = vector.shape_cast %260 : vector<8xf32> to vector<8x1xf32>
    %262 = vector.broadcast %261 : vector<8x1xf32> to vector<8x8xf32>
    %263 = arith.subf %259, %262 : vector<8x8xf32>
    %264 = math.exp %263 : vector<8x8xf32>
    %cst_116 = arith.constant dense<0.000000e+00> : vector<8xf32>
    %265 = vector.multi_reduction <add>, %264, %cst_116 [1] : vector<8x8xf32> to vector<8xf32>
    %266 = vector.shape_cast %265 : vector<8xf32> to vector<8x1xf32>
    %267 = tpu.reciprocal %266 {approx = true} : vector<8x1xf32> -> vector<8x1xf32>
    %268 = vector.broadcast %267 : vector<8x1xf32> to vector<8x8xf32>
    %269 = arith.mulf %264, %268 : vector<8x8xf32>
    %cst_117 = arith.constant dense<0.000000e+00> : vector<8x16xf32>
    %270 = tpu.matmul %269, %253, %cst_117 {dimension_numbers = #tpu.dot_dimension_numbers<[1], [0], [0], [1], [0, 0, 1, 1], [], []>} : vector<8x8xf32>, vector<8x16xf32>, vector<8x16xf32> -> vector<8x16xf32>
    %271 = vector.extract_strided_slice %225 {offsets = [16, 0], sizes = [16, 32], strides = [1, 1]} : vector<32x32xf32> to vector<16x32xf32>
    %cst_118 = arith.constant dense<0.000000e+00> : vector<8x32xf32>
    %272 = tpu.matmul %270, %271, %cst_118 {dimension_numbers = #tpu.dot_dimension_numbers<[1], [0], [0], [1], [0, 0, 1, 1], [], []>} : vector<8x16xf32>, vector<16x32xf32>, vector<8x32xf32> -> vector<8x32xf32>
    %273 = arith.addf %250, %272 : vector<8x32xf32>
    %c0_119 = arith.constant 0 : index
    %c0_120 = arith.constant 0 : index
    %274 = vector.load %arg18[%c0_119, %c0_120] : memref<16x32xf32, #tpu.memory_space<vmem>>, vector<8x32xf32>
    tpu.vector_store %arg18[%c0_119, %c0_120], %273 {strides = array<i32>} : memref<16x32xf32, #tpu.memory_space<vmem>>, vector<8x32xf32>,
    %275 = vector.extract_strided_slice %4 {offsets = [1, 0], sizes = [1, 8], strides = [1, 1]} : vector<2x8xf32> to vector<1x8xf32>
    %cst_121 = arith.constant 0.000000e+00 : f32
    %276 = vector.broadcast %cst_121 : f32 to vector<8x32xf32>
    %277 = vector.extract_strided_slice %223 {offsets = [8, 0], sizes = [8, 16], strides = [1, 1]} : vector<16x96xf32> to vector<8x16xf32>
    %278 = vector.extract_strided_slice %223 {offsets = [8, 32], sizes = [8, 16], strides = [1, 1]} : vector<16x96xf32> to vector<8x16xf32>
    %279 = vector.extract_strided_slice %223 {offsets = [8, 64], sizes = [8, 16], strides = [1, 1]} : vector<16x96xf32> to vector<8x16xf32>
    %280 = tpu.transpose %278, [1, 0] : vector<8x16xf32> -> vector<16x8xf32>
    %cst_122 = arith.constant dense<0.000000e+00> : vector<8x8xf32>
    %281 = tpu.matmul %277, %280, %cst_122 {dimension_numbers = #tpu.dot_dimension_numbers<[1], [0], [0], [1], [0, 0, 1, 1], [], []>} : vector<8x16xf32>, vector<16x8xf32>, vector<8x8xf32> -> vector<8x8xf32>
    %cst_123 = arith.constant 2.500000e-01 : f32
    %282 = vector.broadcast %cst_123 : f32 to vector<8x8xf32>
    %283 = arith.mulf %281, %282 : vector<8x8xf32>
    %284 = vector.broadcast %275 : vector<1x8xf32> to vector<8x8xf32>
    %285 = arith.addf %283, %284 : vector<8x8xf32>
    %cst_124 = arith.constant dense<0xFF800000> : vector<8xf32>
    %286 = vector.multi_reduction <maximumf>, %285, %cst_124 [1] : vector<8x8xf32> to vector<8xf32>
    %287 = vector.shape_cast %286 : vector<8xf32> to vector<8x1xf32>
    %288 = vector.broadcast %287 : vector<8x1xf32> to vector<8x8xf32>
    %289 = arith.subf %285, %288 : vector<8x8xf32>
    %290 = math.exp %289 : vector<8x8xf32>
    %cst_125 = arith.constant dense<0.000000e+00> : vector<8xf32>
    %291 = vector.multi_reduction <add>, %290, %cst_125 [1] : vector<8x8xf32> to vector<8xf32>
    %292 = vector.shape_cast %291 : vector<8xf32> to vector<8x1xf32>
    %293 = tpu.reciprocal %292 {approx = true} : vector<8x1xf32> -> vector<8x1xf32>
    %294 = vector.broadcast %293 : vector<8x1xf32> to vector<8x8xf32>
    %295 = arith.mulf %290, %294 : vector<8x8xf32>
    %cst_126 = arith.constant dense<0.000000e+00> : vector<8x16xf32>
    %296 = tpu.matmul %295, %279, %cst_126 {dimension_numbers = #tpu.dot_dimension_numbers<[1], [0], [0], [1], [0, 0, 1, 1], [], []>} : vector<8x8xf32>, vector<8x16xf32>, vector<8x16xf32> -> vector<8x16xf32>
    %297 = vector.extract_strided_slice %225 {offsets = [0, 0], sizes = [16, 32], strides = [1, 1]} : vector<32x32xf32> to vector<16x32xf32>
    %cst_127 = arith.constant dense<0.000000e+00> : vector<8x32xf32>
    %298 = tpu.matmul %296, %297, %cst_127 {dimension_numbers = #tpu.dot_dimension_numbers<[1], [0], [0], [1], [0, 0, 1, 1], [], []>} : vector<8x16xf32>, vector<16x32xf32>, vector<8x32xf32> -> vector<8x32xf32>
    %299 = arith.addf %276, %298 : vector<8x32xf32>
    %300 = vector.extract_strided_slice %223 {offsets = [8, 16], sizes = [8, 16], strides = [1, 1]} : vector<16x96xf32> to vector<8x16xf32>
    %301 = vector.extract_strided_slice %223 {offsets = [8, 48], sizes = [8, 16], strides = [1, 1]} : vector<16x96xf32> to vector<8x16xf32>
    %302 = vector.extract_strided_slice %223 {offsets = [8, 80], sizes = [8, 16], strides = [1, 1]} : vector<16x96xf32> to vector<8x16xf32>
    %303 = tpu.transpose %301, [1, 0] : vector<8x16xf32> -> vector<16x8xf32>
    %cst_128 = arith.constant dense<0.000000e+00> : vector<8x8xf32>
    %304 = tpu.matmul %300, %303, %cst_128 {dimension_numbers = #tpu.dot_dimension_numbers<[1], [0], [0], [1], [0, 0, 1, 1], [], []>} : vector<8x16xf32>, vector<16x8xf32>, vector<8x8xf32> -> vector<8x8xf32>
    %cst_129 = arith.constant 2.500000e-01 : f32
    %305 = vector.broadcast %cst_129 : f32 to vector<8x8xf32>
    %306 = arith.mulf %304, %305 : vector<8x8xf32>
    %307 = vector.broadcast %275 : vector<1x8xf32> to vector<8x8xf32>
    %308 = arith.addf %306, %307 : vector<8x8xf32>
    %cst_130 = arith.constant dense<0xFF800000> : vector<8xf32>
    %309 = vector.multi_reduction <maximumf>, %308, %cst_130 [1] : vector<8x8xf32> to vector<8xf32>
    %310 = vector.shape_cast %309 : vector<8xf32> to vector<8x1xf32>
    %311 = vector.broadcast %310 : vector<8x1xf32> to vector<8x8xf32>
    %312 = arith.subf %308, %311 : vector<8x8xf32>
    %313 = math.exp %312 : vector<8x8xf32>
    %cst_131 = arith.constant dense<0.000000e+00> : vector<8xf32>
    %314 = vector.multi_reduction <add>, %313, %cst_131 [1] : vector<8x8xf32> to vector<8xf32>
    %315 = vector.shape_cast %314 : vector<8xf32> to vector<8x1xf32>
    %316 = tpu.reciprocal %315 {approx = true} : vector<8x1xf32> -> vector<8x1xf32>
    %317 = vector.broadcast %316 : vector<8x1xf32> to vector<8x8xf32>
    %318 = arith.mulf %313, %317 : vector<8x8xf32>
    %cst_132 = arith.constant dense<0.000000e+00> : vector<8x16xf32>
    %319 = tpu.matmul %318, %302, %cst_132 {dimension_numbers = #tpu.dot_dimension_numbers<[1], [0], [0], [1], [0, 0, 1, 1], [], []>} : vector<8x8xf32>, vector<8x16xf32>, vector<8x16xf32> -> vector<8x16xf32>
    %320 = vector.extract_strided_slice %225 {offsets = [16, 0], sizes = [16, 32], strides = [1, 1]} : vector<32x32xf32> to vector<16x32xf32>
    %cst_133 = arith.constant dense<0.000000e+00> : vector<8x32xf32>
    %321 = tpu.matmul %319, %320, %cst_133 {dimension_numbers = #tpu.dot_dimension_numbers<[1], [0], [0], [1], [0, 0, 1, 1], [], []>} : vector<8x16xf32>, vector<16x32xf32>, vector<8x32xf32> -> vector<8x32xf32>
    %322 = arith.addf %299, %321 : vector<8x32xf32>
    %c8_134 = arith.constant 8 : index
    %c0_135 = arith.constant 0 : index
    %323 = vector.load %arg18[%c8_134, %c0_135] : memref<16x32xf32, #tpu.memory_space<vmem>>, vector<8x32xf32>
    tpu.vector_store %arg18[%c8_134, %c0_135], %322 {strides = array<i32>} : memref<16x32xf32, #tpu.memory_space<vmem>>, vector<8x32xf32>,
    %c0_136 = arith.constant 0 : index
    %c0_137 = arith.constant 0 : index
    %324 = vector.load %arg18[%c0_136, %c0_137] : memref<16x32xf32, #tpu.memory_space<vmem>>, vector<16x32xf32>
    %c1_138 = arith.constant 1 : index
    %c0_139 = arith.constant 0 : index
    %c0_140 = arith.constant 0 : index
    %325 = vector.load %arg8[%c1_138, %c0_139, %c0_140] : memref<2x1x32xf32, #tpu.memory_space<vmem>>, vector<1x1x32xf32>
    %326 = vector.shape_cast %325 : vector<1x1x32xf32> to vector<1x32xf32>
    %327 = vector.broadcast %326 : vector<1x32xf32> to vector<16x32xf32>
    %328 = arith.addf %324, %327 : vector<16x32xf32>
    %329 = arith.addf %328, %216 : vector<16x32xf32>
    %c1_141 = arith.constant 1 : index
    %c0_142 = arith.constant 0 : index
    %c0_143 = arith.constant 0 : index
    %330 = vector.load %arg9[%c1_141, %c0_142, %c0_143] : memref<2x1x32xf32, #tpu.memory_space<vmem>>, vector<1x1x32xf32>
    %331 = vector.shape_cast %330 : vector<1x1x32xf32> to vector<1x32xf32>
    %c1_144 = arith.constant 1 : index
    %c0_145 = arith.constant 0 : index
    %c0_146 = arith.constant 0 : index
    %332 = vector.load %arg10[%c1_144, %c0_145, %c0_146] : memref<2x1x32xf32, #tpu.memory_space<vmem>>, vector<1x1x32xf32>
    %333 = vector.shape_cast %332 : vector<1x1x32xf32> to vector<1x32xf32>
    %cst_147 = arith.constant dense<0.000000e+00> : vector<16xf32>
    %334 = vector.multi_reduction <add>, %329, %cst_147 [1] : vector<16x32xf32> to vector<16xf32>
    %335 = vector.shape_cast %334 : vector<16xf32> to vector<16x1xf32>
    %cst_148 = arith.constant 3.200000e+01 : f32
    %336 = vector.broadcast %cst_148 : f32 to vector<16x1xf32>
    %337 = arith.divf %335, %336 : vector<16x1xf32>
    %338 = vector.broadcast %337 : vector<16x1xf32> to vector<16x32xf32>
    %339 = arith.subf %329, %338 : vector<16x32xf32>
    %340 = arith.mulf %339, %339 : vector<16x32xf32>
    %cst_149 = arith.constant dense<0.000000e+00> : vector<16xf32>
    %341 = vector.multi_reduction <add>, %340, %cst_149 [1] : vector<16x32xf32> to vector<16xf32>
    %342 = vector.shape_cast %341 : vector<16xf32> to vector<16x1xf32>
    %cst_150 = arith.constant 3.200000e+01 : f32
    %343 = vector.broadcast %cst_150 : f32 to vector<16x1xf32>
    %344 = arith.divf %342, %343 : vector<16x1xf32>
    %cst_151 = arith.constant 9.99999996E-13 : f32
    %345 = vector.broadcast %cst_151 : f32 to vector<16x1xf32>
    %346 = arith.addf %344, %345 : vector<16x1xf32>
    %347 = math.rsqrt %346 : vector<16x1xf32>
    %348 = vector.broadcast %347 : vector<16x1xf32> to vector<16x32xf32>
    %349 = arith.mulf %339, %348 : vector<16x32xf32>
    %350 = vector.broadcast %331 : vector<1x32xf32> to vector<16x32xf32>
    %351 = arith.mulf %349, %350 : vector<16x32xf32>
    %352 = vector.broadcast %333 : vector<1x32xf32> to vector<16x32xf32>
    %353 = arith.addf %351, %352 : vector<16x32xf32>
    %c1_152 = arith.constant 1 : index
    %c0_153 = arith.constant 0 : index
    %c0_154 = arith.constant 0 : index
    %354 = vector.load %arg11[%c1_152, %c0_153, %c0_154] : memref<2x32x64xf32, #tpu.memory_space<vmem>>, vector<1x32x64xf32>
    %355 = vector.shape_cast %354 : vector<1x32x64xf32> to vector<32x64xf32>
    %cst_155 = arith.constant dense<0.000000e+00> : vector<16x64xf32>
    %356 = tpu.matmul %353, %355, %cst_155 {dimension_numbers = #tpu.dot_dimension_numbers<[1], [0], [0], [1], [0, 0, 1, 1], [], []>} : vector<16x32xf32>, vector<32x64xf32>, vector<16x64xf32> -> vector<16x64xf32>
    %c1_156 = arith.constant 1 : index
    %c0_157 = arith.constant 0 : index
    %c0_158 = arith.constant 0 : index
    %357 = vector.load %arg12[%c1_156, %c0_157, %c0_158] : memref<2x1x64xf32, #tpu.memory_space<vmem>>, vector<1x1x64xf32>
    %358 = vector.shape_cast %357 : vector<1x1x64xf32> to vector<1x64xf32>
    %359 = vector.broadcast %358 : vector<1x64xf32> to vector<16x64xf32>
    %360 = arith.addf %356, %359 : vector<16x64xf32>
    %cst_159 = arith.constant 5.000000e-01 : f32
    %361 = vector.broadcast %cst_159 : f32 to vector<16x64xf32>
    %362 = arith.mulf %361, %360 : vector<16x64xf32>
    %cst_160 = arith.constant 4.471500e-02 : f32
    %363 = vector.broadcast %cst_160 : f32 to vector<16x64xf32>
    %364 = arith.mulf %363, %360 : vector<16x64xf32>
    %365 = arith.mulf %364, %360 : vector<16x64xf32>
    %366 = arith.mulf %365, %360 : vector<16x64xf32>
    %367 = arith.addf %360, %366 : vector<16x64xf32>
    %cst_161 = arith.constant 0.797884583 : f32
    %368 = vector.broadcast %cst_161 : f32 to vector<16x64xf32>
    %369 = arith.mulf %368, %367 : vector<16x64xf32>
    %370 = math.tanh %369 : vector<16x64xf32>
    %cst_162 = arith.constant 1.000000e+00 : f32
    %371 = vector.broadcast %cst_162 : f32 to vector<16x64xf32>
    %372 = arith.addf %371, %370 : vector<16x64xf32>
    %373 = arith.mulf %362, %372 : vector<16x64xf32>
    %c1_163 = arith.constant 1 : index
    %c0_164 = arith.constant 0 : index
    %c0_165 = arith.constant 0 : index
    %374 = vector.load %arg13[%c1_163, %c0_164, %c0_165] : memref<2x64x32xf32, #tpu.memory_space<vmem>>, vector<1x64x32xf32>
    %375 = vector.shape_cast %374 : vector<1x64x32xf32> to vector<64x32xf32>
    %cst_166 = arith.constant dense<0.000000e+00> : vector<16x32xf32>
    %376 = tpu.matmul %373, %375, %cst_166 {dimension_numbers = #tpu.dot_dimension_numbers<[1], [0], [0], [1], [0, 0, 1, 1], [], []>} : vector<16x64xf32>, vector<64x32xf32>, vector<16x32xf32> -> vector<16x32xf32>
    %c1_167 = arith.constant 1 : index
    %c0_168 = arith.constant 0 : index
    %c0_169 = arith.constant 0 : index
    %377 = vector.load %arg14[%c1_167, %c0_168, %c0_169] : memref<2x1x32xf32, #tpu.memory_space<vmem>>, vector<1x1x32xf32>
    %378 = vector.shape_cast %377 : vector<1x1x32xf32> to vector<1x32xf32>
    %379 = vector.broadcast %378 : vector<1x32xf32> to vector<16x32xf32>
    %380 = arith.addf %376, %379 : vector<16x32xf32>
    %381 = arith.addf %380, %353 : vector<16x32xf32>
    %c1_170 = arith.constant 1 : index
    %c0_171 = arith.constant 0 : index
    %c0_172 = arith.constant 0 : index
    %382 = vector.load %arg15[%c1_170, %c0_171, %c0_172] : memref<2x1x32xf32, #tpu.memory_space<vmem>>, vector<1x1x32xf32>
    %383 = vector.shape_cast %382 : vector<1x1x32xf32> to vector<1x32xf32>
    %c1_173 = arith.constant 1 : index
    %c0_174 = arith.constant 0 : index
    %c0_175 = arith.constant 0 : index
    %384 = vector.load %arg16[%c1_173, %c0_174, %c0_175] : memref<2x1x32xf32, #tpu.memory_space<vmem>>, vector<1x1x32xf32>
    %385 = vector.shape_cast %384 : vector<1x1x32xf32> to vector<1x32xf32>
    %cst_176 = arith.constant dense<0.000000e+00> : vector<16xf32>
    %386 = vector.multi_reduction <add>, %381, %cst_176 [1] : vector<16x32xf32> to vector<16xf32>
    %387 = vector.shape_cast %386 : vector<16xf32> to vector<16x1xf32>
    %cst_177 = arith.constant 3.200000e+01 : f32
    %388 = vector.broadcast %cst_177 : f32 to vector<16x1xf32>
    %389 = arith.divf %387, %388 : vector<16x1xf32>
    %390 = vector.broadcast %389 : vector<16x1xf32> to vector<16x32xf32>
    %391 = arith.subf %381, %390 : vector<16x32xf32>
    %392 = arith.mulf %391, %391 : vector<16x32xf32>
    %cst_178 = arith.constant dense<0.000000e+00> : vector<16xf32>
    %393 = vector.multi_reduction <add>, %392, %cst_178 [1] : vector<16x32xf32> to vector<16xf32>
    %394 = vector.shape_cast %393 : vector<16xf32> to vector<16x1xf32>
    %cst_179 = arith.constant 3.200000e+01 : f32
    %395 = vector.broadcast %cst_179 : f32 to vector<16x1xf32>
    %396 = arith.divf %394, %395 : vector<16x1xf32>
    %cst_180 = arith.constant 9.99999996E-13 : f32
    %397 = vector.broadcast %cst_180 : f32 to vector<16x1xf32>
    %398 = arith.addf %396, %397 : vector<16x1xf32>
    %399 = math.rsqrt %398 : vector<16x1xf32>
    %400 = vector.broadcast %399 : vector<16x1xf32> to vector<16x32xf32>
    %401 = arith.mulf %391, %400 : vector<16x32xf32>
    %402 = vector.broadcast %383 : vector<1x32xf32> to vector<16x32xf32>
    %403 = arith.mulf %401, %402 : vector<16x32xf32>
    %404 = vector.broadcast %385 : vector<1x32xf32> to vector<16x32xf32>
    %405 = arith.addf %403, %404 : vector<16x32xf32>
    %406 = vector.extract_strided_slice %405 {offsets = [0, 0], sizes = [8, 32], strides = [1, 1]} : vector<16x32xf32> to vector<8x32xf32>
    %407 = vector.extract_strided_slice %0 {offsets = [0, 0], sizes = [1, 8], strides = [1, 1]} : vector<2x8xf32> to vector<1x8xf32>
    %cst_181 = arith.constant dense<0.000000e+00> : vector<1x32xf32>
    %408 = tpu.matmul %407, %406, %cst_181 {dimension_numbers = #tpu.dot_dimension_numbers<[1], [0], [0], [1], [0, 0, 1, 1], [], []>} : vector<1x8xf32>, vector<8x32xf32>, vector<1x32xf32> -> vector<1x32xf32>
    %cst_182 = arith.constant dense<0.000000e+00> : vector<1xf32>
    %409 = vector.multi_reduction <add>, %407, %cst_182 [1] : vector<1x8xf32> to vector<1xf32>
    %410 = vector.shape_cast %409 : vector<1xf32> to vector<1x1xf32>
    %411 = vector.broadcast %410 : vector<1x1xf32> to vector<1x32xf32>
    %412 = arith.divf %408, %411 : vector<1x32xf32>
    %c0_183 = arith.constant 0 : index
    %c0_184 = arith.constant 0 : index
    %413 = vector.load %arg17[%c0_183, %c0_184] : memref<2x32xf32, #tpu.memory_space<vmem>>, vector<1x32xf32>
    tpu.vector_store %arg17[%c0_183, %c0_184], %412 {strides = array<i32>} : memref<2x32xf32, #tpu.memory_space<vmem>>, vector<1x32xf32>,
    %414 = vector.extract_strided_slice %405 {offsets = [8, 0], sizes = [8, 32], strides = [1, 1]} : vector<16x32xf32> to vector<8x32xf32>
    %415 = vector.extract_strided_slice %0 {offsets = [1, 0], sizes = [1, 8], strides = [1, 1]} : vector<2x8xf32> to vector<1x8xf32>
    %cst_185 = arith.constant dense<0.000000e+00> : vector<1x32xf32>
    %416 = tpu.matmul %415, %414, %cst_185 {dimension_numbers = #tpu.dot_dimension_numbers<[1], [0], [0], [1], [0, 0, 1, 1], [], []>} : vector<1x8xf32>, vector<8x32xf32>, vector<1x32xf32> -> vector<1x32xf32>
    %cst_186 = arith.constant dense<0.000000e+00> : vector<1xf32>
    %417 = vector.multi_reduction <add>, %415, %cst_186 [1] : vector<1x8xf32> to vector<1xf32>
    %418 = vector.shape_cast %417 : vector<1xf32> to vector<1x1xf32>
    %419 = vector.broadcast %418 : vector<1x1xf32> to vector<1x32xf32>
    %420 = arith.divf %416, %419 : vector<1x32xf32>
    %c1_187 = arith.constant 1 : index
    %c0_188 = arith.constant 0 : index
    %421 = vector.load %arg17[%c1_187, %c0_188] : memref<2x32xf32, #tpu.memory_space<vmem>>, vector<1x32xf32>
    tpu.vector_store %arg17[%c1_187, %c0_188], %420 {strides = array<i32>} : memref<2x32xf32, #tpu.memory_space<vmem>>, vector<1x32xf32>,
    return
  }
  func.func @transform_0(%arg0: i32) -> (i32, i32) {
    %c0_i32 = arith.constant 0 : i32
    %c0_i32_0 = arith.constant 0 : i32
    %c0_i32_1 = arith.constant 0 : i32
    return %c0_i32, %c0_i32_0 : i32, i32
  }
  func.func @transform_1(%arg0: i32) -> (i32, i32) {
    %c0_i32 = arith.constant 0 : i32
    %c0_i32_0 = arith.constant 0 : i32
    %c0_i32_1 = arith.constant 0 : i32
    return %c0_i32, %c0_i32_0 : i32, i32
  }
  func.func @transform_2(%arg0: i32) -> (i32, i32) {
    %c0_i32 = arith.constant 0 : i32
    %c0_i32_0 = arith.constant 0 : i32
    %c0_i32_1 = arith.constant 0 : i32
    return %c0_i32, %c0_i32_0 : i32, i32
  }
  func.func @transform_3(%arg0: i32) -> (i32, i32) {
    %c0_i32 = arith.constant 0 : i32
    %c0_i32_0 = arith.constant 0 : i32
    %c0_i32_1 = arith.constant 0 : i32
    return %c0_i32, %c0_i32_0 : i32, i32
  }
  func.func @transform_4(%arg0: i32) -> (i32, i32, i32) {
    %c0_i32 = arith.constant 0 : i32
    %c0_i32_0 = arith.constant 0 : i32
    %c0_i32_1 = arith.constant 0 : i32
    %c0_i32_2 = arith.constant 0 : i32
    return %c0_i32, %c0_i32_0, %c0_i32_1 : i32, i32, i32
  }
  func.func @transform_5(%arg0: i32) -> (i32, i32, i32) {
    %c0_i32 = arith.constant 0 : i32
    %c0_i32_0 = arith.constant 0 : i32
    %c0_i32_1 = arith.constant 0 : i32
    %c0_i32_2 = arith.constant 0 : i32
    return %c0_i32, %c0_i32_0, %c0_i32_1 : i32, i32, i32
  }
  func.func @transform_6(%arg0: i32) -> (i32, i32, i32) {
    %c0_i32 = arith.constant 0 : i32
    %c0_i32_0 = arith.constant 0 : i32
    %c0_i32_1 = arith.constant 0 : i32
    %c0_i32_2 = arith.constant 0 : i32
    return %c0_i32, %c0_i32_0, %c0_i32_1 : i32, i32, i32
  }
  func.func @transform_7(%arg0: i32) -> (i32, i32, i32) {
    %c0_i32 = arith.constant 0 : i32
    %c0_i32_0 = arith.constant 0 : i32
    %c0_i32_1 = arith.constant 0 : i32
    %c0_i32_2 = arith.constant 0 : i32
    return %c0_i32, %c0_i32_0, %c0_i32_1 : i32, i32, i32
  }
  func.func @transform_8(%arg0: i32) -> (i32, i32, i32) {
    %c0_i32 = arith.constant 0 : i32
    %c0_i32_0 = arith.constant 0 : i32
    %c0_i32_1 = arith.constant 0 : i32
    %c0_i32_2 = arith.constant 0 : i32
    return %c0_i32, %c0_i32_0, %c0_i32_1 : i32, i32, i32
  }
  func.func @transform_9(%arg0: i32) -> (i32, i32, i32) {
    %c0_i32 = arith.constant 0 : i32
    %c0_i32_0 = arith.constant 0 : i32
    %c0_i32_1 = arith.constant 0 : i32
    %c0_i32_2 = arith.constant 0 : i32
    return %c0_i32, %c0_i32_0, %c0_i32_1 : i32, i32, i32
  }
  func.func @transform_10(%arg0: i32) -> (i32, i32, i32) {
    %c0_i32 = arith.constant 0 : i32
    %c0_i32_0 = arith.constant 0 : i32
    %c0_i32_1 = arith.constant 0 : i32
    %c0_i32_2 = arith.constant 0 : i32
    return %c0_i32, %c0_i32_0, %c0_i32_1 : i32, i32, i32
  }
  func.func @transform_11(%arg0: i32) -> (i32, i32, i32) {
    %c0_i32 = arith.constant 0 : i32
    %c0_i32_0 = arith.constant 0 : i32
    %c0_i32_1 = arith.constant 0 : i32
    %c0_i32_2 = arith.constant 0 : i32
    return %c0_i32, %c0_i32_0, %c0_i32_1 : i32, i32, i32
  }
  func.func @transform_12(%arg0: i32) -> (i32, i32, i32) {
    %c0_i32 = arith.constant 0 : i32
    %c0_i32_0 = arith.constant 0 : i32
    %c0_i32_1 = arith.constant 0 : i32
    %c0_i32_2 = arith.constant 0 : i32
    return %c0_i32, %c0_i32_0, %c0_i32_1 : i32, i32, i32
  }
  func.func @transform_13(%arg0: i32) -> (i32, i32, i32) {
    %c0_i32 = arith.constant 0 : i32
    %c0_i32_0 = arith.constant 0 : i32
    %c0_i32_1 = arith.constant 0 : i32
    %c0_i32_2 = arith.constant 0 : i32
    return %c0_i32, %c0_i32_0, %c0_i32_1 : i32, i32, i32
  }
  func.func @transform_14(%arg0: i32) -> (i32, i32, i32) {
    %c0_i32 = arith.constant 0 : i32
    %c0_i32_0 = arith.constant 0 : i32
    %c0_i32_1 = arith.constant 0 : i32
    %c0_i32_2 = arith.constant 0 : i32
    return %c0_i32, %c0_i32_0, %c0_i32_1 : i32, i32, i32
  }
  func.func @transform_15(%arg0: i32) -> (i32, i32, i32) {
    %c0_i32 = arith.constant 0 : i32
    %c0_i32_0 = arith.constant 0 : i32
    %c0_i32_1 = arith.constant 0 : i32
    %c0_i32_2 = arith.constant 0 : i32
    return %c0_i32, %c0_i32_0, %c0_i32_1 : i32, i32, i32
  }
  func.func @transform_16(%arg0: i32) -> (i32, i32) {
    %c0_i32 = arith.constant 0 : i32
    %c0_i32_0 = arith.constant 0 : i32
    %c0_i32_1 = arith.constant 0 : i32
    return %c0_i32, %c0_i32_0 : i32, i32
  }
}

</mosaic_0001>

<llo_original>
// kernel: pearl_small_forward.1
$region0: #{pearl_small_forward.1}
  #allocation0 [shape = 'u32[]', space=smem, size = 0x4, offset = 0x4, fixed_abs, tag = 'smem constant byte address 0x4 - core index']
  #allocation1 [shape = 'u32[144,128]{1,0:T(1,128)}', space=vmem, size = 0x12000, scoped, tag = 'internal scratch']
  #allocation2 [shape = 'f32[16,32]{1,0:T(8,128)}', space=vmem, size = 0x2000, scoped, tag = 'scratch operand']
  %s0 = inlined_call_operand.vmem [shape: f32[16,32], index: 0, kind: input, shape index: {}]
  %s1 = inlined_call_operand.vmem [shape: f32[2,8], index: 1, kind: input, shape index: {}]
  %s2 = inlined_call_operand.vmem [shape: f32[1,32], index: 2, kind: input, shape index: {}]
  %s3 = inlined_call_operand.vmem [shape: f32[1,32], index: 3, kind: input, shape index: {}]
  %s4 = inlined_call_operand.vmem [shape: f32[2,32,96], index: 4, kind: input, shape index: {}]
  %s5 = inlined_call_operand.vmem [shape: f32[2,1,96], index: 5, kind: input, shape index: {}]
  %s6 = inlined_call_operand.vmem [shape: f32[2,32,32], index: 6, kind: input, shape index: {}]
  %s7 = inlined_call_operand.vmem [shape: f32[2,1,32], index: 7, kind: input, shape index: {}]
  %s8 = inlined_call_operand.vmem [shape: f32[2,1,32], index: 8, kind: input, shape index: {}]
  %s9 = inlined_call_operand.vmem [shape: f32[2,1,32], index: 9, kind: input, shape index: {}]
  %s10 = inlined_call_operand.vmem [shape: f32[2,32,64], index: 10, kind: input, shape index: {}]
  %s11 = inlined_call_operand.vmem [shape: f32[2,1,64], index: 11, kind: input, shape index: {}]
  %s12 = inlined_call_operand.vmem [shape: f32[2,64,32], index: 12, kind: input, shape index: {}]
  %s13 = inlined_call_operand.vmem [shape: f32[2,1,32], index: 13, kind: input, shape index: {}]
  %s14 = inlined_call_operand.vmem [shape: f32[2,1,32], index: 14, kind: input, shape index: {}]
  %s15 = inlined_call_operand.vmem [shape: f32[2,1,32], index: 15, kind: input, shape index: {}]
  %s16 = inlined_call_operand.hbm [shape: f32[2,32], index: 16, kind: output, shape index: {}]
  %s17 = sld [smem:[#allocation0]]
  $region74: #{pearl_small_forward.1} parent=0
    _
  %s19 = ssub.s32 1, %s17
  %s20 = scalar_select 0, %s19, %s17
  $region1: #{pearl_small_forward.1} parent=0
    #allocation3 [shape = 'u8[1024]{0}', space=vmem, size = 0x400, scoped, tag = 'output window, operand 0, single buffered']
    #allocation4 [shape = 's32[1]{0}', space=sflag, size = 0x4, scoped, tag = 'scoped memory for pearl_small_forward.1']
    %21 = vsyncpa [#allocation4], 0
    // Predicated region
    $region2: #{pearl_small_forward.1} parent=1 // pred_check
      _
    $region3: #{pearl_small_forward.1} parent=1 // pred_check_branch
      %23 = sbr.rel (0) target = $region5
    $region4: #{pearl_small_forward.1} parent=1 // pred_region
      _
    $region5: #{pearl_small_forward.1} parent=1 // pred_fallthru
      _
    // Predicated region
    $region6: #{pearl_small_forward.1} parent=1 // pred_check
      _
    $region7: #{pearl_small_forward.1} parent=1 // pred_check_branch
      %25 = sbr.rel (0) target = $region9
    $region8: #{pearl_small_forward.1} parent=1 // pred_region
      _
    $region9: #{pearl_small_forward.1} parent=1 // pred_fallthru
      _
    // Predicated region
    $region10: #{pearl_small_forward.1} parent=1 // pred_check
      _
    $region11: #{pearl_small_forward.1} parent=1 // pred_check_branch
      %27 = sbr.rel (0) target = $region13
    $region12: #{pearl_small_forward.1} parent=1 // pred_region
      _
    $region13: #{pearl_small_forward.1} parent=1 // pred_fallthru
      _
    // Predicated region
    $region14: #{pearl_small_forward.1} parent=1 // pred_check
      _
    $region15: #{pearl_small_forward.1} parent=1 // pred_check_branch
      %29 = sbr.rel (0) target = $region17
    $region16: #{pearl_small_forward.1} parent=1 // pred_region
      _
    $region17: #{pearl_small_forward.1} parent=1 // pred_fallthru
      _
    // Predicated region
    $region18: #{pearl_small_forward.1} parent=1 // pred_check
      _
    $region19: #{pearl_small_forward.1} parent=1 // pred_check_branch
      %31 = sbr.rel (0) target = $region21
    $region20: #{pearl_small_forward.1} parent=1 // pred_region
      _
    $region21: #{pearl_small_forward.1} parent=1 // pred_fallthru
      _
    // Predicated region
    $region22: #{pearl_small_forward.1} parent=1 // pred_check
      _
    $region23: #{pearl_small_forward.1} parent=1 // pred_check_branch
      %33 = sbr.rel (0) target = $region25
    $region24: #{pearl_small_forward.1} parent=1 // pred_region
      _
    $region25: #{pearl_small_forward.1} parent=1 // pred_fallthru
      _
    // Predicated region
    $region26: #{pearl_small_forward.1} parent=1 // pred_check
      _
    $region27: #{pearl_small_forward.1} parent=1 // pred_check_branch
      %35 = sbr.rel (0) target = $region29
    $region28: #{pearl_small_forward.1} parent=1 // pred_region
      _
    $region29: #{pearl_small_forward.1} parent=1 // pred_fallthru
      _
    // Predicated region
    $region30: #{pearl_small_forward.1} parent=1 // pred_check
      _
    $region31: #{pearl_small_forward.1} parent=1 // pred_check_branch
      %37 = sbr.rel (0) target = $region33
    $region32: #{pearl_small_forward.1} parent=1 // pred_region
      _
    $region33: #{pearl_small_forward.1} parent=1 // pred_fallthru
      _
    // Predicated region
    $region34: #{pearl_small_forward.1} parent=1 // pred_check
      _
    $region35: #{pearl_small_forward.1} parent=1 // pred_check_branch
      %39 = sbr.rel (0) target = $region37
    $region36: #{pearl_small_forward.1} parent=1 // pred_region
      _
    $region37: #{pearl_small_forward.1} parent=1 // pred_fallthru
      _
    // Predicated region
    $region38: #{pearl_small_forward.1} parent=1 // pred_check
      _
    $region39: #{pearl_small_forward.1} parent=1 // pred_check_branch
      %41 = sbr.rel (0) target = $region41
    $region40: #{pearl_small_forward.1} parent=1 // pred_region
      _
    $region41: #{pearl_small_forward.1} parent=1 // pred_fallthru
      _
    // Predicated region
    $region42: #{pearl_small_forward.1} parent=1 // pred_check
      _
    $region43: #{pearl_small_forward.1} parent=1 // pred_check_branch
      %43 = sbr.rel (0) target = $region45
    $region44: #{pearl_small_forward.1} parent=1 // pred_region
      _
    $region45: #{pearl_small_forward.1} parent=1 // pred_fallthru
      _
    // Predicated region
    $region46: #{pearl_small_forward.1} parent=1 // pred_check
      _
    $region47: #{pearl_small_forward.1} parent=1 // pred_check_branch
      %45 = sbr.rel (0) target = $region49
    $region48: #{pearl_small_forward.1} parent=1 // pred_region
      _
    $region49: #{pearl_small_forward.1} parent=1 // pred_fallthru
      _
    // Predicated region
    $region50: #{pearl_small_forward.1} parent=1 // pred_check
      _
    $region51: #{pearl_small_forward.1} parent=1 // pred_check_branch
      %47 = sbr.rel (0) target = $region53
    $region52: #{pearl_small_forward.1} parent=1 // pred_region
      _
    $region53: #{pearl_small_forward.1} parent=1 // pred_fallthru
      _
    // Predicated region
    $region54: #{pearl_small_forward.1} parent=1 // pred_check
      _
    $region55: #{pearl_small_forward.1} parent=1 // pred_check_branch
      %49 = sbr.rel (0) target = $region57
    $region56: #{pearl_small_forward.1} parent=1 // pred_region
      _
    $region57: #{pearl_small_forward.1} parent=1 // pred_fallthru
      _
    // Predicated region
    $region58: #{pearl_small_forward.1} parent=1 // pred_check
      _
    $region59: #{pearl_small_forward.1} parent=1 // pred_check_branch
      %51 = sbr.rel (0) target = $region61
    $region60: #{pearl_small_forward.1} parent=1 // pred_region
      _
    $region61: #{pearl_small_forward.1} parent=1 // pred_fallthru
      _
    // Predicated region
    $region62: #{pearl_small_forward.1} parent=1 // pred_check
      _
    $region63: #{pearl_small_forward.1} parent=1 // pred_check_branch
      %53 = sbr.rel (0) target = $region65
    $region64: #{pearl_small_forward.1} parent=1 // pred_region
      _
    $region65: #{pearl_small_forward.1} parent=1 // pred_fallthru
      _
    %v54 = vld [vmem:[%s1] sm:$0x3]
    %v55 = vsub.f32 1.0, %v54
    %v56 = vmul.f32 %v55, -1e+09
    %v57 = vld [vmem:[%s0] sm:$0xff]
    %v58 = vld [vmem:[%s0 + $0x8] sm:$0xff]
    %v59 = vld [vmem:[%s2] sm:$0x1]
    %v60 = vld [vmem:[%s3] sm:$0x1]
    %vm61 = vcmask 261120
    %v62 = vsel %vm61, %v57, 0.0
    %63 = vadd.xlane.f32.xlu0 %v62
    %v64 = vpop.xlane.xlu0 %63
    %v65 = vsel %vm61, %v58, 0.0
    %66 = vadd.xlane.f32.xlu0 %v65
    %v67 = vpop.xlane.xlu0 %66
    %v68 = vrcp.pop 32.0
    %v69 = vmul.f32 %v64, %v68
    %v70 = vmul.f32 %v67, %v68
    %v71 = vsub.f32 %v57, %v69
    %v72 = vsub.f32 %v58, %v70
    %v73 = vmul.f32 %v71, %v71
    %v74 = vmul.f32 %v72, %v72
    %v75 = vsel %vm61, %v73, 0.0
    %76 = vadd.xlane.f32.xlu0 %v75
    %v77 = vpop.xlane.xlu0 %76
    %v78 = vsel %vm61, %v74, 0.0
    %79 = vadd.xlane.f32.xlu0 %v78
    %v80 = vpop.xlane.xlu0 %79
    %v81 = vmul.f32 %v77, %v68
    %v82 = vmul.f32 %v80, %v68
    %v83 = vadd.f32 %v81, 1e-12
    %v84 = vadd.f32 %v82, 1e-12
    %v85 = vrsqrt.pop %v83
    %v86 = vrsqrt.pop %v84
    %v87 = vmul.f32 %v71, %v85
    %v88 = vmul.f32 %v72, %v86
    %v90 = vlaneseq
    %v91 = vshrl.u32 %v90, 7
    %v92 = vsub.s32 0, %v91
    %v93 = vrot.slane %v59, %v92
    %v95 = vmul.f32 %v87, %v93
    %v96 = vmul.f32 %v88, %v93
    %v98 = vlaneseq
    %v99 = vshrl.u32 %v98, 7
    %v100 = vsub.s32 0, %v99
    %v101 = vrot.slane %v60, %v100
    %v103 = vadd.f32 %v95, %v101
    %v104 = vadd.f32 %v96, %v101
    %v105 = vld [vmem:[%s4] sm:$0xff]
    %v106 = vld [vmem:[%s4 + $0x8] sm:$0xff]
    %v107 = vld [vmem:[%s4 + $0x10] sm:$0xff]
    %v108 = vld [vmem:[%s4 + $0x18] sm:$0xff]
    %v109 = vld [vmem:[%s5] sm:$0x1]
    %v111 = vlaneseq
    %v112 = vshrl.u32 %v111, 7
    %v113 = vsub.s32 0, %v112
    %v114 = vrot.slane %v109, %v113
    %v117 = vsel %vm61, %v103, 0
    %v120 = vsel %vm61, %v104, 0
    %122 = vmatprep.subr.mxu0 0.0
    %123 = vmatpush1.msra.mxu0 %v105
    %124 = vmatprep.subr.mxu0 0.0
    %125 = vmatpush1.msra.mxu0 %v106
    %126 = vmatprep.subr.mxu0 0.0
    %127 = vmatpush1.msra.mxu0 %v107
    %128 = vmatprep.subr.mxu0 0.0
    %129 = vmatpush1.msra.mxu0 %v108
    %130 = vmatprep.subr.mxu0 0.0
    %131 = vmatpush1.msra.mxu0 0.0
    %132 = vmatprep.subr.mxu0 0.0
    %133 = vmatpush1.msra.mxu0 0.0
    %134 = vmatprep.subr.mxu0 0.0
    %135 = vmatpush1.msra.mxu0 0.0
    %136 = vmatprep.subr.mxu0 0.0
    %137 = vmatpush1.msra.mxu0 0.0
    %138 = vmatprep.subr.mxu0 0.0
    %139 = vmatpush1.msra.mxu0 0.0
    %140 = vmatprep.subr.mxu0 0.0
    %141 = vmatpush1.msra.mxu0 0.0
    %142 = vmatprep.subr.mxu0 0.0
    %143 = vmatpush1.msra.mxu0 0.0
    %144 = vmatprep.subr.mxu0 0.0
    %145 = vmatpush1.msra.mxu0 0.0
    %146 = vmatprep.subr.mxu0 0.0
    %147 = vmatpush1.msra.mxu0 0.0
    %148 = vmatprep.subr.mxu0 0.0
    %149 = vmatpush1.msra.mxu0 0.0
    %150 = vmatprep.subr.mxu0 0.0
    %151 = vmatpush1.msra.mxu0 0.0
    %152 = vmatprep.subr.mxu0 0.0
    %153 = vmatpush1.msra.mxu0 0.0
    %154 = vmatprep.subr.mxu0 0.0
    %155 = vmatpush1.msra.mxu0 0.0
    %156 = vmatprep.subr.mxu0 0.0
    %157 = vmatpush1.msra.mxu0 0.0
    %158 = vmatprep.subr.mxu0 0.0
    %159 = vmatpush1.msra.mxu0 0.0
    %160 = vmatprep.subr.mxu0 0.0
    %161 = vmatpush1.msra.mxu0 0.0
    %162 = vmatprep.subr.mxu0 0.0
    %163 = vmatpush1.msra.mxu0 0.0
    %164 = vmatprep.subr.mxu0 0.0
    %165 = vmatpush1.msra.mxu0 0.0
    %166 = vmatprep.subr.mxu0 0.0
    %167 = vmatpush1.msra.mxu0 0.0
    %168 = vmatprep.subr.mxu0 0.0
    %169 = vmatpush1.msra.mxu0 0.0
    %170 = vmatprep.subr.mxu0 0.0
    %171 = vmatpush1.msra.mxu0 0.0
    %172 = vmatprep.subr.mxu0 0.0
    %173 = vmatpush1.msra.mxu0 0.0
    %174 = vmatprep.subr.mxu0 0.0
    %175 = vmatpush1.msra.mxu0 0.0
    %176 = vmatprep.subr.mxu0 0.0
    %177 = vmatpush1.msra.mxu0 0.0
    %178 = vmatprep.subr.mxu0 0.0
    %179 = vmatpush1.msra.mxu0 0.0
    %180 = vmatprep.subr.mxu0 0.0
    %181 = vmatpush1.msra.mxu0 0.0
    %182 = vmatprep.subr.mxu0 0.0
    %183 = vmatpush1.msra.mxu0 0.0
    %184 = vmatprep.subr.mxu0 0.0
    %185 = vmatpush1.msra.mxu0 0.0
    %186 = vmatprep.mubr.f32.mxu0 0.0
    %187 = vmatmul.mubr.f32.gmra.mrb[0].mxu0 %v117
    %v188 = vpop.f32.mrb[0].mxu0
    %v189 = vadd.f32 %v114, %v188
    %v190 = vpop.f32.mrb[0].mxu0
    %191 = vmatprep.mubr.f32.mxu0 0.0
    %192 = vmatmul.mubr.f32.gmra.mrb[0].mxu0 %v120
    %v193 = vpop.f32.mrb[0].mxu0
    %v194 = vadd.f32 %v114, %v193
    %v195 = vpop.f32.mrb[0].mxu0
    %196 = vdwg.mxu0
    %v197 = vld [vmem:[%s6] sm:$0xff]
    %v198 = vld [vmem:[%s6 + $0x8] sm:$0xff]
    %v199 = vld [vmem:[%s6 + $0x10] sm:$0xff]
    %v200 = vld [vmem:[%s6 + $0x18] sm:$0xff]
    %202 = vrot.lane.b32.xlu0 %v189, 96
    %v203 = vpop.permute.xlu0 %202
    %vm204 = vcmask 130048
    %v205 = vsel %vm204, %v189, 0
    %v207 = vsel %vm204, %v203, 0
    %209 = vmatprep.subr.mxu0 0.0
    %210 = vmatpush1.xpose.msra.mxu0 %v207
    %211 = vmatprep.subr.mxu0 0.0
    %212 = vmatpush1.xpose.msra.mxu0 0.0
    %213 = vmatprep.subr.mxu0 0.0
    %214 = vmatpush1.xpose.msra.mxu0 0.0
    %215 = vmatprep.subr.mxu0 0.0
    %216 = vmatpush1.xpose.msra.mxu0 0.0
    %217 = vmatprep.subr.mxu0 0.0
    %218 = vmatpush1.xpose.msra.mxu0 0.0
    %219 = vmatprep.subr.mxu0 0.0
    %220 = vmatpush1.xpose.msra.mxu0 0.0
    %221 = vmatprep.subr.mxu0 0.0
    %222 = vmatpush1.xpose.msra.mxu0 0.0
    %223 = vmatprep.subr.mxu0 0.0
    %224 = vmatpush1.xpose.msra.mxu0 0.0
    %225 = vmatprep.subr.mxu0 0.0
    %226 = vmatpush1.xpose.msra.mxu0 0.0
    %227 = vmatprep.subr.mxu0 0.0
    %228 = vmatpush1.xpose.msra.mxu0 0.0
    %229 = vmatprep.subr.mxu0 0.0
    %230 = vmatpush1.xpose.msra.mxu0 0.0
    %231 = vmatprep.subr.mxu0 0.0
    %232 = vmatpush1.xpose.msra.mxu0 0.0
    %233 = vmatprep.subr.mxu0 0.0
    %234 = vmatpush1.xpose.msra.mxu0 0.0
    %235 = vmatprep.subr.mxu0 0.0
    %236 = vmatpush1.xpose.msra.mxu0 0.0
    %237 = vmatprep.subr.mxu0 0.0
    %238 = vmatpush1.xpose.msra.mxu0 0.0
    %239 = vmatprep.subr.mxu0 0.0
    %240 = vmatpush1.xpose.msra.mxu0 0.0
    %241 = vmatprep.subr.mxu0 0.0
    %242 = vmatpush1.xpose.msra.mxu0 0.0
    %243 = vmatprep.subr.mxu0 0.0
    %244 = vmatpush1.xpose.msra.mxu0 0.0
    %245 = vmatprep.subr.mxu0 0.0
    %246 = vmatpush1.xpose.msra.mxu0 0.0
    %247 = vmatprep.subr.mxu0 0.0
    %248 = vmatpush1.xpose.msra.mxu0 0.0
    %249 = vmatprep.subr.mxu0 0.0
    %250 = vmatpush1.xpose.msra.mxu0 0.0
    %251 = vmatprep.subr.mxu0 0.0
    %252 = vmatpush1.xpose.msra.mxu0 0.0
    %253 = vmatprep.subr.mxu0 0.0
    %254 = vmatpush1.xpose.msra.mxu0 0.0
    %255 = vmatprep.subr.mxu0 0.0
    %256 = vmatpush1.xpose.msra.mxu0 0.0
    %257 = vmatprep.subr.mxu0 0.0
    %258 = vmatpush1.xpose.msra.mxu0 0.0
    %259 = vmatprep.subr.mxu0 0.0
    %260 = vmatpush1.xpose.msra.mxu0 0.0
    %261 = vmatprep.subr.mxu0 0.0
    %262 = vmatpush1.xpose.msra.mxu0 0.0
    %263 = vmatprep.subr.mxu0 0.0
    %264 = vmatpush1.xpose.msra.mxu0 0.0
    %265 = vmatprep.subr.mxu0 0.0
    %266 = vmatpush1.xpose.msra.mxu0 0.0
    %267 = vmatprep.subr.mxu0 0.0
    %268 = vmatpush1.xpose.msra.mxu0 0.0
    %269 = vmatprep.subr.mxu0 0.0
    %270 = vmatpush1.xpose.msra.mxu0 0.0
    %271 = vmatprep.subr.mxu0 0.0
    %272 = vmatpush1.xpose.msra.mxu0 0.0
    %273 = vmatprep.mubr.f32.mxu0 0.0
    %274 = vmatmul.mubr.f32.gmra.mrb[0].mxu0 %v205
    %v275 = vpop.f32.mrb[0].mxu0
    %v276 = vadd.f32 0.0, %v275
    %v277 = vpop.f32.mrb[0].mxu0
    %278 = vdwg.mxu0
    %v279 = vmul.f32 %v276, 0.25
    %v280 = vlaneseq
    %v281 = vshrl.u32 %v280, 7
    %v282 = vsub.s32 0, %v281
    %v283 = vrot.slane %v56, %v282
    %v284 = vadd.f32 %v279, %v283
    %vm285 = vcmask 64512
    %v286 = vsel %vm285, %v284, -inf
    %287 = vmax.xlane.f32.xlu0 %v286
    %v288 = vpop.xlane.xlu0 %287
    %v289 = vsub.f32 %v284, %v288
    %v290 = vmul.f32 %v289, 1.442695
    %v291 = vpow.pop %v290
    %v292 = vsel %vm285, %v291, 0.0
    %293 = vadd.xlane.f32.xlu0 %v292
    %v294 = vpop.xlane.xlu0 %293
    %v295 = vrcp.pop %v294
    %v296 = vmul.f32 %v291, %v295
    %297 = vrot.lane.b32.xlu0 %v189, 64
    %v298 = vpop.permute.xlu0 %297
    %v301 = vsel %vm285, %v296, 0
    %303 = vmatprep.subr.mxu0 0.0
    %304 = vmatpush1.msra.mxu0 %v298
    %305 = vmatprep.subr.mxu0 0.0
    %306 = vmatpush1.msra.mxu0 0.0
    %307 = vmatprep.subr.mxu0 0.0
    %308 = vmatpush1.msra.mxu0 0.0
    %309 = vmatprep.subr.mxu0 0.0
    %310 = vmatpush1.msra.mxu0 0.0
    %311 = vmatprep.subr.mxu0 0.0
    %312 = vmatpush1.msra.mxu0 0.0
    %313 = vmatprep.subr.mxu0 0.0
    %314 = vmatpush1.msra.mxu0 0.0
    %315 = vmatprep.subr.mxu0 0.0
    %316 = vmatpush1.msra.mxu0 0.0
    %317 = vmatprep.subr.mxu0 0.0
    %318 = vmatpush1.msra.mxu0 0.0
    %319 = vmatprep.subr.mxu0 0.0
    %320 = vmatpush1.msra.mxu0 0.0
    %321 = vmatprep.subr.mxu0 0.0
    %322 = vmatpush1.msra.mxu0 0.0
    %323 = vmatprep.subr.mxu0 0.0
    %324 = vmatpush1.msra.mxu0 0.0
    %325 = vmatprep.subr.mxu0 0.0
    %326 = vmatpush1.msra.mxu0 0.0
    %327 = vmatprep.subr.mxu0 0.0
    %328 = vmatpush1.msra.mxu0 0.0
    %329 = vmatprep.subr.mxu0 0.0
    %330 = vmatpush1.msra.mxu0 0.0
    %331 = vmatprep.subr.mxu0 0.0
    %332 = vmatpush1.msra.mxu0 0.0
    %333 = vmatprep.subr.mxu0 0.0
    %334 = vmatpush1.msra.mxu0 0.0
    %335 = vmatprep.subr.mxu0 0.0
    %336 = vmatpush1.msra.mxu0 0.0
    %337 = vmatprep.subr.mxu0 0.0
    %338 = vmatpush1.msra.mxu0 0.0
    %339 = vmatprep.subr.mxu0 0.0
    %340 = vmatpush1.msra.mxu0 0.0
    %341 = vmatprep.subr.mxu0 0.0
    %342 = vmatpush1.msra.mxu0 0.0
    %343 = vmatprep.subr.mxu0 0.0
    %344 = vmatpush1.msra.mxu0 0.0
    %345 = vmatprep.subr.mxu0 0.0
    %346 = vmatpush1.msra.mxu0 0.0
    %347 = vmatprep.subr.mxu0 0.0
    %348 = vmatpush1.msra.mxu0 0.0
    %349 = vmatprep.subr.mxu0 0.0
    %350 = vmatpush1.msra.mxu0 0.0
    %351 = vmatprep.subr.mxu0 0.0
    %352 = vmatpush1.msra.mxu0 0.0
    %353 = vmatprep.subr.mxu0 0.0
    %354 = vmatpush1.msra.mxu0 0.0
    %355 = vmatprep.subr.mxu0 0.0
    %356 = vmatpush1.msra.mxu0 0.0
    %357 = vmatprep.subr.mxu0 0.0
    %358 = vmatpush1.msra.mxu0 0.0
    %359 = vmatprep.subr.mxu0 0.0
    %360 = vmatpush1.msra.mxu0 0.0
    %361 = vmatprep.subr.mxu0 0.0
    %362 = vmatpush1.msra.mxu0 0.0
    %363 = vmatprep.subr.mxu0 0.0
    %364 = vmatpush1.msra.mxu0 0.0
    %365 = vmatprep.subr.mxu0 0.0
    %366 = vmatpush1.msra.mxu0 0.0
    %367 = vmatprep.mubr.f32.mxu0 0.0
    %368 = vmatmul.mubr.f32.gmra.mrb[0].mxu0 %v301
    %v369 = vpop.f32.mrb[0].mxu0
    %v370 = vadd.f32 0.0, %v369
    %v371 = vpop.f32.mrb[0].mxu0
    %372 = vdwg.mxu0
    %373 = vrot.lane.b32.xlu0 %v189, 112
    %v374 = vpop.permute.xlu0 %373
    %375 = vrot.lane.b32.xlu0 %v189, 80
    %v376 = vpop.permute.xlu0 %375
    %v377 = vsel %vm204, %v374, 0
    %v379 = vsel %vm204, %v376, 0
    %381 = vmatprep.subr.mxu0 0.0
    %382 = vmatpush1.xpose.msra.mxu0 %v379
    %383 = vmatprep.subr.mxu0 0.0
    %384 = vmatpush1.xpose.msra.mxu0 0.0
    %385 = vmatprep.subr.mxu0 0.0
    %386 = vmatpush1.xpose.msra.mxu0 0.0
    %387 = vmatprep.subr.mxu0 0.0
    %388 = vmatpush1.xpose.msra.mxu0 0.0
    %389 = vmatprep.subr.mxu0 0.0
    %390 = vmatpush1.xpose.msra.mxu0 0.0
    %391 = vmatprep.subr.mxu0 0.0
    %392 = vmatpush1.xpose.msra.mxu0 0.0
    %393 = vmatprep.subr.mxu0 0.0
    %394 = vmatpush1.xpose.msra.mxu0 0.0
    %395 = vmatprep.subr.mxu0 0.0
    %396 = vmatpush1.xpose.msra.mxu0 0.0
    %397 = vmatprep.subr.mxu0 0.0
    %398 = vmatpush1.xpose.msra.mxu0 0.0
    %399 = vmatprep.subr.mxu0 0.0
    %400 = vmatpush1.xpose.msra.mxu0 0.0
    %401 = vmatprep.subr.mxu0 0.0
    %402 = vmatpush1.xpose.msra.mxu0 0.0
    %403 = vmatprep.subr.mxu0 0.0
    %404 = vmatpush1.xpose.msra.mxu0 0.0
    %405 = vmatprep.subr.mxu0 0.0
    %406 = vmatpush1.xpose.msra.mxu0 0.0
    %407 = vmatprep.subr.mxu0 0.0
    %408 = vmatpush1.xpose.msra.mxu0 0.0
    %409 = vmatprep.subr.mxu0 0.0
    %410 = vmatpush1.xpose.msra.mxu0 0.0
    %411 = vmatprep.subr.mxu0 0.0
    %412 = vmatpush1.xpose.msra.mxu0 0.0
    %413 = vmatprep.subr.mxu0 0.0
    %414 = vmatpush1.xpose.msra.mxu0 0.0
    %415 = vmatprep.subr.mxu0 0.0
    %416 = vmatpush1.xpose.msra.mxu0 0.0
    %417 = vmatprep.subr.mxu0 0.0
    %418 = vmatpush1.xpose.msra.mxu0 0.0
    %419 = vmatprep.subr.mxu0 0.0
    %420 = vmatpush1.xpose.msra.mxu0 0.0
    %421 = vmatprep.subr.mxu0 0.0
    %422 = vmatpush1.xpose.msra.mxu0 0.0
    %423 = vmatprep.subr.mxu0 0.0
    %424 = vmatpush1.xpose.msra.mxu0 0.0
    %425 = vmatprep.subr.mxu0 0.0
    %426 = vmatpush1.xpose.msra.mxu0 0.0
    %427 = vmatprep.subr.mxu0 0.0
    %428 = vmatpush1.xpose.msra.mxu0 0.0
    %429 = vmatprep.subr.mxu0 0.0
    %430 = vmatpush1.xpose.msra.mxu0 0.0
    %431 = vmatprep.subr.mxu0 0.0
    %432 = vmatpush1.xpose.msra.mxu0 0.0
    %433 = vmatprep.subr.mxu0 0.0
    %434 = vmatpush1.xpose.msra.mxu0 0.0
    %435 = vmatprep.subr.mxu0 0.0
    %436 = vmatpush1.xpose.msra.mxu0 0.0
    %437 = vmatprep.subr.mxu0 0.0
    %438 = vmatpush1.xpose.msra.mxu0 0.0
    %439 = vmatprep.subr.mxu0 0.0
    %440 = vmatpush1.xpose.msra.mxu0 0.0
    %441 = vmatprep.subr.mxu0 0.0
    %442 = vmatpush1.xpose.msra.mxu0 0.0
    %443 = vmatprep.subr.mxu0 0.0
    %444 = vmatpush1.xpose.msra.mxu0 0.0
    %445 = vmatprep.mubr.f32.mxu0 0.0
    %446 = vmatmul.mubr.f32.gmra.mrb[0].mxu0 %v377
    %v447 = vpop.f32.mrb[0].mxu0
    %v448 = vadd.f32 0.0, %v447
    %v449 = vpop.f32.mrb[0].mxu0
    %450 = vdwg.mxu0
    %v451 = vmul.f32 %v448, 0.25
    %v452 = vadd.f32 %v451, %v283
    %v453 = vsel %vm285, %v452, -inf
    %454 = vmax.xlane.f32.xlu0 %v453
    %v455 = vpop.xlane.xlu0 %454
    %v456 = vsub.f32 %v452, %v455
    %v457 = vmul.f32 %v456, 1.442695
    %v458 = vpow.pop %v457
    %v459 = vsel %vm285, %v458, 0.0
    %460 = vadd.xlane.f32.xlu0 %v459
    %v461 = vpop.xlane.xlu0 %460
    %v462 = vrcp.pop %v461
    %v463 = vmul.f32 %v458, %v462
    %464 = vrot.lane.b32.xlu0 %v189, 48
    %v465 = vpop.permute.xlu0 %464
    %v468 = vsel %vm285, %v463, 0
    %470 = vmatprep.subr.mxu0 0.0
    %471 = vmatpush1.msra.mxu0 %v465
    %472 = vmatprep.subr.mxu0 0.0
    %473 = vmatpush1.msra.mxu0 0.0
    %474 = vmatprep.subr.mxu0 0.0
    %475 = vmatpush1.msra.mxu0 0.0
    %476 = vmatprep.subr.mxu0 0.0
    %477 = vmatpush1.msra.mxu0 0.0
    %478 = vmatprep.subr.mxu0 0.0
    %479 = vmatpush1.msra.mxu0 0.0
    %480 = vmatprep.subr.mxu0 0.0
    %481 = vmatpush1.msra.mxu0 0.0
    %482 = vmatprep.subr.mxu0 0.0
    %483 = vmatpush1.msra.mxu0 0.0
    %484 = vmatprep.subr.mxu0 0.0
    %485 = vmatpush1.msra.mxu0 0.0
    %486 = vmatprep.subr.mxu0 0.0
    %487 = vmatpush1.msra.mxu0 0.0
    %488 = vmatprep.subr.mxu0 0.0
    %489 = vmatpush1.msra.mxu0 0.0
    %490 = vmatprep.subr.mxu0 0.0
    %491 = vmatpush1.msra.mxu0 0.0
    %492 = vmatprep.subr.mxu0 0.0
    %493 = vmatpush1.msra.mxu0 0.0
    %494 = vmatprep.subr.mxu0 0.0
    %495 = vmatpush1.msra.mxu0 0.0
    %496 = vmatprep.subr.mxu0 0.0
    %497 = vmatpush1.msra.mxu0 0.0
    %498 = vmatprep.subr.mxu0 0.0
    %499 = vmatpush1.msra.mxu0 0.0
    %500 = vmatprep.subr.mxu0 0.0
    %501 = vmatpush1.msra.mxu0 0.0
    %502 = vmatprep.subr.mxu0 0.0
    %503 = vmatpush1.msra.mxu0 0.0
    %504 = vmatprep.subr.mxu0 0.0
    %505 = vmatpush1.msra.mxu0 0.0
    %506 = vmatprep.subr.mxu0 0.0
    %507 = vmatpush1.msra.mxu0 0.0
    %508 = vmatprep.subr.mxu0 0.0
    %509 = vmatpush1.msra.mxu0 0.0
    %510 = vmatprep.subr.mxu0 0.0
    %511 = vmatpush1.msra.mxu0 0.0
    %512 = vmatprep.subr.mxu0 0.0
    %513 = vmatpush1.msra.mxu0 0.0
    %514 = vmatprep.subr.mxu0 0.0
    %515 = vmatpush1.msra.mxu0 0.0
    %516 = vmatprep.subr.mxu0 0.0
    %517 = vmatpush1.msra.mxu0 0.0
    %518 = vmatprep.subr.mxu0 0.0
    %519 = vmatpush1.msra.mxu0 0.0
    %520 = vmatprep.subr.mxu0 0.0
    %521 = vmatpush1.msra.mxu0 0.0
    %522 = vmatprep.subr.mxu0 0.0
    %523 = vmatpush1.msra.mxu0 0.0
    %524 = vmatprep.subr.mxu0 0.0
    %525 = vmatpush1.msra.mxu0 0.0
    %526 = vmatprep.subr.mxu0 0.0
    %527 = vmatpush1.msra.mxu0 0.0
    %528 = vmatprep.subr.mxu0 0.0
    %529 = vmatpush1.msra.mxu0 0.0
    %530 = vmatprep.subr.mxu0 0.0
    %531 = vmatpush1.msra.mxu0 0.0
    %532 = vmatprep.subr.mxu0 0.0
    %533 = vmatpush1.msra.mxu0 0.0
    %534 = vmatprep.mubr.f32.mxu0 0.0
    %535 = vmatmul.mubr.f32.gmra.mrb[0].mxu0 %v468
    %v536 = vpop.f32.mrb[0].mxu0
    %v537 = vadd.f32 0.0, %v536
    %v538 = vpop.f32.mrb[0].mxu0
    %539 = vdwg.mxu0
    %v541 = vsel %vm204, %v537, 0
    %543 = vmatprep.subr.mxu0 0.0
    %544 = vmatpush1.msra.mxu0 %v199
    %545 = vmatprep.subr.mxu0 0.0
    %546 = vmatpush1.msra.mxu0 %v200
    %547 = vmatprep.subr.mxu0 0.0
    %548 = vmatpush1.msra.mxu0 0.0
    %549 = vmatprep.subr.mxu0 0.0
    %550 = vmatpush1.msra.mxu0 0.0
    %551 = vmatprep.subr.mxu0 0.0
    %552 = vmatpush1.msra.mxu0 0.0
    %553 = vmatprep.subr.mxu0 0.0
    %554 = vmatpush1.msra.mxu0 0.0
    %555 = vmatprep.subr.mxu0 0.0
    %556 = vmatpush1.msra.mxu0 0.0
    %557 = vmatprep.subr.mxu0 0.0
    %558 = vmatpush1.msra.mxu0 0.0
    %559 = vmatprep.subr.mxu0 0.0
    %560 = vmatpush1.msra.mxu0 0.0
    %561 = vmatprep.subr.mxu0 0.0
    %562 = vmatpush1.msra.mxu0 0.0
    %563 = vmatprep.subr.mxu0 0.0
    %564 = vmatpush1.msra.mxu0 0.0
    %565 = vmatprep.subr.mxu0 0.0
    %566 = vmatpush1.msra.mxu0 0.0
    %567 = vmatprep.subr.mxu0 0.0
    %568 = vmatpush1.msra.mxu0 0.0
    %569 = vmatprep.subr.mxu0 0.0
    %570 = vmatpush1.msra.mxu0 0.0
    %571 = vmatprep.subr.mxu0 0.0
    %572 = vmatpush1.msra.mxu0 0.0
    %573 = vmatprep.subr.mxu0 0.0
    %574 = vmatpush1.msra.mxu0 0.0
    %575 = vmatprep.subr.mxu0 0.0
    %576 = vmatpush1.msra.mxu0 0.0
    %577 = vmatprep.subr.mxu0 0.0
    %578 = vmatpush1.msra.mxu0 0.0
    %579 = vmatprep.subr.mxu0 0.0
    %580 = vmatpush1.msra.mxu0 0.0
    %581 = vmatprep.subr.mxu0 0.0
    %582 = vmatpush1.msra.mxu0 0.0
    %583 = vmatprep.subr.mxu0 0.0
    %584 = vmatpush1.msra.mxu0 0.0
    %585 = vmatprep.subr.mxu0 0.0
    %586 = vmatpush1.msra.mxu0 0.0
    %587 = vmatprep.subr.mxu0 0.0
    %588 = vmatpush1.msra.mxu0 0.0
    %589 = vmatprep.subr.mxu0 0.0
    %590 = vmatpush1.msra.mxu0 0.0
    %591 = vmatprep.subr.mxu0 0.0
    %592 = vmatpush1.msra.mxu0 0.0
    %593 = vmatprep.subr.mxu0 0.0
    %594 = vmatpush1.msra.mxu0 0.0
    %595 = vmatprep.subr.mxu0 0.0
    %596 = vmatpush1.msra.mxu0 0.0
    %597 = vmatprep.subr.mxu0 0.0
    %598 = vmatpush1.msra.mxu0 0.0
    %599 = vmatprep.subr.mxu0 0.0
    %600 = vmatpush1.msra.mxu0 0.0
    %601 = vmatprep.subr.mxu0 0.0
    %602 = vmatpush1.msra.mxu0 0.0
    %603 = vmatprep.subr.mxu0 0.0
    %604 = vmatpush1.msra.mxu0 0.0
    %605 = vmatprep.subr.mxu0 0.0
    %606 = vmatpush1.msra.mxu0 0.0
    %607 = vmatprep.mubr.f32.mxu0 0.0
    %608 = vmatmul.mubr.f32.gmra.mrb[0].mxu0 %v541
    %v609 = vpop.f32.mrb[0].mxu0
    %v610 = vadd.f32 0.0, %v609
    %v611 = vpop.f32.mrb[0].mxu0
    %612 = vdwg.mxu0
    %v614 = vsel %vm204, %v370, 0
    %616 = vmatprep.subr.mxu0 0.0
    %617 = vmatpush1.msra.mxu0 %v197
    %618 = vmatprep.subr.mxu0 0.0
    %619 = vmatpush1.msra.mxu0 %v198
    %620 = vmatprep.subr.mxu0 0.0
    %621 = vmatpush1.msra.mxu0 0.0
    %622 = vmatprep.subr.mxu0 0.0
    %623 = vmatpush1.msra.mxu0 0.0
    %624 = vmatprep.subr.mxu0 0.0
    %625 = vmatpush1.msra.mxu0 0.0
    %626 = vmatprep.subr.mxu0 0.0
    %627 = vmatpush1.msra.mxu0 0.0
    %628 = vmatprep.subr.mxu0 0.0
    %629 = vmatpush1.msra.mxu0 0.0
    %630 = vmatprep.subr.mxu0 0.0
    %631 = vmatpush1.msra.mxu0 0.0
    %632 = vmatprep.subr.mxu0 0.0
    %633 = vmatpush1.msra.mxu0 0.0
    %634 = vmatprep.subr.mxu0 0.0
    %635 = vmatpush1.msra.mxu0 0.0
    %636 = vmatprep.subr.mxu0 0.0
    %637 = vmatpush1.msra.mxu0 0.0
    %638 = vmatprep.subr.mxu0 0.0
    %639 = vmatpush1.msra.mxu0 0.0
    %640 = vmatprep.subr.mxu0 0.0
    %641 = vmatpush1.msra.mxu0 0.0
    %642 = vmatprep.subr.mxu0 0.0
    %643 = vmatpush1.msra.mxu0 0.0
    %644 = vmatprep.subr.mxu0 0.0
    %645 = vmatpush1.msra.mxu0 0.0
    %646 = vmatprep.subr.mxu0 0.0
    %647 = vmatpush1.msra.mxu0 0.0
    %648 = vmatprep.subr.mxu0 0.0
    %649 = vmatpush1.msra.mxu0 0.0
    %650 = vmatprep.subr.mxu0 0.0
    %651 = vmatpush1.msra.mxu0 0.0
    %652 = vmatprep.subr.mxu0 0.0
    %653 = vmatpush1.msra.mxu0 0.0
    %654 = vmatprep.subr.mxu0 0.0
    %655 = vmatpush1.msra.mxu0 0.0
    %656 = vmatprep.subr.mxu0 0.0
    %657 = vmatpush1.msra.mxu0 0.0
    %658 = vmatprep.subr.mxu0 0.0
    %659 = vmatpush1.msra.mxu0 0.0
    %660 = vmatprep.subr.mxu0 0.0
    %661 = vmatpush1.msra.mxu0 0.0
    %662 = vmatprep.subr.mxu0 0.0
    %663 = vmatpush1.msra.mxu0 0.0
    %664 = vmatprep.subr.mxu0 0.0
    %665 = vmatpush1.msra.mxu0 0.0
    %666 = vmatprep.subr.mxu0 0.0
    %667 = vmatpush1.msra.mxu0 0.0
    %668 = vmatprep.subr.mxu0 0.0
    %669 = vmatpush1.msra.mxu0 0.0
    %670 = vmatprep.subr.mxu0 0.0
    %671 = vmatpush1.msra.mxu0 0.0
    %672 = vmatprep.subr.mxu0 0.0
    %673 = vmatpush1.msra.mxu0 0.0
    %674 = vmatprep.subr.mxu0 0.0
    %675 = vmatpush1.msra.mxu0 0.0
    %676 = vmatprep.subr.mxu0 0.0
    %677 = vmatpush1.msra.mxu0 0.0
    %678 = vmatprep.subr.mxu0 0.0
    %679 = vmatpush1.msra.mxu0 0.0
    %680 = vmatprep.mubr.f32.mxu0 0.0
    %681 = vmatmul.mubr.f32.gmra.mrb[0].mxu0 %v614
    %v682 = vpop.f32.mrb[0].mxu0
    %v683 = vadd.f32 %v610, %v682
    %v684 = vpop.f32.mrb[0].mxu0
    %685 = vdwg.mxu0
    %686 = vst.msk [vmem:[#allocation2] sm:$0xff] %vm61, %v683
    %688 = vrot.lane.b32.xlu0 %v194, 96
    %v689 = vpop.permute.xlu0 %688
    %v690 = vsel %vm204, %v194, 0
    %v692 = vsel %vm204, %v689, 0
    %694 = vmatprep.subr.mxu0 0.0
    %695 = vmatpush1.xpose.msra.mxu0 %v692
    %696 = vmatprep.subr.mxu0 0.0
    %697 = vmatpush1.xpose.msra.mxu0 0.0
    %698 = vmatprep.subr.mxu0 0.0
    %699 = vmatpush1.xpose.msra.mxu0 0.0
    %700 = vmatprep.subr.mxu0 0.0
    %701 = vmatpush1.xpose.msra.mxu0 0.0
    %702 = vmatprep.subr.mxu0 0.0
    %703 = vmatpush1.xpose.msra.mxu0 0.0
    %704 = vmatprep.subr.mxu0 0.0
    %705 = vmatpush1.xpose.msra.mxu0 0.0
    %706 = vmatprep.subr.mxu0 0.0
    %707 = vmatpush1.xpose.msra.mxu0 0.0
    %708 = vmatprep.subr.mxu0 0.0
    %709 = vmatpush1.xpose.msra.mxu0 0.0
    %710 = vmatprep.subr.mxu0 0.0
    %711 = vmatpush1.xpose.msra.mxu0 0.0
    %712 = vmatprep.subr.mxu0 0.0
    %713 = vmatpush1.xpose.msra.mxu0 0.0
    %714 = vmatprep.subr.mxu0 0.0
    %715 = vmatpush1.xpose.msra.mxu0 0.0
    %716 = vmatprep.subr.mxu0 0.0
    %717 = vmatpush1.xpose.msra.mxu0 0.0
    %718 = vmatprep.subr.mxu0 0.0
    %719 = vmatpush1.xpose.msra.mxu0 0.0
    %720 = vmatprep.subr.mxu0 0.0
    %721 = vmatpush1.xpose.msra.mxu0 0.0
    %722 = vmatprep.subr.mxu0 0.0
    %723 = vmatpush1.xpose.msra.mxu0 0.0
    %724 = vmatprep.subr.mxu0 0.0
    %725 = vmatpush1.xpose.msra.mxu0 0.0
    %726 = vmatprep.subr.mxu0 0.0
    %727 = vmatpush1.xpose.msra.mxu0 0.0
    %728 = vmatprep.subr.mxu0 0.0
    %729 = vmatpush1.xpose.msra.mxu0 0.0
    %730 = vmatprep.subr.mxu0 0.0
    %731 = vmatpush1.xpose.msra.mxu0 0.0
    %732 = vmatprep.subr.mxu0 0.0
    %733 = vmatpush1.xpose.msra.mxu0 0.0
    %734 = vmatprep.subr.mxu0 0.0
    %735 = vmatpush1.xpose.msra.mxu0 0.0
    %736 = vmatprep.subr.mxu0 0.0
    %737 = vmatpush1.xpose.msra.mxu0 0.0
    %738 = vmatprep.subr.mxu0 0.0
    %739 = vmatpush1.xpose.msra.mxu0 0.0
    %740 = vmatprep.subr.mxu0 0.0
    %741 = vmatpush1.xpose.msra.mxu0 0.0
    %742 = vmatprep.subr.mxu0 0.0
    %743 = vmatpush1.xpose.msra.mxu0 0.0
    %744 = vmatprep.subr.mxu0 0.0
    %745 = vmatpush1.xpose.msra.mxu0 0.0
    %746 = vmatprep.subr.mxu0 0.0
    %747 = vmatpush1.xpose.msra.mxu0 0.0
    %748 = vmatprep.subr.mxu0 0.0
    %749 = vmatpush1.xpose.msra.mxu0 0.0
    %750 = vmatprep.subr.mxu0 0.0
    %751 = vmatpush1.xpose.msra.mxu0 0.0
    %752 = vmatprep.subr.mxu0 0.0
    %753 = vmatpush1.xpose.msra.mxu0 0.0
    %754 = vmatprep.subr.mxu0 0.0
    %755 = vmatpush1.xpose.msra.mxu0 0.0
    %756 = vmatprep.subr.mxu0 0.0
    %757 = vmatpush1.xpose.msra.mxu0 0.0
    %758 = vmatprep.mubr.f32.mxu0 0.0
    %759 = vmatmul.mubr.f32.gmra.mrb[0].mxu0 %v690
    %v760 = vpop.f32.mrb[0].mxu0
    %v761 = vadd.f32 0.0, %v760
    %v762 = vpop.f32.mrb[0].mxu0
    %763 = vdwg.mxu0
    %v764 = vmul.f32 %v761, 0.25
    %v765 = vlaneseq
    %v766 = vshrl.u32 %v765, 7
    %v767 = vsub.s32 1, %v766
    %v768 = vrot.slane %v56, %v767
    %v769 = vadd.f32 %v764, %v768
    %v770 = vsel %vm285, %v769, -inf
    %771 = vmax.xlane.f32.xlu0 %v770
    %v772 = vpop.xlane.xlu0 %771
    %v773 = vsub.f32 %v769, %v772
    %v774 = vmul.f32 %v773, 1.442695
    %v775 = vpow.pop %v774
    %v776 = vsel %vm285, %v775, 0.0
    %777 = vadd.xlane.f32.xlu0 %v776
    %v778 = vpop.xlane.xlu0 %777
    %v779 = vrcp.pop %v778
    %v780 = vmul.f32 %v775, %v779
    %781 = vrot.lane.b32.xlu0 %v194, 64
    %v782 = vpop.permute.xlu0 %781
    %v785 = vsel %vm285, %v780, 0
    %787 = vmatprep.subr.mxu0 0.0
    %788 = vmatpush1.msra.mxu0 %v782
    %789 = vmatprep.subr.mxu0 0.0
    %790 = vmatpush1.msra.mxu0 0.0
    %791 = vmatprep.subr.mxu0 0.0
    %792 = vmatpush1.msra.mxu0 0.0
    %793 = vmatprep.subr.mxu0 0.0
    %794 = vmatpush1.msra.mxu0 0.0
    %795 = vmatprep.subr.mxu0 0.0
    %796 = vmatpush1.msra.mxu0 0.0
    %797 = vmatprep.subr.mxu0 0.0
    %798 = vmatpush1.msra.mxu0 0.0
    %799 = vmatprep.subr.mxu0 0.0
    %800 = vmatpush1.msra.mxu0 0.0
    %801 = vmatprep.subr.mxu0 0.0
    %802 = vmatpush1.msra.mxu0 0.0
    %803 = vmatprep.subr.mxu0 0.0
    %804 = vmatpush1.msra.mxu0 0.0
    %805 = vmatprep.subr.mxu0 0.0
    %806 = vmatpush1.msra.mxu0 0.0
    %807 = vmatprep.subr.mxu0 0.0
    %808 = vmatpush1.msra.mxu0 0.0
    %809 = vmatprep.subr.mxu0 0.0
    %810 = vmatpush1.msra.mxu0 0.0
    %811 = vmatprep.subr.mxu0 0.0
    %812 = vmatpush1.msra.mxu0 0.0
    %813 = vmatprep.subr.mxu0 0.0
    %814 = vmatpush1.msra.mxu0 0.0
    %815 = vmatprep.subr.mxu0 0.0
    %816 = vmatpush1.msra.mxu0 0.0
    %817 = vmatprep.subr.mxu0 0.0
    %818 = vmatpush1.msra.mxu0 0.0
    %819 = vmatprep.subr.mxu0 0.0
    %820 = vmatpush1.msra.mxu0 0.0
    %821 = vmatprep.subr.mxu0 0.0
    %822 = vmatpush1.msra.mxu0 0.0
    %823 = vmatprep.subr.mxu0 0.0
    %824 = vmatpush1.msra.mxu0 0.0
    %825 = vmatprep.subr.mxu0 0.0
    %826 = vmatpush1.msra.mxu0 0.0
    %827 = vmatprep.subr.mxu0 0.0
    %828 = vmatpush1.msra.mxu0 0.0
    %829 = vmatprep.subr.mxu0 0.0
    %830 = vmatpush1.msra.mxu0 0.0
    %831 = vmatprep.subr.mxu0 0.0
    %832 = vmatpush1.msra.mxu0 0.0
    %833 = vmatprep.subr.mxu0 0.0
    %834 = vmatpush1.msra.mxu0 0.0
    %835 = vmatprep.subr.mxu0 0.0
    %836 = vmatpush1.msra.mxu0 0.0
    %837 = vmatprep.subr.mxu0 0.0
    %838 = vmatpush1.msra.mxu0 0.0
    %839 = vmatprep.subr.mxu0 0.0
    %840 = vmatpush1.msra.mxu0 0.0
    %841 = vmatprep.subr.mxu0 0.0
    %842 = vmatpush1.msra.mxu0 0.0
    %843 = vmatprep.subr.mxu0 0.0
    %844 = vmatpush1.msra.mxu0 0.0
    %845 = vmatprep.subr.mxu0 0.0
    %846 = vmatpush1.msra.mxu0 0.0
    %847 = vmatprep.subr.mxu0 0.0
    %848 = vmatpush1.msra.mxu0 0.0
    %849 = vmatprep.subr.mxu0 0.0
    %850 = vmatpush1.msra.mxu0 0.0
    %851 = vmatprep.mubr.f32.mxu0 0.0
    %852 = vmatmul.mubr.f32.gmra.mrb[0].mxu0 %v785
    %v853 = vpop.f32.mrb[0].mxu0
    %v854 = vadd.f32 0.0, %v853
    %v855 = vpop.f32.mrb[0].mxu0
    %856 = vdwg.mxu0
    %857 = vrot.lane.b32.xlu0 %v194, 112
    %v858 = vpop.permute.xlu0 %857
    %859 = vrot.lane.b32.xlu0 %v194, 80
    %v860 = vpop.permute.xlu0 %859
    %v861 = vsel %vm204, %v858, 0
    %v863 = vsel %vm204, %v860, 0
    %865 = vmatprep.subr.mxu0 0.0
    %866 = vmatpush1.xpose.msra.mxu0 %v863
    %867 = vmatprep.subr.mxu0 0.0
    %868 = vmatpush1.xpose.msra.mxu0 0.0
    %869 = vmatprep.subr.mxu0 0.0
    %870 = vmatpush1.xpose.msra.mxu0 0.0
    %871 = vmatprep.subr.mxu0 0.0
    %872 = vmatpush1.xpose.msra.mxu0 0.0
    %873 = vmatprep.subr.mxu0 0.0
    %874 = vmatpush1.xpose.msra.mxu0 0.0
    %875 = vmatprep.subr.mxu0 0.0
    %876 = vmatpush1.xpose.msra.mxu0 0.0
    %877 = vmatprep.subr.mxu0 0.0
    %878 = vmatpush1.xpose.msra.mxu0 0.0
    %879 = vmatprep.subr.mxu0 0.0
    %880 = vmatpush1.xpose.msra.mxu0 0.0
    %881 = vmatprep.subr.mxu0 0.0
    %882 = vmatpush1.xpose.msra.mxu0 0.0
    %883 = vmatprep.subr.mxu0 0.0
    %884 = vmatpush1.xpose.msra.mxu0 0.0
    %885 = vmatprep.subr.mxu0 0.0
    %886 = vmatpush1.xpose.msra.mxu0 0.0
    %887 = vmatprep.subr.mxu0 0.0
    %888 = vmatpush1.xpose.msra.mxu0 0.0
    %889 = vmatprep.subr.mxu0 0.0
    %890 = vmatpush1.xpose.msra.mxu0 0.0
    %891 = vmatprep.subr.mxu0 0.0
    %892 = vmatpush1.xpose.msra.mxu0 0.0
    %893 = vmatprep.subr.mxu0 0.0
    %894 = vmatpush1.xpose.msra.mxu0 0.0
    %895 = vmatprep.subr.mxu0 0.0
    %896 = vmatpush1.xpose.msra.mxu0 0.0
    %897 = vmatprep.subr.mxu0 0.0
    %898 = vmatpush1.xpose.msra.mxu0 0.0
    %899 = vmatprep.subr.mxu0 0.0
    %900 = vmatpush1.xpose.msra.mxu0 0.0
    %901 = vmatprep.subr.mxu0 0.0
    %902 = vmatpush1.xpose.msra.mxu0 0.0
    %903 = vmatprep.subr.mxu0 0.0
    %904 = vmatpush1.xpose.msra.mxu0 0.0
    %905 = vmatprep.subr.mxu0 0.0
    %906 = vmatpush1.xpose.msra.mxu0 0.0
    %907 = vmatprep.subr.mxu0 0.0
    %908 = vmatpush1.xpose.msra.mxu0 0.0
    %909 = vmatprep.subr.mxu0 0.0
    %910 = vmatpush1.xpose.msra.mxu0 0.0
    %911 = vmatprep.subr.mxu0 0.0
    %912 = vmatpush1.xpose.msra.mxu0 0.0
    %913 = vmatprep.subr.mxu0 0.0
    %914 = vmatpush1.xpose.msra.mxu0 0.0
    %915 = vmatprep.subr.mxu0 0.0
    %916 = vmatpush1.xpose.msra.mxu0 0.0
    %917 = vmatprep.subr.mxu0 0.0
    %918 = vmatpush1.xpose.msra.mxu0 0.0
    %919 = vmatprep.subr.mxu0 0.0
    %920 = vmatpush1.xpose.msra.mxu0 0.0
    %921 = vmatprep.subr.mxu0 0.0
    %922 = vmatpush1.xpose.msra.mxu0 0.0
    %923 = vmatprep.subr.mxu0 0.0
    %924 = vmatpush1.xpose.msra.mxu0 0.0
    %925 = vmatprep.subr.mxu0 0.0
    %926 = vmatpush1.xpose.msra.mxu0 0.0
    %927 = vmatprep.subr.mxu0 0.0
    %928 = vmatpush1.xpose.msra.mxu0 0.0
    %929 = vmatprep.mubr.f32.mxu0 0.0
    %930 = vmatmul.mubr.f32.gmra.mrb[0].mxu0 %v861
    %v931 = vpop.f32.mrb[0].mxu0
    %v932 = vadd.f32 0.0, %v931
    %v933 = vpop.f32.mrb[0].mxu0
    %934 = vdwg.mxu0
    %v935 = vmul.f32 %v932, 0.25
    %v936 = vadd.f32 %v935, %v768
    %v937 = vsel %vm285, %v936, -inf
    %938 = vmax.xlane.f32.xlu0 %v937
    %v939 = vpop.xlane.xlu0 %938
    %v940 = vsub.f32 %v936, %v939
    %v941 = vmul.f32 %v940, 1.442695
    %v942 = vpow.pop %v941
    %v943 = vsel %vm285, %v942, 0.0
    %944 = vadd.xlane.f32.xlu0 %v943
    %v945 = vpop.xlane.xlu0 %944
    %v946 = vrcp.pop %v945
    %v947 = vmul.f32 %v942, %v946
    %948 = vrot.lane.b32.xlu0 %v194, 48
    %v949 = vpop.permute.xlu0 %948
    %v952 = vsel %vm285, %v947, 0
    %954 = vmatprep.subr.mxu0 0.0
    %955 = vmatpush1.msra.mxu0 %v949
    %956 = vmatprep.subr.mxu0 0.0
    %957 = vmatpush1.msra.mxu0 0.0
    %958 = vmatprep.subr.mxu0 0.0
    %959 = vmatpush1.msra.mxu0 0.0
    %960 = vmatprep.subr.mxu0 0.0
    %961 = vmatpush1.msra.mxu0 0.0
    %962 = vmatprep.subr.mxu0 0.0
    %963 = vmatpush1.msra.mxu0 0.0
    %964 = vmatprep.subr.mxu0 0.0
    %965 = vmatpush1.msra.mxu0 0.0
    %966 = vmatprep.subr.mxu0 0.0
    %967 = vmatpush1.msra.mxu0 0.0
    %968 = vmatprep.subr.mxu0 0.0
    %969 = vmatpush1.msra.mxu0 0.0
    %970 = vmatprep.subr.mxu0 0.0
    %971 = vmatpush1.msra.mxu0 0.0
    %972 = vmatprep.subr.mxu0 0.0
    %973 = vmatpush1.msra.mxu0 0.0
    %974 = vmatprep.subr.mxu0 0.0
    %975 = vmatpush1.msra.mxu0 0.0
    %976 = vmatprep.subr.mxu0 0.0
    %977 = vmatpush1.msra.mxu0 0.0
    %978 = vmatprep.subr.mxu0 0.0
    %979 = vmatpush1.msra.mxu0 0.0
    %980 = vmatprep.subr.mxu0 0.0
    %981 = vmatpush1.msra.mxu0 0.0
    %982 = vmatprep.subr.mxu0 0.0
    %983 = vmatpush1.msra.mxu0 0.0
    %984 = vmatprep.subr.mxu0 0.0
    %985 = vmatpush1.msra.mxu0 0.0
    %986 = vmatprep.subr.mxu0 0.0
    %987 = vmatpush1.msra.mxu0 0.0
    %988 = vmatprep.subr.mxu0 0.0
    %989 = vmatpush1.msra.mxu0 0.0
    %990 = vmatprep.subr.mxu0 0.0
    %991 = vmatpush1.msra.mxu0 0.0
    %992 = vmatprep.subr.mxu0 0.0
    %993 = vmatpush1.msra.mxu0 0.0
    %994 = vmatprep.subr.mxu0 0.0
    %995 = vmatpush1.msra.mxu0 0.0
    %996 = vmatprep.subr.mxu0 0.0
    %997 = vmatpush1.msra.mxu0 0.0
    %998 = vmatprep.subr.mxu0 0.0
    %999 = vmatpush1.msra.mxu0 0.0
    %1000 = vmatprep.subr.mxu0 0.0
    %1001 = vmatpush1.msra.mxu0 0.0
    %1002 = vmatprep.subr.mxu0 0.0
    %1003 = vmatpush1.msra.mxu0 0.0
    %1004 = vmatprep.subr.mxu0 0.0
    %1005 = vmatpush1.msra.mxu0 0.0
    %1006 = vmatprep.subr.mxu0 0.0
    %1007 = vmatpush1.msra.mxu0 0.0
    %1008 = vmatprep.subr.mxu0 0.0
    %1009 = vmatpush1.msra.mxu0 0.0
    %1010 = vmatprep.subr.mxu0 0.0
    %1011 = vmatpush1.msra.mxu0 0.0
    %1012 = vmatprep.subr.mxu0 0.0
    %1013 = vmatpush1.msra.mxu0 0.0
    %1014 = vmatprep.subr.mxu0 0.0
    %1015 = vmatpush1.msra.mxu0 0.0
    %1016 = vmatprep.subr.mxu0 0.0
    %1017 = vmatpush1.msra.mxu0 0.0
    %1018 = vmatprep.mubr.f32.mxu0 0.0
    %1019 = vmatmul.mubr.f32.gmra.mrb[0].mxu0 %v952
    %v1020 = vpop.f32.mrb[0].mxu0
    %v1021 = vadd.f32 0.0, %v1020
    %v1022 = vpop.f32.mrb[0].mxu0
    %1023 = vdwg.mxu0
    %v1025 = vsel %vm204, %v1021, 0
    %1027 = vmatprep.subr.mxu0 0.0
    %1028 = vmatpush1.msra.mxu0 %v199
    %1029 = vmatprep.subr.mxu0 0.0
    %1030 = vmatpush1.msra.mxu0 %v200
    %1031 = vmatprep.subr.mxu0 0.0
    %1032 = vmatpush1.msra.mxu0 0.0
    %1033 = vmatprep.subr.mxu0 0.0
    %1034 = vmatpush1.msra.mxu0 0.0
    %1035 = vmatprep.subr.mxu0 0.0
    %1036 = vmatpush1.msra.mxu0 0.0
    %1037 = vmatprep.subr.mxu0 0.0
    %1038 = vmatpush1.msra.mxu0 0.0
    %1039 = vmatprep.subr.mxu0 0.0
    %1040 = vmatpush1.msra.mxu0 0.0
    %1041 = vmatprep.subr.mxu0 0.0
    %1042 = vmatpush1.msra.mxu0 0.0
    %1043 = vmatprep.subr.mxu0 0.0
    %1044 = vmatpush1.msra.mxu0 0.0
    %1045 = vmatprep.subr.mxu0 0.0
    %1046 = vmatpush1.msra.mxu0 0.0
    %1047 = vmatprep.subr.mxu0 0.0
    %1048 = vmatpush1.msra.mxu0 0.0
    %1049 = vmatprep.subr.mxu0 0.0
    %1050 = vmatpush1.msra.mxu0 0.0
    %1051 = vmatprep.subr.mxu0 0.0
    %1052 = vmatpush1.msra.mxu0 0.0
    %1053 = vmatprep.subr.mxu0 0.0
    %1054 = vmatpush1.msra.mxu0 0.0
    %1055 = vmatprep.subr.mxu0 0.0
    %1056 = vmatpush1.msra.mxu0 0.0
    %1057 = vmatprep.subr.mxu0 0.0
    %1058 = vmatpush1.msra.mxu0 0.0
    %1059 = vmatprep.subr.mxu0 0.0
    %1060 = vmatpush1.msra.mxu0 0.0
    %1061 = vmatprep.subr.mxu0 0.0
    %1062 = vmatpush1.msra.mxu0 0.0
    %1063 = vmatprep.subr.mxu0 0.0
    %1064 = vmatpush1.msra.mxu0 0.0
    %1065 = vmatprep.subr.mxu0 0.0
    %1066 = vmatpush1.msra.mxu0 0.0
    %1067 = vmatprep.subr.mxu0 0.0
    %1068 = vmatpush1.msra.mxu0 0.0
    %1069 = vmatprep.subr.mxu0 0.0
    %1070 = vmatpush1.msra.mxu0 0.0
    %1071 = vmatprep.subr.mxu0 0.0
    %1072 = vmatpush1.msra.mxu0 0.0
    %1073 = vmatprep.subr.mxu0 0.0
    %1074 = vmatpush1.msra.mxu0 0.0
    %1075 = vmatprep.subr.mxu0 0.0
    %1076 = vmatpush1.msra.mxu0 0.0
    %1077 = vmatprep.subr.mxu0 0.0
    %1078 = vmatpush1.msra.mxu0 0.0
    %1079 = vmatprep.subr.mxu0 0.0
    %1080 = vmatpush1.msra.mxu0 0.0
    %1081 = vmatprep.subr.mxu0 0.0
    %1082 = vmatpush1.msra.mxu0 0.0
    %1083 = vmatprep.subr.mxu0 0.0
    %1084 = vmatpush1.msra.mxu0 0.0
    %1085 = vmatprep.subr.mxu0 0.0
    %1086 = vmatpush1.msra.mxu0 0.0
    %1087 = vmatprep.subr.mxu0 0.0
    %1088 = vmatpush1.msra.mxu0 0.0
    %1089 = vmatprep.subr.mxu0 0.0
    %1090 = vmatpush1.msra.mxu0 0.0
    %1091 = vmatprep.mubr.f32.mxu0 0.0
    %1092 = vmatmul.mubr.f32.gmra.mrb[0].mxu0 %v1025
    %v1093 = vpop.f32.mrb[0].mxu0
    %v1094 = vadd.f32 0.0, %v1093
    %v1095 = vpop.f32.mrb[0].mxu0
    %1096 = vdwg.mxu0
    %v1098 = vsel %vm204, %v854, 0
    %1100 = vmatprep.subr.mxu0 0.0
    %1101 = vmatpush1.msra.mxu0 %v197
    %1102 = vmatprep.subr.mxu0 0.0
    %1103 = vmatpush1.msra.mxu0 %v198
    %1104 = vmatprep.subr.mxu0 0.0
    %1105 = vmatpush1.msra.mxu0 0.0
    %1106 = vmatprep.subr.mxu0 0.0
    %1107 = vmatpush1.msra.mxu0 0.0
    %1108 = vmatprep.subr.mxu0 0.0
    %1109 = vmatpush1.msra.mxu0 0.0
    %1110 = vmatprep.subr.mxu0 0.0
    %1111 = vmatpush1.msra.mxu0 0.0
    %1112 = vmatprep.subr.mxu0 0.0
    %1113 = vmatpush1.msra.mxu0 0.0
    %1114 = vmatprep.subr.mxu0 0.0
    %1115 = vmatpush1.msra.mxu0 0.0
    %1116 = vmatprep.subr.mxu0 0.0
    %1117 = vmatpush1.msra.mxu0 0.0
    %1118 = vmatprep.subr.mxu0 0.0
    %1119 = vmatpush1.msra.mxu0 0.0
    %1120 = vmatprep.subr.mxu0 0.0
    %1121 = vmatpush1.msra.mxu0 0.0
    %1122 = vmatprep.subr.mxu0 0.0
    %1123 = vmatpush1.msra.mxu0 0.0
    %1124 = vmatprep.subr.mxu0 0.0
    %1125 = vmatpush1.msra.mxu0 0.0
    %1126 = vmatprep.subr.mxu0 0.0
    %1127 = vmatpush1.msra.mxu0 0.0
    %1128 = vmatprep.subr.mxu0 0.0
    %1129 = vmatpush1.msra.mxu0 0.0
    %1130 = vmatprep.subr.mxu0 0.0
    %1131 = vmatpush1.msra.mxu0 0.0
    %1132 = vmatprep.subr.mxu0 0.0
    %1133 = vmatpush1.msra.mxu0 0.0
    %1134 = vmatprep.subr.mxu0 0.0
    %1135 = vmatpush1.msra.mxu0 0.0
    %1136 = vmatprep.subr.mxu0 0.0
    %1137 = vmatpush1.msra.mxu0 0.0
    %1138 = vmatprep.subr.mxu0 0.0
    %1139 = vmatpush1.msra.mxu0 0.0
    %1140 = vmatprep.subr.mxu0 0.0
    %1141 = vmatpush1.msra.mxu0 0.0
    %1142 = vmatprep.subr.mxu0 0.0
    %1143 = vmatpush1.msra.mxu0 0.0
    %1144 = vmatprep.subr.mxu0 0.0
    %1145 = vmatpush1.msra.mxu0 0.0
    %1146 = vmatprep.subr.mxu0 0.0
    %1147 = vmatpush1.msra.mxu0 0.0
    %1148 = vmatprep.subr.mxu0 0.0
    %1149 = vmatpush1.msra.mxu0 0.0
    %1150 = vmatprep.subr.mxu0 0.0
    %1151 = vmatpush1.msra.mxu0 0.0
    %1152 = vmatprep.subr.mxu0 0.0
    %1153 = vmatpush1.msra.mxu0 0.0
    %1154 = vmatprep.subr.mxu0 0.0
    %1155 = vmatpush1.msra.mxu0 0.0
    %1156 = vmatprep.subr.mxu0 0.0
    %1157 = vmatpush1.msra.mxu0 0.0
    %1158 = vmatprep.subr.mxu0 0.0
    %1159 = vmatpush1.msra.mxu0 0.0
    %1160 = vmatprep.subr.mxu0 0.0
    %1161 = vmatpush1.msra.mxu0 0.0
    %1162 = vmatprep.subr.mxu0 0.0
    %1163 = vmatpush1.msra.mxu0 0.0
    %1164 = vmatprep.mubr.f32.mxu0 0.0
    %1165 = vmatmul.mubr.f32.gmra.mrb[0].mxu0 %v1098
    %v1166 = vpop.f32.mrb[0].mxu0
    %v1167 = vadd.f32 %v1094, %v1166
    %v1168 = vpop.f32.mrb[0].mxu0
    %1169 = vdwg.mxu0
    %1170 = vst.msk [vmem:[#allocation2 + $0x8] sm:$0xff] %vm61, %v1167
    %v1171 = vld [vmem:[#allocation2] sm:$0xff]
    %v1172 = vld [vmem:[#allocation2 + $0x8] sm:$0xff]
    %v1173 = vld [vmem:[%s7] sm:$0x1]
    %v1175 = vlaneseq
    %v1176 = vshrl.u32 %v1175, 7
    %v1177 = vsub.s32 0, %v1176
    %v1178 = vrot.slane %v1173, %v1177
    %v1180 = vadd.f32 %v1171, %v1178
    %v1181 = vadd.f32 %v1172, %v1178
    %v1182 = vadd.f32 %v1180, %v103
    %v1183 = vadd.f32 %v1181, %v104
    %v1184 = vld [vmem:[%s8] sm:$0x1]
    %v1185 = vld [vmem:[%s9] sm:$0x1]
    %v1186 = vsel %vm61, %v1182, 0.0
    %1187 = vadd.xlane.f32.xlu0 %v1186
    %v1188 = vpop.xlane.xlu0 %1187
    %v1189 = vsel %vm61, %v1183, 0.0
    %1190 = vadd.xlane.f32.xlu0 %v1189
    %v1191 = vpop.xlane.xlu0 %1190
    %v1192 = vmul.f32 %v1188, %v68
    %v1193 = vmul.f32 %v1191, %v68
    %v1194 = vsub.f32 %v1182, %v1192
    %v1195 = vsub.f32 %v1183, %v1193
    %v1196 = vmul.f32 %v1194, %v1194
    %v1197 = vmul.f32 %v1195, %v1195
    %v1198 = vsel %vm61, %v1196, 0.0
    %1199 = vadd.xlane.f32.xlu0 %v1198
    %v1200 = vpop.xlane.xlu0 %1199
    %v1201 = vsel %vm61, %v1197, 0.0
    %1202 = vadd.xlane.f32.xlu0 %v1201
    %v1203 = vpop.xlane.xlu0 %1202
    %v1204 = vmul.f32 %v1200, %v68
    %v1205 = vmul.f32 %v1203, %v68
    %v1206 = vadd.f32 %v1204, 1e-12
    %v1207 = vadd.f32 %v1205, 1e-12
    %v1208 = vrsqrt.pop %v1206
    %v1209 = vrsqrt.pop %v1207
    %v1210 = vmul.f32 %v1194, %v1208
    %v1211 = vmul.f32 %v1195, %v1209
    %v1213 = vlaneseq
    %v1214 = vshrl.u32 %v1213, 7
    %v1215 = vsub.s32 0, %v1214
    %v1216 = vrot.slane %v1184, %v1215
    %v1218 = vmul.f32 %v1210, %v1216
    %v1219 = vmul.f32 %v1211, %v1216
    %v1221 = vlaneseq
    %v1222 = vshrl.u32 %v1221, 7
    %v1223 = vsub.s32 0, %v1222
    %v1224 = vrot.slane %v1185, %v1223
    %v1226 = vadd.f32 %v1218, %v1224
    %v1227 = vadd.f32 %v1219, %v1224
    %v1228 = vld [vmem:[%s10] sm:$0xff]
    %v1229 = vld [vmem:[%s10 + $0x8] sm:$0xff]
    %v1230 = vld [vmem:[%s10 + $0x10] sm:$0xff]
    %v1231 = vld [vmem:[%s10 + $0x18] sm:$0xff]
    %v1232 = vld [vmem:[%s11] sm:$0x1]
    %v1234 = vlaneseq
    %v1235 = vshrl.u32 %v1234, 7
    %v1236 = vsub.s32 0, %v1235
    %v1237 = vrot.slane %v1232, %v1236
    %v1240 = vsel %vm61, %v1226, 0
    %v1243 = vsel %vm61, %v1227, 0
    %1245 = vmatprep.subr.mxu0 0.0
    %1246 = vmatpush1.msra.mxu0 %v1228
    %1247 = vmatprep.subr.mxu0 0.0
    %1248 = vmatpush1.msra.mxu0 %v1229
    %1249 = vmatprep.subr.mxu0 0.0
    %1250 = vmatpush1.msra.mxu0 %v1230
    %1251 = vmatprep.subr.mxu0 0.0
    %1252 = vmatpush1.msra.mxu0 %v1231
    %1253 = vmatprep.subr.mxu0 0.0
    %1254 = vmatpush1.msra.mxu0 0.0
    %1255 = vmatprep.subr.mxu0 0.0
    %1256 = vmatpush1.msra.mxu0 0.0
    %1257 = vmatprep.subr.mxu0 0.0
    %1258 = vmatpush1.msra.mxu0 0.0
    %1259 = vmatprep.subr.mxu0 0.0
    %1260 = vmatpush1.msra.mxu0 0.0
    %1261 = vmatprep.subr.mxu0 0.0
    %1262 = vmatpush1.msra.mxu0 0.0
    %1263 = vmatprep.subr.mxu0 0.0
    %1264 = vmatpush1.msra.mxu0 0.0
    %1265 = vmatprep.subr.mxu0 0.0
    %1266 = vmatpush1.msra.mxu0 0.0
    %1267 = vmatprep.subr.mxu0 0.0
    %1268 = vmatpush1.msra.mxu0 0.0
    %1269 = vmatprep.subr.mxu0 0.0
    %1270 = vmatpush1.msra.mxu0 0.0
    %1271 = vmatprep.subr.mxu0 0.0
    %1272 = vmatpush1.msra.mxu0 0.0
    %1273 = vmatprep.subr.mxu0 0.0
    %1274 = vmatpush1.msra.mxu0 0.0
    %1275 = vmatprep.subr.mxu0 0.0
    %1276 = vmatpush1.msra.mxu0 0.0
    %1277 = vmatprep.subr.mxu0 0.0
    %1278 = vmatpush1.msra.mxu0 0.0
    %1279 = vmatprep.subr.mxu0 0.0
    %1280 = vmatpush1.msra.mxu0 0.0
    %1281 = vmatprep.subr.mxu0 0.0
    %1282 = vmatpush1.msra.mxu0 0.0
    %1283 = vmatprep.subr.mxu0 0.0
    %1284 = vmatpush1.msra.mxu0 0.0
    %1285 = vmatprep.subr.mxu0 0.0
    %1286 = vmatpush1.msra.mxu0 0.0
    %1287 = vmatprep.subr.mxu0 0.0
    %1288 = vmatpush1.msra.mxu0 0.0
    %1289 = vmatprep.subr.mxu0 0.0
    %1290 = vmatpush1.msra.mxu0 0.0
    %1291 = vmatprep.subr.mxu0 0.0
    %1292 = vmatpush1.msra.mxu0 0.0
    %1293 = vmatprep.subr.mxu0 0.0
    %1294 = vmatpush1.msra.mxu0 0.0
    %1295 = vmatprep.subr.mxu0 0.0
    %1296 = vmatpush1.msra.mxu0 0.0
    %1297 = vmatprep.subr.mxu0 0.0
    %1298 = vmatpush1.msra.mxu0 0.0
    %1299 = vmatprep.subr.mxu0 0.0
    %1300 = vmatpush1.msra.mxu0 0.0
    %1301 = vmatprep.subr.mxu0 0.0
    %1302 = vmatpush1.msra.mxu0 0.0
    %1303 = vmatprep.subr.mxu0 0.0
    %1304 = vmatpush1.msra.mxu0 0.0
    %1305 = vmatprep.subr.mxu0 0.0
    %1306 = vmatpush1.msra.mxu0 0.0
    %1307 = vmatprep.subr.mxu0 0.0
    %1308 = vmatpush1.msra.mxu0 0.0
    %1309 = vmatprep.mubr.f32.mxu0 0.0
    %1310 = vmatmul.mubr.f32.gmra.mrb[0].mxu0 %v1240
    %v1311 = vpop.f32.mrb[0].mxu0
    %v1312 = vadd.f32 %v1237, %v1311
    %v1313 = vpop.f32.mrb[0].mxu0
    %1314 = vmatprep.mubr.f32.mxu0 0.0
    %1315 = vmatmul.mubr.f32.gmra.mrb[0].mxu0 %v1243
    %v1316 = vpop.f32.mrb[0].mxu0
    %v1317 = vadd.f32 %v1237, %v1316
    %v1318 = vpop.f32.mrb[0].mxu0
    %1319 = vdwg.mxu0
    %v1320 = vmul.f32 %v1312, 0.5
    %v1321 = vmul.f32 %v1317, 0.5
    %v1322 = vmul.f32 %v1312, 0.044715
    %v1323 = vmul.f32 %v1317, 0.044715
    %v1324 = vmul.f32 %v1322, %v1312
    %v1325 = vmul.f32 %v1323, %v1317
    %v1326 = vmul.f32 %v1324, %v1312
    %v1327 = vmul.f32 %v1325, %v1317
    %v1328 = vadd.f32 %v1312, %v1326
    %v1329 = vadd.f32 %v1317, %v1327
    %v1330 = vmul.f32 %v1328, 0.7978846
    %v1331 = vmul.f32 %v1329, 0.7978846
    %v1332 = vtanh.pop %v1330
    %v1333 = vtanh.pop %v1331
    %v1334 = vadd.f32 %v1332, 1.0
    %v1335 = vadd.f32 %v1333, 1.0
    %v1336 = vmul.f32 %v1320, %v1334
    %v1337 = vmul.f32 %v1321, %v1335
    %v1338 = vld [vmem:[%s12] sm:$0xff]
    %v1339 = vld [vmem:[%s12 + $0x8] sm:$0xff]
    %v1340 = vld [vmem:[%s12 + $0x10] sm:$0xff]
    %v1341 = vld [vmem:[%s12 + $0x18] sm:$0xff]
    %v1342 = vld [vmem:[%s12 + $0x20] sm:$0xff]
    %v1343 = vld [vmem:[%s12 + $0x28] sm:$0xff]
    %v1344 = vld [vmem:[%s12 + $0x30] sm:$0xff]
    %v1345 = vld [vmem:[%s12 + $0x38] sm:$0xff]
    %v1346 = vld [vmem:[%s13] sm:$0x1]
    %v1348 = vlaneseq
    %v1349 = vshrl.u32 %v1348, 7
    %v1350 = vsub.s32 0, %v1349
    %v1351 = vrot.slane %v1346, %v1350
    %vm1353 = vcmask 523264
    %v1355 = vsel %vm1353, %v1336, 0
    %v1358 = vsel %vm1353, %v1337, 0
    %1360 = vmatprep.subr.mxu0 0.0
    %1361 = vmatpush1.msra.mxu0 %v1338
    %1362 = vmatprep.subr.mxu0 0.0
    %1363 = vmatpush1.msra.mxu0 %v1339
    %1364 = vmatprep.subr.mxu0 0.0
    %1365 = vmatpush1.msra.mxu0 %v1340
    %1366 = vmatprep.subr.mxu0 0.0
    %1367 = vmatpush1.msra.mxu0 %v1341
    %1368 = vmatprep.subr.mxu0 0.0
    %1369 = vmatpush1.msra.mxu0 %v1342
    %1370 = vmatprep.subr.mxu0 0.0
    %1371 = vmatpush1.msra.mxu0 %v1343
    %1372 = vmatprep.subr.mxu0 0.0
    %1373 = vmatpush1.msra.mxu0 %v1344
    %1374 = vmatprep.subr.mxu0 0.0
    %1375 = vmatpush1.msra.mxu0 %v1345
    %1376 = vmatprep.subr.mxu0 0.0
    %1377 = vmatpush1.msra.mxu0 0.0
    %1378 = vmatprep.subr.mxu0 0.0
    %1379 = vmatpush1.msra.mxu0 0.0
    %1380 = vmatprep.subr.mxu0 0.0
    %1381 = vmatpush1.msra.mxu0 0.0
    %1382 = vmatprep.subr.mxu0 0.0
    %1383 = vmatpush1.msra.mxu0 0.0
    %1384 = vmatprep.subr.mxu0 0.0
    %1385 = vmatpush1.msra.mxu0 0.0
    %1386 = vmatprep.subr.mxu0 0.0
    %1387 = vmatpush1.msra.mxu0 0.0
    %1388 = vmatprep.subr.mxu0 0.0
    %1389 = vmatpush1.msra.mxu0 0.0
    %1390 = vmatprep.subr.mxu0 0.0
    %1391 = vmatpush1.msra.mxu0 0.0
    %1392 = vmatprep.subr.mxu0 0.0
    %1393 = vmatpush1.msra.mxu0 0.0
    %1394 = vmatprep.subr.mxu0 0.0
    %1395 = vmatpush1.msra.mxu0 0.0
    %1396 = vmatprep.subr.mxu0 0.0
    %1397 = vmatpush1.msra.mxu0 0.0
    %1398 = vmatprep.subr.mxu0 0.0
    %1399 = vmatpush1.msra.mxu0 0.0
    %1400 = vmatprep.subr.mxu0 0.0
    %1401 = vmatpush1.msra.mxu0 0.0
    %1402 = vmatprep.subr.mxu0 0.0
    %1403 = vmatpush1.msra.mxu0 0.0
    %1404 = vmatprep.subr.mxu0 0.0
    %1405 = vmatpush1.msra.mxu0 0.0
    %1406 = vmatprep.subr.mxu0 0.0
    %1407 = vmatpush1.msra.mxu0 0.0
    %1408 = vmatprep.subr.mxu0 0.0
    %1409 = vmatpush1.msra.mxu0 0.0
    %1410 = vmatprep.subr.mxu0 0.0
    %1411 = vmatpush1.msra.mxu0 0.0
    %1412 = vmatprep.subr.mxu0 0.0
    %1413 = vmatpush1.msra.mxu0 0.0
    %1414 = vmatprep.subr.mxu0 0.0
    %1415 = vmatpush1.msra.mxu0 0.0
    %1416 = vmatprep.subr.mxu0 0.0
    %1417 = vmatpush1.msra.mxu0 0.0
    %1418 = vmatprep.subr.mxu0 0.0
    %1419 = vmatpush1.msra.mxu0 0.0
    %1420 = vmatprep.subr.mxu0 0.0
    %1421 = vmatpush1.msra.mxu0 0.0
    %1422 = vmatprep.subr.mxu0 0.0
    %1423 = vmatpush1.msra.mxu0 0.0
    %1424 = vmatprep.mubr.f32.mxu0 0.0
    %1425 = vmatmul.mubr.f32.gmra.mrb[0].mxu0 %v1355
    %v1426 = vpop.f32.mrb[0].mxu0
    %v1427 = vadd.f32 %v1351, %v1426
    %v1428 = vpop.f32.mrb[0].mxu0
    %1429 = vmatprep.mubr.f32.mxu0 0.0
    %1430 = vmatmul.mubr.f32.gmra.mrb[0].mxu0 %v1358
    %v1431 = vpop.f32.mrb[0].mxu0
    %v1432 = vadd.f32 %v1351, %v1431
    %v1433 = vpop.f32.mrb[0].mxu0
    %1434 = vdwg.mxu0
    %v1435 = vadd.f32 %v1427, %v1226
    %v1436 = vadd.f32 %v1432, %v1227
    %v1437 = vld [vmem:[%s14] sm:$0x1]
    %v1438 = vld [vmem:[%s15] sm:$0x1]
    %v1439 = vsel %vm61, %v1435, 0.0
    %1440 = vadd.xlane.f32.xlu0 %v1439
    %v1441 = vpop.xlane.xlu0 %1440
    %v1442 = vsel %vm61, %v1436, 0.0
    %1443 = vadd.xlane.f32.xlu0 %v1442
    %v1444 = vpop.xlane.xlu0 %1443
    %v1445 = vmul.f32 %v1441, %v68
    %v1446 = vmul.f32 %v1444, %v68
    %v1447 = vsub.f32 %v1435, %v1445
    %v1448 = vsub.f32 %v1436, %v1446
    %v1449 = vmul.f32 %v1447, %v1447
    %v1450 = vmul.f32 %v1448, %v1448
    %v1451 = vsel %vm61, %v1449, 0.0
    %1452 = vadd.xlane.f32.xlu0 %v1451
    %v1453 = vpop.xlane.xlu0 %1452
    %v1454 = vsel %vm61, %v1450, 0.0
    %1455 = vadd.xlane.f32.xlu0 %v1454
    %v1456 = vpop.xlane.xlu0 %1455
    %v1457 = vmul.f32 %v1453, %v68
    %v1458 = vmul.f32 %v1456, %v68
    %v1459 = vadd.f32 %v1457, 1e-12
    %v1460 = vadd.f32 %v1458, 1e-12
    %v1461 = vrsqrt.pop %v1459
    %v1462 = vrsqrt.pop %v1460
    %v1463 = vmul.f32 %v1447, %v1461
    %v1464 = vmul.f32 %v1448, %v1462
    %v1466 = vlaneseq
    %v1467 = vshrl.u32 %v1466, 7
    %v1468 = vsub.s32 0, %v1467
    %v1469 = vrot.slane %v1437, %v1468
    %v1471 = vmul.f32 %v1463, %v1469
    %v1472 = vmul.f32 %v1464, %v1469
    %v1474 = vlaneseq
    %v1475 = vshrl.u32 %v1474, 7
    %v1476 = vsub.s32 0, %v1475
    %v1477 = vrot.slane %v1438, %v1476
    %v1479 = vadd.f32 %v1471, %v1477
    %v1480 = vadd.f32 %v1472, %v1477
    %s1481 = scalar_lea.vmem %s4, 32
    %v1482 = vld [vmem:[%s1481] sm:$0xff]
    %v1483 = vld [vmem:[%s1481 + $0x8] sm:$0xff]
    %v1484 = vld [vmem:[%s1481 + $0x10] sm:$0xff]
    %v1485 = vld [vmem:[%s1481 + $0x18] sm:$0xff]
    %s1486 = scalar_lea.vmem %s5, 1
    %v1487 = vld [vmem:[%s1486] sm:$0x1]
    %v1489 = vlaneseq
    %v1490 = vshrl.u32 %v1489, 7
    %v1491 = vsub.s32 0, %v1490
    %v1492 = vrot.slane %v1487, %v1491
    %v1495 = vsel %vm61, %v1479, 0
    %v1498 = vsel %vm61, %v1480, 0
    %1500 = vmatprep.subr.mxu0 0.0
    %1501 = vmatpush1.msra.mxu0 %v1482
    %1502 = vmatprep.subr.mxu0 0.0
    %1503 = vmatpush1.msra.mxu0 %v1483
    %1504 = vmatprep.subr.mxu0 0.0
    %1505 = vmatpush1.msra.mxu0 %v1484
    %1506 = vmatprep.subr.mxu0 0.0
    %1507 = vmatpush1.msra.mxu0 %v1485
    %1508 = vmatprep.subr.mxu0 0.0
    %1509 = vmatpush1.msra.mxu0 0.0
    %1510 = vmatprep.subr.mxu0 0.0
    %1511 = vmatpush1.msra.mxu0 0.0
    %1512 = vmatprep.subr.mxu0 0.0
    %1513 = vmatpush1.msra.mxu0 0.0
    %1514 = vmatprep.subr.mxu0 0.0
    %1515 = vmatpush1.msra.mxu0 0.0
    %1516 = vmatprep.subr.mxu0 0.0
    %1517 = vmatpush1.msra.mxu0 0.0
    %1518 = vmatprep.subr.mxu0 0.0
    %1519 = vmatpush1.msra.mxu0 0.0
    %1520 = vmatprep.subr.mxu0 0.0
    %1521 = vmatpush1.msra.mxu0 0.0
    %1522 = vmatprep.subr.mxu0 0.0
    %1523 = vmatpush1.msra.mxu0 0.0
    %1524 = vmatprep.subr.mxu0 0.0
    %1525 = vmatpush1.msra.mxu0 0.0
    %1526 = vmatprep.subr.mxu0 0.0
    %1527 = vmatpush1.msra.mxu0 0.0
    %1528 = vmatprep.subr.mxu0 0.0
    %1529 = vmatpush1.msra.mxu0 0.0
    %1530 = vmatprep.subr.mxu0 0.0
    %1531 = vmatpush1.msra.mxu0 0.0
    %1532 = vmatprep.subr.mxu0 0.0
    %1533 = vmatpush1.msra.mxu0 0.0
    %1534 = vmatprep.subr.mxu0 0.0
    %1535 = vmatpush1.msra.mxu0 0.0
    %1536 = vmatprep.subr.mxu0 0.0
    %1537 = vmatpush1.msra.mxu0 0.0
    %1538 = vmatprep.subr.mxu0 0.0
    %1539 = vmatpush1.msra.mxu0 0.0
    %1540 = vmatprep.subr.mxu0 0.0
    %1541 = vmatpush1.msra.mxu0 0.0
    %1542 = vmatprep.subr.mxu0 0.0
    %1543 = vmatpush1.msra.mxu0 0.0
    %1544 = vmatprep.subr.mxu0 0.0
    %1545 = vmatpush1.msra.mxu0 0.0
    %1546 = vmatprep.subr.mxu0 0.0
    %1547 = vmatpush1.msra.mxu0 0.0
    %1548 = vmatprep.subr.mxu0 0.0
    %1549 = vmatpush1.msra.mxu0 0.0
    %1550 = vmatprep.subr.mxu0 0.0
    %1551 = vmatpush1.msra.mxu0 0.0
    %1552 = vmatprep.subr.mxu0 0.0
    %1553 = vmatpush1.msra.mxu0 0.0
    %1554 = vmatprep.subr.mxu0 0.0
    %1555 = vmatpush1.msra.mxu0 0.0
    %1556 = vmatprep.subr.mxu0 0.0
    %1557 = vmatpush1.msra.mxu0 0.0
    %1558 = vmatprep.subr.mxu0 0.0
    %1559 = vmatpush1.msra.mxu0 0.0
    %1560 = vmatprep.subr.mxu0 0.0
    %1561 = vmatpush1.msra.mxu0 0.0
    %1562 = vmatprep.subr.mxu0 0.0
    %1563 = vmatpush1.msra.mxu0 0.0
    %1564 = vmatprep.mubr.f32.mxu0 0.0
    %1565 = vmatmul.mubr.f32.gmra.mrb[0].mxu0 %v1495
    %v1566 = vpop.f32.mrb[0].mxu0
    %v1567 = vadd.f32 %v1492, %v1566
    %v1568 = vpop.f32.mrb[0].mxu0
    %1569 = vmatprep.mubr.f32.mxu0 0.0
    %1570 = vmatmul.mubr.f32.gmra.mrb[0].mxu0 %v1498
    %v1571 = vpop.f32.mrb[0].mxu0
    %v1572 = vadd.f32 %v1492, %v1571
    %v1573 = vpop.f32.mrb[0].mxu0
    %1574 = vdwg.mxu0
    %s1575 = scalar_lea.vmem %s6, 32
    %v1576 = vld [vmem:[%s1575] sm:$0xff]
    %v1577 = vld [vmem:[%s1575 + $0x8] sm:$0xff]
    %v1578 = vld [vmem:[%s1575 + $0x10] sm:$0xff]
    %v1579 = vld [vmem:[%s1575 + $0x18] sm:$0xff]
    %1581 = vrot.lane.b32.xlu0 %v1567, 96
    %v1582 = vpop.permute.xlu0 %1581
    %v1583 = vsel %vm204, %v1567, 0
    %v1585 = vsel %vm204, %v1582, 0
    %1587 = vmatprep.subr.mxu0 0.0
    %1588 = vmatpush1.xpose.msra.mxu0 %v1585
    %1589 = vmatprep.subr.mxu0 0.0
    %1590 = vmatpush1.xpose.msra.mxu0 0.0
    %1591 = vmatprep.subr.mxu0 0.0
    %1592 = vmatpush1.xpose.msra.mxu0 0.0
    %1593 = vmatprep.subr.mxu0 0.0
    %1594 = vmatpush1.xpose.msra.mxu0 0.0
    %1595 = vmatprep.subr.mxu0 0.0
    %1596 = vmatpush1.xpose.msra.mxu0 0.0
    %1597 = vmatprep.subr.mxu0 0.0
    %1598 = vmatpush1.xpose.msra.mxu0 0.0
    %1599 = vmatprep.subr.mxu0 0.0
    %1600 = vmatpush1.xpose.msra.mxu0 0.0
    %1601 = vmatprep.subr.mxu0 0.0
    %1602 = vmatpush1.xpose.msra.mxu0 0.0
    %1603 = vmatprep.subr.mxu0 0.0
    %1604 = vmatpush1.xpose.msra.mxu0 0.0
    %1605 = vmatprep.subr.mxu0 0.0
    %1606 = vmatpush1.xpose.msra.mxu0 0.0
    %1607 = vmatprep.subr.mxu0 0.0
    %1608 = vmatpush1.xpose.msra.mxu0 0.0
    %1609 = vmatprep.subr.mxu0 0.0
    %1610 = vmatpush1.xpose.msra.mxu0 0.0
    %1611 = vmatprep.subr.mxu0 0.0
    %1612 = vmatpush1.xpose.msra.mxu0 0.0
    %1613 = vmatprep.subr.mxu0 0.0
    %1614 = vmatpush1.xpose.msra.mxu0 0.0
    %1615 = vmatprep.subr.mxu0 0.0
    %1616 = vmatpush1.xpose.msra.mxu0 0.0
    %1617 = vmatprep.subr.mxu0 0.0
    %1618 = vmatpush1.xpose.msra.mxu0 0.0
    %1619 = vmatprep.subr.mxu0 0.0
    %1620 = vmatpush1.xpose.msra.mxu0 0.0
    %1621 = vmatprep.subr.mxu0 0.0
    %1622 = vmatpush1.xpose.msra.mxu0 0.0
    %1623 = vmatprep.subr.mxu0 0.0
    %1624 = vmatpush1.xpose.msra.mxu0 0.0
    %1625 = vmatprep.subr.mxu0 0.0
    %1626 = vmatpush1.xpose.msra.mxu0 0.0
    %1627 = vmatprep.subr.mxu0 0.0
    %1628 = vmatpush1.xpose.msra.mxu0 0.0
    %1629 = vmatprep.subr.mxu0 0.0
    %1630 = vmatpush1.xpose.msra.mxu0 0.0
    %1631 = vmatprep.subr.mxu0 0.0
    %1632 = vmatpush1.xpose.msra.mxu0 0.0
    %1633 = vmatprep.subr.mxu0 0.0
    %1634 = vmatpush1.xpose.msra.mxu0 0.0
    %1635 = vmatprep.subr.mxu0 0.0
    %1636 = vmatpush1.xpose.msra.mxu0 0.0
    %1637 = vmatprep.subr.mxu0 0.0
    %1638 = vmatpush1.xpose.msra.mxu0 0.0
    %1639 = vmatprep.subr.mxu0 0.0
    %1640 = vmatpush1.xpose.msra.mxu0 0.0
    %1641 = vmatprep.subr.mxu0 0.0
    %1642 = vmatpush1.xpose.msra.mxu0 0.0
    %1643 = vmatprep.subr.mxu0 0.0
    %1644 = vmatpush1.xpose.msra.mxu0 0.0
    %1645 = vmatprep.subr.mxu0 0.0
    %1646 = vmatpush1.xpose.msra.mxu0 0.0
    %1647 = vmatprep.subr.mxu0 0.0
    %1648 = vmatpush1.xpose.msra.mxu0 0.0
    %1649 = vmatprep.subr.mxu0 0.0
    %1650 = vmatpush1.xpose.msra.mxu0 0.0
    %1651 = vmatprep.mubr.f32.mxu0 0.0
    %1652 = vmatmul.mubr.f32.gmra.mrb[0].mxu0 %v1583
    %v1653 = vpop.f32.mrb[0].mxu0
    %v1654 = vadd.f32 0.0, %v1653
    %v1655 = vpop.f32.mrb[0].mxu0
    %1656 = vdwg.mxu0
    %v1657 = vmul.f32 %v1654, 0.25
    %v1658 = vadd.f32 %v1657, %v283
    %v1659 = vsel %vm285, %v1658, -inf
    %1660 = vmax.xlane.f32.xlu0 %v1659
    %v1661 = vpop.xlane.xlu0 %1660
    %v1662 = vsub.f32 %v1658, %v1661
    %v1663 = vmul.f32 %v1662, 1.442695
    %v1664 = vpow.pop %v1663
    %v1665 = vsel %vm285, %v1664, 0.0
    %1666 = vadd.xlane.f32.xlu0 %v1665
    %v1667 = vpop.xlane.xlu0 %1666
    %v1668 = vrcp.pop %v1667
    %v1669 = vmul.f32 %v1664, %v1668
    %1670 = vrot.lane.b32.xlu0 %v1567, 64
    %v1671 = vpop.permute.xlu0 %1670
    %v1674 = vsel %vm285, %v1669, 0
    %1676 = vmatprep.subr.mxu0 0.0
    %1677 = vmatpush1.msra.mxu0 %v1671
    %1678 = vmatprep.subr.mxu0 0.0
    %1679 = vmatpush1.msra.mxu0 0.0
    %1680 = vmatprep.subr.mxu0 0.0
    %1681 = vmatpush1.msra.mxu0 0.0
    %1682 = vmatprep.subr.mxu0 0.0
    %1683 = vmatpush1.msra.mxu0 0.0
    %1684 = vmatprep.subr.mxu0 0.0
    %1685 = vmatpush1.msra.mxu0 0.0
    %1686 = vmatprep.subr.mxu0 0.0
    %1687 = vmatpush1.msra.mxu0 0.0
    %1688 = vmatprep.subr.mxu0 0.0
    %1689 = vmatpush1.msra.mxu0 0.0
    %1690 = vmatprep.subr.mxu0 0.0
    %1691 = vmatpush1.msra.mxu0 0.0
    %1692 = vmatprep.subr.mxu0 0.0
    %1693 = vmatpush1.msra.mxu0 0.0
    %1694 = vmatprep.subr.mxu0 0.0
    %1695 = vmatpush1.msra.mxu0 0.0
    %1696 = vmatprep.subr.mxu0 0.0
    %1697 = vmatpush1.msra.mxu0 0.0
    %1698 = vmatprep.subr.mxu0 0.0
    %1699 = vmatpush1.msra.mxu0 0.0
    %1700 = vmatprep.subr.mxu0 0.0
    %1701 = vmatpush1.msra.mxu0 0.0
    %1702 = vmatprep.subr.mxu0 0.0
    %1703 = vmatpush1.msra.mxu0 0.0
    %1704 = vmatprep.subr.mxu0 0.0
    %1705 = vmatpush1.msra.mxu0 0.0
    %1706 = vmatprep.subr.mxu0 0.0
    %1707 = vmatpush1.msra.mxu0 0.0
    %1708 = vmatprep.subr.mxu0 0.0
    %1709 = vmatpush1.msra.mxu0 0.0
    %1710 = vmatprep.subr.mxu0 0.0
    %1711 = vmatpush1.msra.mxu0 0.0
    %1712 = vmatprep.subr.mxu0 0.0
    %1713 = vmatpush1.msra.mxu0 0.0
    %1714 = vmatprep.subr.mxu0 0.0
    %1715 = vmatpush1.msra.mxu0 0.0
    %1716 = vmatprep.subr.mxu0 0.0
    %1717 = vmatpush1.msra.mxu0 0.0
    %1718 = vmatprep.subr.mxu0 0.0
    %1719 = vmatpush1.msra.mxu0 0.0
    %1720 = vmatprep.subr.mxu0 0.0
    %1721 = vmatpush1.msra.mxu0 0.0
    %1722 = vmatprep.subr.mxu0 0.0
    %1723 = vmatpush1.msra.mxu0 0.0
    %1724 = vmatprep.subr.mxu0 0.0
    %1725 = vmatpush1.msra.mxu0 0.0
    %1726 = vmatprep.subr.mxu0 0.0
    %1727 = vmatpush1.msra.mxu0 0.0
    %1728 = vmatprep.subr.mxu0 0.0
    %1729 = vmatpush1.msra.mxu0 0.0
    %1730 = vmatprep.subr.mxu0 0.0
    %1731 = vmatpush1.msra.mxu0 0.0
    %1732 = vmatprep.subr.mxu0 0.0
    %1733 = vmatpush1.msra.mxu0 0.0
    %1734 = vmatprep.subr.mxu0 0.0
    %1735 = vmatpush1.msra.mxu0 0.0
    %1736 = vmatprep.subr.mxu0 0.0
    %1737 = vmatpush1.msra.mxu0 0.0
    %1738 = vmatprep.subr.mxu0 0.0
    %1739 = vmatpush1.msra.mxu0 0.0
    %1740 = vmatprep.mubr.f32.mxu0 0.0
    %1741 = vmatmul.mubr.f32.gmra.mrb[0].mxu0 %v1674
    %v1742 = vpop.f32.mrb[0].mxu0
    %v1743 = vadd.f32 0.0, %v1742
    %v1744 = vpop.f32.mrb[0].mxu0
    %1745 = vdwg.mxu0
    %1746 = vrot.lane.b32.xlu0 %v1567, 112
    %v1747 = vpop.permute.xlu0 %1746
    %1748 = vrot.lane.b32.xlu0 %v1567, 80
    %v1749 = vpop.permute.xlu0 %1748
    %v1750 = vsel %vm204, %v1747, 0
    %v1752 = vsel %vm204, %v1749, 0
    %1754 = vmatprep.subr.mxu0 0.0
    %1755 = vmatpush1.xpose.msra.mxu0 %v1752
    %1756 = vmatprep.subr.mxu0 0.0
    %1757 = vmatpush1.xpose.msra.mxu0 0.0
    %1758 = vmatprep.subr.mxu0 0.0
    %1759 = vmatpush1.xpose.msra.mxu0 0.0
    %1760 = vmatprep.subr.mxu0 0.0
    %1761 = vmatpush1.xpose.msra.mxu0 0.0
    %1762 = vmatprep.subr.mxu0 0.0
    %1763 = vmatpush1.xpose.msra.mxu0 0.0
    %1764 = vmatprep.subr.mxu0 0.0
    %1765 = vmatpush1.xpose.msra.mxu0 0.0
    %1766 = vmatprep.subr.mxu0 0.0
    %1767 = vmatpush1.xpose.msra.mxu0 0.0
    %1768 = vmatprep.subr.mxu0 0.0
    %1769 = vmatpush1.xpose.msra.mxu0 0.0
    %1770 = vmatprep.subr.mxu0 0.0
    %1771 = vmatpush1.xpose.msra.mxu0 0.0
    %1772 = vmatprep.subr.mxu0 0.0
    %1773 = vmatpush1.xpose.msra.mxu0 0.0
    %1774 = vmatprep.subr.mxu0 0.0
    %1775 = vmatpush1.xpose.msra.mxu0 0.0
    %1776 = vmatprep.subr.mxu0 0.0
    %1777 = vmatpush1.xpose.msra.mxu0 0.0
    %1778 = vmatprep.subr.mxu0 0.0
    %1779 = vmatpush1.xpose.msra.mxu0 0.0
    %1780 = vmatprep.subr.mxu0 0.0
    %1781 = vmatpush1.xpose.msra.mxu0 0.0
    %1782 = vmatprep.subr.mxu0 0.0
    %1783 = vmatpush1.xpose.msra.mxu0 0.0
    %1784 = vmatprep.subr.mxu0 0.0
    %1785 = vmatpush1.xpose.msra.mxu0 0.0
    %1786 = vmatprep.subr.mxu0 0.0
    %1787 = vmatpush1.xpose.msra.mxu0 0.0
    %1788 = vmatprep.subr.mxu0 0.0
    %1789 = vmatpush1.xpose.msra.mxu0 0.0
    %1790 = vmatprep.subr.mxu0 0.0
    %1791 = vmatpush1.xpose.msra.mxu0 0.0
    %1792 = vmatprep.subr.mxu0 0.0
    %1793 = vmatpush1.xpose.msra.mxu0 0.0
    %1794 = vmatprep.subr.mxu0 0.0
    %1795 = vmatpush1.xpose.msra.mxu0 0.0
    %1796 = vmatprep.subr.mxu0 0.0
    %1797 = vmatpush1.xpose.msra.mxu0 0.0
    %1798 = vmatprep.subr.mxu0 0.0
    %1799 = vmatpush1.xpose.msra.mxu0 0.0
    %1800 = vmatprep.subr.mxu0 0.0
    %1801 = vmatpush1.xpose.msra.mxu0 0.0
    %1802 = vmatprep.subr.mxu0 0.0
    %1803 = vmatpush1.xpose.msra.mxu0 0.0
    %1804 = vmatprep.subr.mxu0 0.0
    %1805 = vmatpush1.xpose.msra.mxu0 0.0
    %1806 = vmatprep.subr.mxu0 0.0
    %1807 = vmatpush1.xpose.msra.mxu0 0.0
    %1808 = vmatprep.subr.mxu0 0.0
    %1809 = vmatpush1.xpose.msra.mxu0 0.0
    %1810 = vmatprep.subr.mxu0 0.0
    %1811 = vmatpush1.xpose.msra.mxu0 0.0
    %1812 = vmatprep.subr.mxu0 0.0
    %1813 = vmatpush1.xpose.msra.mxu0 0.0
    %1814 = vmatprep.subr.mxu0 0.0
    %1815 = vmatpush1.xpose.msra.mxu0 0.0
    %1816 = vmatprep.subr.mxu0 0.0
    %1817 = vmatpush1.xpose.msra.mxu0 0.0
    %1818 = vmatprep.mubr.f32.mxu0 0.0
    %1819 = vmatmul.mubr.f32.gmra.mrb[0].mxu0 %v1750
    %v1820 = vpop.f32.mrb[0].mxu0
    %v1821 = vadd.f32 0.0, %v1820
    %v1822 = vpop.f32.mrb[0].mxu0
    %1823 = vdwg.mxu0
    %v1824 = vmul.f32 %v1821, 0.25
    %v1825 = vadd.f32 %v1824, %v283
    %v1826 = vsel %vm285, %v1825, -inf
    %1827 = vmax.xlane.f32.xlu0 %v1826
    %v1828 = vpop.xlane.xlu0 %1827
    %v1829 = vsub.f32 %v1825, %v1828
    %v1830 = vmul.f32 %v1829, 1.442695
    %v1831 = vpow.pop %v1830
    %v1832 = vsel %vm285, %v1831, 0.0
    %1833 = vadd.xlane.f32.xlu0 %v1832
    %v1834 = vpop.xlane.xlu0 %1833
    %v1835 = vrcp.pop %v1834
    %v1836 = vmul.f32 %v1831, %v1835
    %1837 = vrot.lane.b32.xlu0 %v1567, 48
    %v1838 = vpop.permute.xlu0 %1837
    %v1841 = vsel %vm285, %v1836, 0
    %1843 = vmatprep.subr.mxu0 0.0
    %1844 = vmatpush1.msra.mxu0 %v1838
    %1845 = vmatprep.subr.mxu0 0.0
    %1846 = vmatpush1.msra.mxu0 0.0
    %1847 = vmatprep.subr.mxu0 0.0
    %1848 = vmatpush1.msra.mxu0 0.0
    %1849 = vmatprep.subr.mxu0 0.0
    %1850 = vmatpush1.msra.mxu0 0.0
    %1851 = vmatprep.subr.mxu0 0.0
    %1852 = vmatpush1.msra.mxu0 0.0
    %1853 = vmatprep.subr.mxu0 0.0
    %1854 = vmatpush1.msra.mxu0 0.0
    %1855 = vmatprep.subr.mxu0 0.0
    %1856 = vmatpush1.msra.mxu0 0.0
    %1857 = vmatprep.subr.mxu0 0.0
    %1858 = vmatpush1.msra.mxu0 0.0
    %1859 = vmatprep.subr.mxu0 0.0
    %1860 = vmatpush1.msra.mxu0 0.0
    %1861 = vmatprep.subr.mxu0 0.0
    %1862 = vmatpush1.msra.mxu0 0.0
    %1863 = vmatprep.subr.mxu0 0.0
    %1864 = vmatpush1.msra.mxu0 0.0
    %1865 = vmatprep.subr.mxu0 0.0
    %1866 = vmatpush1.msra.mxu0 0.0
    %1867 = vmatprep.subr.mxu0 0.0
    %1868 = vmatpush1.msra.mxu0 0.0
    %1869 = vmatprep.subr.mxu0 0.0
    %1870 = vmatpush1.msra.mxu0 0.0
    %1871 = vmatprep.subr.mxu0 0.0
    %1872 = vmatpush1.msra.mxu0 0.0
    %1873 = vmatprep.subr.mxu0 0.0
    %1874 = vmatpush1.msra.mxu0 0.0
    %1875 = vmatprep.subr.mxu0 0.0
    %1876 = vmatpush1.msra.mxu0 0.0
    %1877 = vmatprep.subr.mxu0 0.0
    %1878 = vmatpush1.msra.mxu0 0.0
    %1879 = vmatprep.subr.mxu0 0.0
    %1880 = vmatpush1.msra.mxu0 0.0
    %1881 = vmatprep.subr.mxu0 0.0
    %1882 = vmatpush1.msra.mxu0 0.0
    %1883 = vmatprep.subr.mxu0 0.0
    %1884 = vmatpush1.msra.mxu0 0.0
    %1885 = vmatprep.subr.mxu0 0.0
    %1886 = vmatpush1.msra.mxu0 0.0
    %1887 = vmatprep.subr.mxu0 0.0
    %1888 = vmatpush1.msra.mxu0 0.0
    %1889 = vmatprep.subr.mxu0 0.0
    %1890 = vmatpush1.msra.mxu0 0.0
    %1891 = vmatprep.subr.mxu0 0.0
    %1892 = vmatpush1.msra.mxu0 0.0
    %1893 = vmatprep.subr.mxu0 0.0
    %1894 = vmatpush1.msra.mxu0 0.0
    %1895 = vmatprep.subr.mxu0 0.0
    %1896 = vmatpush1.msra.mxu0 0.0
    %1897 = vmatprep.subr.mxu0 0.0
    %1898 = vmatpush1.msra.mxu0 0.0
    %1899 = vmatprep.subr.mxu0 0.0
    %1900 = vmatpush1.msra.mxu0 0.0
    %1901 = vmatprep.subr.mxu0 0.0
    %1902 = vmatpush1.msra.mxu0 0.0
    %1903 = vmatprep.subr.mxu0 0.0
    %1904 = vmatpush1.msra.mxu0 0.0
    %1905 = vmatprep.subr.mxu0 0.0
    %1906 = vmatpush1.msra.mxu0 0.0
    %1907 = vmatprep.mubr.f32.mxu0 0.0
    %1908 = vmatmul.mubr.f32.gmra.mrb[0].mxu0 %v1841
    %v1909 = vpop.f32.mrb[0].mxu0
    %v1910 = vadd.f32 0.0, %v1909
    %v1911 = vpop.f32.mrb[0].mxu0
    %1912 = vdwg.mxu0
    %v1914 = vsel %vm204, %v1910, 0
    %1916 = vmatprep.subr.mxu0 0.0
    %1917 = vmatpush1.msra.mxu0 %v1578
    %1918 = vmatprep.subr.mxu0 0.0
    %1919 = vmatpush1.msra.mxu0 %v1579
    %1920 = vmatprep.subr.mxu0 0.0
    %1921 = vmatpush1.msra.mxu0 0.0
    %1922 = vmatprep.subr.mxu0 0.0
    %1923 = vmatpush1.msra.mxu0 0.0
    %1924 = vmatprep.subr.mxu0 0.0
    %1925 = vmatpush1.msra.mxu0 0.0
    %1926 = vmatprep.subr.mxu0 0.0
    %1927 = vmatpush1.msra.mxu0 0.0
    %1928 = vmatprep.subr.mxu0 0.0
    %1929 = vmatpush1.msra.mxu0 0.0
    %1930 = vmatprep.subr.mxu0 0.0
    %1931 = vmatpush1.msra.mxu0 0.0
    %1932 = vmatprep.subr.mxu0 0.0
    %1933 = vmatpush1.msra.mxu0 0.0
    %1934 = vmatprep.subr.mxu0 0.0
    %1935 = vmatpush1.msra.mxu0 0.0
    %1936 = vmatprep.subr.mxu0 0.0
    %1937 = vmatpush1.msra.mxu0 0.0
    %1938 = vmatprep.subr.mxu0 0.0
    %1939 = vmatpush1.msra.mxu0 0.0
    %1940 = vmatprep.subr.mxu0 0.0
    %1941 = vmatpush1.msra.mxu0 0.0
    %1942 = vmatprep.subr.mxu0 0.0
    %1943 = vmatpush1.msra.mxu0 0.0
    %1944 = vmatprep.subr.mxu0 0.0
    %1945 = vmatpush1.msra.mxu0 0.0
    %1946 = vmatprep.subr.mxu0 0.0
    %1947 = vmatpush1.msra.mxu0 0.0
    %1948 = vmatprep.subr.mxu0 0.0
    %1949 = vmatpush1.msra.mxu0 0.0
    %1950 = vmatprep.subr.mxu0 0.0
    %1951 = vmatpush1.msra.mxu0 0.0
    %1952 = vmatprep.subr.mxu0 0.0
    %1953 = vmatpush1.msra.mxu0 0.0
    %1954 = vmatprep.subr.mxu0 0.0
    %1955 = vmatpush1.msra.mxu0 0.0
    %1956 = vmatprep.subr.mxu0 0.0
    %1957 = vmatpush1.msra.mxu0 0.0
    %1958 = vmatprep.subr.mxu0 0.0
    %1959 = vmatpush1.msra.mxu0 0.0
    %1960 = vmatprep.subr.mxu0 0.0
    %1961 = vmatpush1.msra.mxu0 0.0
    %1962 = vmatprep.subr.mxu0 0.0
    %1963 = vmatpush1.msra.mxu0 0.0
    %1964 = vmatprep.subr.mxu0 0.0
    %1965 = vmatpush1.msra.mxu0 0.0
    %1966 = vmatprep.subr.mxu0 0.0
    %1967 = vmatpush1.msra.mxu0 0.0
    %1968 = vmatprep.subr.mxu0 0.0
    %1969 = vmatpush1.msra.mxu0 0.0
    %1970 = vmatprep.subr.mxu0 0.0
    %1971 = vmatpush1.msra.mxu0 0.0
    %1972 = vmatprep.subr.mxu0 0.0
    %1973 = vmatpush1.msra.mxu0 0.0
    %1974 = vmatprep.subr.mxu0 0.0
    %1975 = vmatpush1.msra.mxu0 0.0
    %1976 = vmatprep.subr.mxu0 0.0
    %1977 = vmatpush1.msra.mxu0 0.0
    %1978 = vmatprep.subr.mxu0 0.0
    %1979 = vmatpush1.msra.mxu0 0.0
    %1980 = vmatprep.mubr.f32.mxu0 0.0
    %1981 = vmatmul.mubr.f32.gmra.mrb[0].mxu0 %v1914
    %v1982 = vpop.f32.mrb[0].mxu0
    %v1983 = vadd.f32 0.0, %v1982
    %v1984 = vpop.f32.mrb[0].mxu0
    %1985 = vdwg.mxu0
    %v1987 = vsel %vm204, %v1743, 0
    %1989 = vmatprep.subr.mxu0 0.0
    %1990 = vmatpush1.msra.mxu0 %v1576
    %1991 = vmatprep.subr.mxu0 0.0
    %1992 = vmatpush1.msra.mxu0 %v1577
    %1993 = vmatprep.subr.mxu0 0.0
    %1994 = vmatpush1.msra.mxu0 0.0
    %1995 = vmatprep.subr.mxu0 0.0
    %1996 = vmatpush1.msra.mxu0 0.0
    %1997 = vmatprep.subr.mxu0 0.0
    %1998 = vmatpush1.msra.mxu0 0.0
    %1999 = vmatprep.subr.mxu0 0.0
    %2000 = vmatpush1.msra.mxu0 0.0
    %2001 = vmatprep.subr.mxu0 0.0
    %2002 = vmatpush1.msra.mxu0 0.0
    %2003 = vmatprep.subr.mxu0 0.0
    %2004 = vmatpush1.msra.mxu0 0.0
    %2005 = vmatprep.subr.mxu0 0.0
    %2006 = vmatpush1.msra.mxu0 0.0
    %2007 = vmatprep.subr.mxu0 0.0
    %2008 = vmatpush1.msra.mxu0 0.0
    %2009 = vmatprep.subr.mxu0 0.0
    %2010 = vmatpush1.msra.mxu0 0.0
    %2011 = vmatprep.subr.mxu0 0.0
    %2012 = vmatpush1.msra.mxu0 0.0
    %2013 = vmatprep.subr.mxu0 0.0
    %2014 = vmatpush1.msra.mxu0 0.0
    %2015 = vmatprep.subr.mxu0 0.0
    %2016 = vmatpush1.msra.mxu0 0.0
    %2017 = vmatprep.subr.mxu0 0.0
    %2018 = vmatpush1.msra.mxu0 0.0
    %2019 = vmatprep.subr.mxu0 0.0
    %2020 = vmatpush1.msra.mxu0 0.0
    %2021 = vmatprep.subr.mxu0 0.0
    %2022 = vmatpush1.msra.mxu0 0.0
    %2023 = vmatprep.subr.mxu0 0.0
    %2024 = vmatpush1.msra.mxu0 0.0
    %2025 = vmatprep.subr.mxu0 0.0
    %2026 = vmatpush1.msra.mxu0 0.0
    %2027 = vmatprep.subr.mxu0 0.0
    %2028 = vmatpush1.msra.mxu0 0.0
    %2029 = vmatprep.subr.mxu0 0.0
    %2030 = vmatpush1.msra.mxu0 0.0
    %2031 = vmatprep.subr.mxu0 0.0
    %2032 = vmatpush1.msra.mxu0 0.0
    %2033 = vmatprep.subr.mxu0 0.0
    %2034 = vmatpush1.msra.mxu0 0.0
    %2035 = vmatprep.subr.mxu0 0.0
    %2036 = vmatpush1.msra.mxu0 0.0
    %2037 = vmatprep.subr.mxu0 0.0
    %2038 = vmatpush1.msra.mxu0 0.0
    %2039 = vmatprep.subr.mxu0 0.0
    %2040 = vmatpush1.msra.mxu0 0.0
    %2041 = vmatprep.subr.mxu0 0.0
    %2042 = vmatpush1.msra.mxu0 0.0
    %2043 = vmatprep.subr.mxu0 0.0
    %2044 = vmatpush1.msra.mxu0 0.0
    %2045 = vmatprep.subr.mxu0 0.0
    %2046 = vmatpush1.msra.mxu0 0.0
    %2047 = vmatprep.subr.mxu0 0.0
    %2048 = vmatpush1.msra.mxu0 0.0
    %2049 = vmatprep.subr.mxu0 0.0
    %2050 = vmatpush1.msra.mxu0 0.0
    %2051 = vmatprep.subr.mxu0 0.0
    %2052 = vmatpush1.msra.mxu0 0.0
    %2053 = vmatprep.mubr.f32.mxu0 0.0
    %2054 = vmatmul.mubr.f32.gmra.mrb[0].mxu0 %v1987
    %v2055 = vpop.f32.mrb[0].mxu0
    %v2056 = vadd.f32 %v1983, %v2055
    %v2057 = vpop.f32.mrb[0].mxu0
    %2058 = vdwg.mxu0
    %2059 = vst.msk [vmem:[#allocation2] sm:$0xff] %vm61, %v2056
    %2061 = vrot.lane.b32.xlu0 %v1572, 96
    %v2062 = vpop.permute.xlu0 %2061
    %v2063 = vsel %vm204, %v1572, 0
    %v2065 = vsel %vm204, %v2062, 0
    %2067 = vmatprep.subr.mxu0 0.0
    %2068 = vmatpush1.xpose.msra.mxu0 %v2065
    %2069 = vmatprep.subr.mxu0 0.0
    %2070 = vmatpush1.xpose.msra.mxu0 0.0
    %2071 = vmatprep.subr.mxu0 0.0
    %2072 = vmatpush1.xpose.msra.mxu0 0.0
    %2073 = vmatprep.subr.mxu0 0.0
    %2074 = vmatpush1.xpose.msra.mxu0 0.0
    %2075 = vmatprep.subr.mxu0 0.0
    %2076 = vmatpush1.xpose.msra.mxu0 0.0
    %2077 = vmatprep.subr.mxu0 0.0
    %2078 = vmatpush1.xpose.msra.mxu0 0.0
    %2079 = vmatprep.subr.mxu0 0.0
    %2080 = vmatpush1.xpose.msra.mxu0 0.0
    %2081 = vmatprep.subr.mxu0 0.0
    %2082 = vmatpush1.xpose.msra.mxu0 0.0
    %2083 = vmatprep.subr.mxu0 0.0
    %2084 = vmatpush1.xpose.msra.mxu0 0.0
    %2085 = vmatprep.subr.mxu0 0.0
    %2086 = vmatpush1.xpose.msra.mxu0 0.0
    %2087 = vmatprep.subr.mxu0 0.0
    %2088 = vmatpush1.xpose.msra.mxu0 0.0
    %2089 = vmatprep.subr.mxu0 0.0
    %2090 = vmatpush1.xpose.msra.mxu0 0.0
    %2091 = vmatprep.subr.mxu0 0.0
    %2092 = vmatpush1.xpose.msra.mxu0 0.0
    %2093 = vmatprep.subr.mxu0 0.0
    %2094 = vmatpush1.xpose.msra.mxu0 0.0
    %2095 = vmatprep.subr.mxu0 0.0
    %2096 = vmatpush1.xpose.msra.mxu0 0.0
    %2097 = vmatprep.subr.mxu0 0.0
    %2098 = vmatpush1.xpose.msra.mxu0 0.0
    %2099 = vmatprep.subr.mxu0 0.0
    %2100 = vmatpush1.xpose.msra.mxu0 0.0
    %2101 = vmatprep.subr.mxu0 0.0
    %2102 = vmatpush1.xpose.msra.mxu0 0.0
    %2103 = vmatprep.subr.mxu0 0.0
    %2104 = vmatpush1.xpose.msra.mxu0 0.0
    %2105 = vmatprep.subr.mxu0 0.0
    %2106 = vmatpush1.xpose.msra.mxu0 0.0
    %2107 = vmatprep.subr.mxu0 0.0
    %2108 = vmatpush1.xpose.msra.mxu0 0.0
    %2109 = vmatprep.subr.mxu0 0.0
    %2110 = vmatpush1.xpose.msra.mxu0 0.0
    %2111 = vmatprep.subr.mxu0 0.0
    %2112 = vmatpush1.xpose.msra.mxu0 0.0
    %2113 = vmatprep.subr.mxu0 0.0
    %2114 = vmatpush1.xpose.msra.mxu0 0.0
    %2115 = vmatprep.subr.mxu0 0.0
    %2116 = vmatpush1.xpose.msra.mxu0 0.0
    %2117 = vmatprep.subr.mxu0 0.0
    %2118 = vmatpush1.xpose.msra.mxu0 0.0
    %2119 = vmatprep.subr.mxu0 0.0
    %2120 = vmatpush1.xpose.msra.mxu0 0.0
    %2121 = vmatprep.subr.mxu0 0.0
    %2122 = vmatpush1.xpose.msra.mxu0 0.0
    %2123 = vmatprep.subr.mxu0 0.0
    %2124 = vmatpush1.xpose.msra.mxu0 0.0
    %2125 = vmatprep.subr.mxu0 0.0
    %2126 = vmatpush1.xpose.msra.mxu0 0.0
    %2127 = vmatprep.subr.mxu0 0.0
    %2128 = vmatpush1.xpose.msra.mxu0 0.0
    %2129 = vmatprep.subr.mxu0 0.0
    %2130 = vmatpush1.xpose.msra.mxu0 0.0
    %2131 = vmatprep.mubr.f32.mxu0 0.0
    %2132 = vmatmul.mubr.f32.gmra.mrb[0].mxu0 %v2063
    %v2133 = vpop.f32.mrb[0].mxu0
    %v2134 = vadd.f32 0.0, %v2133
    %v2135 = vpop.f32.mrb[0].mxu0
    %2136 = vdwg.mxu0
    %v2137 = vmul.f32 %v2134, 0.25
    %v2138 = vadd.f32 %v2137, %v768
    %v2139 = vsel %vm285, %v2138, -inf
    %2140 = vmax.xlane.f32.xlu0 %v2139
    %v2141 = vpop.xlane.xlu0 %2140
    %v2142 = vsub.f32 %v2138, %v2141
    %v2143 = vmul.f32 %v2142, 1.442695
    %v2144 = vpow.pop %v2143
    %v2145 = vsel %vm285, %v2144, 0.0
    %2146 = vadd.xlane.f32.xlu0 %v2145
    %v2147 = vpop.xlane.xlu0 %2146
    %v2148 = vrcp.pop %v2147
    %v2149 = vmul.f32 %v2144, %v2148
    %2150 = vrot.lane.b32.xlu0 %v1572, 64
    %v2151 = vpop.permute.xlu0 %2150
    %v2154 = vsel %vm285, %v2149, 0
    %2156 = vmatprep.subr.mxu0 0.0
    %2157 = vmatpush1.msra.mxu0 %v2151
    %2158 = vmatprep.subr.mxu0 0.0
    %2159 = vmatpush1.msra.mxu0 0.0
    %2160 = vmatprep.subr.mxu0 0.0
    %2161 = vmatpush1.msra.mxu0 0.0
    %2162 = vmatprep.subr.mxu0 0.0
    %2163 = vmatpush1.msra.mxu0 0.0
    %2164 = vmatprep.subr.mxu0 0.0
    %2165 = vmatpush1.msra.mxu0 0.0
    %2166 = vmatprep.subr.mxu0 0.0
    %2167 = vmatpush1.msra.mxu0 0.0
    %2168 = vmatprep.subr.mxu0 0.0
    %2169 = vmatpush1.msra.mxu0 0.0
    %2170 = vmatprep.subr.mxu0 0.0
    %2171 = vmatpush1.msra.mxu0 0.0
    %2172 = vmatprep.subr.mxu0 0.0
    %2173 = vmatpush1.msra.mxu0 0.0
    %2174 = vmatprep.subr.mxu0 0.0
    %2175 = vmatpush1.msra.mxu0 0.0
    %2176 = vmatprep.subr.mxu0 0.0
    %2177 = vmatpush1.msra.mxu0 0.0
    %2178 = vmatprep.subr.mxu0 0.0
    %2179 = vmatpush1.msra.mxu0 0.0
    %2180 = vmatprep.subr.mxu0 0.0
    %2181 = vmatpush1.msra.mxu0 0.0
    %2182 = vmatprep.subr.mxu0 0.0
    %2183 = vmatpush1.msra.mxu0 0.0
    %2184 = vmatprep.subr.mxu0 0.0
    %2185 = vmatpush1.msra.mxu0 0.0
    %2186 = vmatprep.subr.mxu0 0.0
    %2187 = vmatpush1.msra.mxu0 0.0
    %2188 = vmatprep.subr.mxu0 0.0
    %2189 = vmatpush1.msra.mxu0 0.0
    %2190 = vmatprep.subr.mxu0 0.0
    %2191 = vmatpush1.msra.mxu0 0.0
    %2192 = vmatprep.subr.mxu0 0.0
    %2193 = vmatpush1.msra.mxu0 0.0
    %2194 = vmatprep.subr.mxu0 0.0
    %2195 = vmatpush1.msra.mxu0 0.0
    %2196 = vmatprep.subr.mxu0 0.0
    %2197 = vmatpush1.msra.mxu0 0.0
    %2198 = vmatprep.subr.mxu0 0.0
    %2199 = vmatpush1.msra.mxu0 0.0
    %2200 = vmatprep.subr.mxu0 0.0
    %2201 = vmatpush1.msra.mxu0 0.0
    %2202 = vmatprep.subr.mxu0 0.0
    %2203 = vmatpush1.msra.mxu0 0.0
    %2204 = vmatprep.subr.mxu0 0.0
    %2205 = vmatpush1.msra.mxu0 0.0
    %2206 = vmatprep.subr.mxu0 0.0
    %2207 = vmatpush1.msra.mxu0 0.0
    %2208 = vmatprep.subr.mxu0 0.0
    %2209 = vmatpush1.msra.mxu0 0.0
    %2210 = vmatprep.subr.mxu0 0.0
    %2211 = vmatpush1.msra.mxu0 0.0
    %2212 = vmatprep.subr.mxu0 0.0
    %2213 = vmatpush1.msra.mxu0 0.0
    %2214 = vmatprep.subr.mxu0 0.0
    %2215 = vmatpush1.msra.mxu0 0.0
    %2216 = vmatprep.subr.mxu0 0.0
    %2217 = vmatpush1.msra.mxu0 0.0
    %2218 = vmatprep.subr.mxu0 0.0
    %2219 = vmatpush1.msra.mxu0 0.0
    %2220 = vmatprep.mubr.f32.mxu0 0.0
    %2221 = vmatmul.mubr.f32.gmra.mrb[0].mxu0 %v2154
    %v2222 = vpop.f32.mrb[0].mxu0
    %v2223 = vadd.f32 0.0, %v2222
    %v2224 = vpop.f32.mrb[0].mxu0
    %2225 = vdwg.mxu0
    %2226 = vrot.lane.b32.xlu0 %v1572, 112
    %v2227 = vpop.permute.xlu0 %2226
    %2228 = vrot.lane.b32.xlu0 %v1572, 80
    %v2229 = vpop.permute.xlu0 %2228
    %v2230 = vsel %vm204, %v2227, 0
    %v2232 = vsel %vm204, %v2229, 0
    %2234 = vmatprep.subr.mxu0 0.0
    %2235 = vmatpush1.xpose.msra.mxu0 %v2232
    %2236 = vmatprep.subr.mxu0 0.0
    %2237 = vmatpush1.xpose.msra.mxu0 0.0
    %2238 = vmatprep.subr.mxu0 0.0
    %2239 = vmatpush1.xpose.msra.mxu0 0.0
    %2240 = vmatprep.subr.mxu0 0.0
    %2241 = vmatpush1.xpose.msra.mxu0 0.0
    %2242 = vmatprep.subr.mxu0 0.0
    %2243 = vmatpush1.xpose.msra.mxu0 0.0
    %2244 = vmatprep.subr.mxu0 0.0
    %2245 = vmatpush1.xpose.msra.mxu0 0.0
    %2246 = vmatprep.subr.mxu0 0.0
    %2247 = vmatpush1.xpose.msra.mxu0 0.0
    %2248 = vmatprep.subr.mxu0 0.0
    %2249 = vmatpush1.xpose.msra.mxu0 0.0
    %2250 = vmatprep.subr.mxu0 0.0
    %2251 = vmatpush1.xpose.msra.mxu0 0.0
    %2252 = vmatprep.subr.mxu0 0.0
    %2253 = vmatpush1.xpose.msra.mxu0 0.0
    %2254 = vmatprep.subr.mxu0 0.0
    %2255 = vmatpush1.xpose.msra.mxu0 0.0
    %2256 = vmatprep.subr.mxu0 0.0
    %2257 = vmatpush1.xpose.msra.mxu0 0.0
    %2258 = vmatprep.subr.mxu0 0.0
    %2259 = vmatpush1.xpose.msra.mxu0 0.0
    %2260 = vmatprep.subr.mxu0 0.0
    %2261 = vmatpush1.xpose.msra.mxu0 0.0
    %2262 = vmatprep.subr.mxu0 0.0
    %2263 = vmatpush1.xpose.msra.mxu0 0.0
    %2264 = vmatprep.subr.mxu0 0.0
    %2265 = vmatpush1.xpose.msra.mxu0 0.0
    %2266 = vmatprep.subr.mxu0 0.0
    %2267 = vmatpush1.xpose.msra.mxu0 0.0
    %2268 = vmatprep.subr.mxu0 0.0
    %2269 = vmatpush1.xpose.msra.mxu0 0.0
    %2270 = vmatprep.subr.mxu0 0.0
    %2271 = vmatpush1.xpose.msra.mxu0 0.0
    %2272 = vmatprep.subr.mxu0 0.0
    %2273 = vmatpush1.xpose.msra.mxu0 0.0
    %2274 = vmatprep.subr.mxu0 0.0
    %2275 = vmatpush1.xpose.msra.mxu0 0.0
    %2276 = vmatprep.subr.mxu0 0.0
    %2277 = vmatpush1.xpose.msra.mxu0 0.0
    %2278 = vmatprep.subr.mxu0 0.0
    %2279 = vmatpush1.xpose.msra.mxu0 0.0
    %2280 = vmatprep.subr.mxu0 0.0
    %2281 = vmatpush1.xpose.msra.mxu0 0.0
    %2282 = vmatprep.subr.mxu0 0.0
    %2283 = vmatpush1.xpose.msra.mxu0 0.0
    %2284 = vmatprep.subr.mxu0 0.0
    %2285 = vmatpush1.xpose.msra.mxu0 0.0
    %2286 = vmatprep.subr.mxu0 0.0
    %2287 = vmatpush1.xpose.msra.mxu0 0.0
    %2288 = vmatprep.subr.mxu0 0.0
    %2289 = vmatpush1.xpose.msra.mxu0 0.0
    %2290 = vmatprep.subr.mxu0 0.0
    %2291 = vmatpush1.xpose.msra.mxu0 0.0
    %2292 = vmatprep.subr.mxu0 0.0
    %2293 = vmatpush1.xpose.msra.mxu0 0.0
    %2294 = vmatprep.subr.mxu0 0.0
    %2295 = vmatpush1.xpose.msra.mxu0 0.0
    %2296 = vmatprep.subr.mxu0 0.0
    %2297 = vmatpush1.xpose.msra.mxu0 0.0
    %2298 = vmatprep.mubr.f32.mxu0 0.0
    %2299 = vmatmul.mubr.f32.gmra.mrb[0].mxu0 %v2230
    %v2300 = vpop.f32.mrb[0].mxu0
    %v2301 = vadd.f32 0.0, %v2300
    %v2302 = vpop.f32.mrb[0].mxu0
    %2303 = vdwg.mxu0
    %v2304 = vmul.f32 %v2301, 0.25
    %v2305 = vadd.f32 %v2304, %v768
    %v2306 = vsel %vm285, %v2305, -inf
    %2307 = vmax.xlane.f32.xlu0 %v2306
    %v2308 = vpop.xlane.xlu0 %2307
    %v2309 = vsub.f32 %v2305, %v2308
    %v2310 = vmul.f32 %v2309, 1.442695
    %v2311 = vpow.pop %v2310
    %v2312 = vsel %vm285, %v2311, 0.0
    %2313 = vadd.xlane.f32.xlu0 %v2312
    %v2314 = vpop.xlane.xlu0 %2313
    %v2315 = vrcp.pop %v2314
    %v2316 = vmul.f32 %v2311, %v2315
    %2317 = vrot.lane.b32.xlu0 %v1572, 48
    %v2318 = vpop.permute.xlu0 %2317
    %v2321 = vsel %vm285, %v2316, 0
    %2323 = vmatprep.subr.mxu0 0.0
    %2324 = vmatpush1.msra.mxu0 %v2318
    %2325 = vmatprep.subr.mxu0 0.0
    %2326 = vmatpush1.msra.mxu0 0.0
    %2327 = vmatprep.subr.mxu0 0.0
    %2328 = vmatpush1.msra.mxu0 0.0
    %2329 = vmatprep.subr.mxu0 0.0
    %2330 = vmatpush1.msra.mxu0 0.0
    %2331 = vmatprep.subr.mxu0 0.0
    %2332 = vmatpush1.msra.mxu0 0.0
    %2333 = vmatprep.subr.mxu0 0.0
    %2334 = vmatpush1.msra.mxu0 0.0
    %2335 = vmatprep.subr.mxu0 0.0
    %2336 = vmatpush1.msra.mxu0 0.0
    %2337 = vmatprep.subr.mxu0 0.0
    %2338 = vmatpush1.msra.mxu0 0.0
    %2339 = vmatprep.subr.mxu0 0.0
    %2340 = vmatpush1.msra.mxu0 0.0
    %2341 = vmatprep.subr.mxu0 0.0
    %2342 = vmatpush1.msra.mxu0 0.0
    %2343 = vmatprep.subr.mxu0 0.0
    %2344 = vmatpush1.msra.mxu0 0.0
    %2345 = vmatprep.subr.mxu0 0.0
    %2346 = vmatpush1.msra.mxu0 0.0
    %2347 = vmatprep.subr.mxu0 0.0
    %2348 = vmatpush1.msra.mxu0 0.0
    %2349 = vmatprep.subr.mxu0 0.0
    %2350 = vmatpush1.msra.mxu0 0.0
    %2351 = vmatprep.subr.mxu0 0.0
    %2352 = vmatpush1.msra.mxu0 0.0
    %2353 = vmatprep.subr.mxu0 0.0
    %2354 = vmatpush1.msra.mxu0 0.0
    %2355 = vmatprep.subr.mxu0 0.0
    %2356 = vmatpush1.msra.mxu0 0.0
    %2357 = vmatprep.subr.mxu0 0.0
    %2358 = vmatpush1.msra.mxu0 0.0
    %2359 = vmatprep.subr.mxu0 0.0
    %2360 = vmatpush1.msra.mxu0 0.0
    %2361 = vmatprep.subr.mxu0 0.0
    %2362 = vmatpush1.msra.mxu0 0.0
    %2363 = vmatprep.subr.mxu0 0.0
    %2364 = vmatpush1.msra.mxu0 0.0
    %2365 = vmatprep.subr.mxu0 0.0
    %2366 = vmatpush1.msra.mxu0 0.0
    %2367 = vmatprep.subr.mxu0 0.0
    %2368 = vmatpush1.msra.mxu0 0.0
    %2369 = vmatprep.subr.mxu0 0.0
    %2370 = vmatpush1.msra.mxu0 0.0
    %2371 = vmatprep.subr.mxu0 0.0
    %2372 = vmatpush1.msra.mxu0 0.0
    %2373 = vmatprep.subr.mxu0 0.0
    %2374 = vmatpush1.msra.mxu0 0.0
    %2375 = vmatprep.subr.mxu0 0.0
    %2376 = vmatpush1.msra.mxu0 0.0
    %2377 = vmatprep.subr.mxu0 0.0
    %2378 = vmatpush1.msra.mxu0 0.0
    %2379 = vmatprep.subr.mxu0 0.0
    %2380 = vmatpush1.msra.mxu0 0.0
    %2381 = vmatprep.subr.mxu0 0.0
    %2382 = vmatpush1.msra.mxu0 0.0
    %2383 = vmatprep.subr.mxu0 0.0
    %2384 = vmatpush1.msra.mxu0 0.0
    %2385 = vmatprep.subr.mxu0 0.0
    %2386 = vmatpush1.msra.mxu0 0.0
    %2387 = vmatprep.mubr.f32.mxu0 0.0
    %2388 = vmatmul.mubr.f32.gmra.mrb[0].mxu0 %v2321
    %v2389 = vpop.f32.mrb[0].mxu0
    %v2390 = vadd.f32 0.0, %v2389
    %v2391 = vpop.f32.mrb[0].mxu0
    %2392 = vdwg.mxu0
    %v2394 = vsel %vm204, %v2390, 0
    %2396 = vmatprep.subr.mxu0 0.0
    %2397 = vmatpush1.msra.mxu0 %v1578
    %2398 = vmatprep.subr.mxu0 0.0
    %2399 = vmatpush1.msra.mxu0 %v1579
    %2400 = vmatprep.subr.mxu0 0.0
    %2401 = vmatpush1.msra.mxu0 0.0
    %2402 = vmatprep.subr.mxu0 0.0
    %2403 = vmatpush1.msra.mxu0 0.0
    %2404 = vmatprep.subr.mxu0 0.0
    %2405 = vmatpush1.msra.mxu0 0.0
    %2406 = vmatprep.subr.mxu0 0.0
    %2407 = vmatpush1.msra.mxu0 0.0
    %2408 = vmatprep.subr.mxu0 0.0
    %2409 = vmatpush1.msra.mxu0 0.0
    %2410 = vmatprep.subr.mxu0 0.0
    %2411 = vmatpush1.msra.mxu0 0.0
    %2412 = vmatprep.subr.mxu0 0.0
    %2413 = vmatpush1.msra.mxu0 0.0
    %2414 = vmatprep.subr.mxu0 0.0
    %2415 = vmatpush1.msra.mxu0 0.0
    %2416 = vmatprep.subr.mxu0 0.0
    %2417 = vmatpush1.msra.mxu0 0.0
    %2418 = vmatprep.subr.mxu0 0.0
    %2419 = vmatpush1.msra.mxu0 0.0
    %2420 = vmatprep.subr.mxu0 0.0
    %2421 = vmatpush1.msra.mxu0 0.0
    %2422 = vmatprep.subr.mxu0 0.0
    %2423 = vmatpush1.msra.mxu0 0.0
    %2424 = vmatprep.subr.mxu0 0.0
    %2425 = vmatpush1.msra.mxu0 0.0
    %2426 = vmatprep.subr.mxu0 0.0
    %2427 = vmatpush1.msra.mxu0 0.0
    %2428 = vmatprep.subr.mxu0 0.0
    %2429 = vmatpush1.msra.mxu0 0.0
    %2430 = vmatprep.subr.mxu0 0.0
    %2431 = vmatpush1.msra.mxu0 0.0
    %2432 = vmatprep.subr.mxu0 0.0
    %2433 = vmatpush1.msra.mxu0 0.0
    %2434 = vmatprep.subr.mxu0 0.0
    %2435 = vmatpush1.msra.mxu0 0.0
    %2436 = vmatprep.subr.mxu0 0.0
    %2437 = vmatpush1.msra.mxu0 0.0
    %2438 = vmatprep.subr.mxu0 0.0
    %2439 = vmatpush1.msra.mxu0 0.0
    %2440 = vmatprep.subr.mxu0 0.0
    %2441 = vmatpush1.msra.mxu0 0.0
    %2442 = vmatprep.subr.mxu0 0.0
    %2443 = vmatpush1.msra.mxu0 0.0
    %2444 = vmatprep.subr.mxu0 0.0
    %2445 = vmatpush1.msra.mxu0 0.0
    %2446 = vmatprep.subr.mxu0 0.0
    %2447 = vmatpush1.msra.mxu0 0.0
    %2448 = vmatprep.subr.mxu0 0.0
    %2449 = vmatpush1.msra.mxu0 0.0
    %2450 = vmatprep.subr.mxu0 0.0
    %2451 = vmatpush1.msra.mxu0 0.0
    %2452 = vmatprep.subr.mxu0 0.0
    %2453 = vmatpush1.msra.mxu0 0.0
    %2454 = vmatprep.subr.mxu0 0.0
    %2455 = vmatpush1.msra.mxu0 0.0
    %2456 = vmatprep.subr.mxu0 0.0
    %2457 = vmatpush1.msra.mxu0 0.0
    %2458 = vmatprep.subr.mxu0 0.0
    %2459 = vmatpush1.msra.mxu0 0.0
    %2460 = vmatprep.mubr.f32.mxu0 0.0
    %2461 = vmatmul.mubr.f32.gmra.mrb[0].mxu0 %v2394
    %v2462 = vpop.f32.mrb[0].mxu0
    %v2463 = vadd.f32 0.0, %v2462
    %v2464 = vpop.f32.mrb[0].mxu0
    %2465 = vdwg.mxu0
    %v2467 = vsel %vm204, %v2223, 0
    %2469 = vmatprep.subr.mxu0 0.0
    %2470 = vmatpush1.msra.mxu0 %v1576
    %2471 = vmatprep.subr.mxu0 0.0
    %2472 = vmatpush1.msra.mxu0 %v1577
    %2473 = vmatprep.subr.mxu0 0.0
    %2474 = vmatpush1.msra.mxu0 0.0
    %2475 = vmatprep.subr.mxu0 0.0
    %2476 = vmatpush1.msra.mxu0 0.0
    %2477 = vmatprep.subr.mxu0 0.0
    %2478 = vmatpush1.msra.mxu0 0.0
    %2479 = vmatprep.subr.mxu0 0.0
    %2480 = vmatpush1.msra.mxu0 0.0
    %2481 = vmatprep.subr.mxu0 0.0
    %2482 = vmatpush1.msra.mxu0 0.0
    %2483 = vmatprep.subr.mxu0 0.0
    %2484 = vmatpush1.msra.mxu0 0.0
    %2485 = vmatprep.subr.mxu0 0.0
    %2486 = vmatpush1.msra.mxu0 0.0
    %2487 = vmatprep.subr.mxu0 0.0
    %2488 = vmatpush1.msra.mxu0 0.0
    %2489 = vmatprep.subr.mxu0 0.0
    %2490 = vmatpush1.msra.mxu0 0.0
    %2491 = vmatprep.subr.mxu0 0.0
    %2492 = vmatpush1.msra.mxu0 0.0
    %2493 = vmatprep.subr.mxu0 0.0
    %2494 = vmatpush1.msra.mxu0 0.0
    %2495 = vmatprep.subr.mxu0 0.0
    %2496 = vmatpush1.msra.mxu0 0.0
    %2497 = vmatprep.subr.mxu0 0.0
    %2498 = vmatpush1.msra.mxu0 0.0
    %2499 = vmatprep.subr.mxu0 0.0
    %2500 = vmatpush1.msra.mxu0 0.0
    %2501 = vmatprep.subr.mxu0 0.0
    %2502 = vmatpush1.msra.mxu0 0.0
    %2503 = vmatprep.subr.mxu0 0.0
    %2504 = vmatpush1.msra.mxu0 0.0
    %2505 = vmatprep.subr.mxu0 0.0
    %2506 = vmatpush1.msra.mxu0 0.0
    %2507 = vmatprep.subr.mxu0 0.0
    %2508 = vmatpush1.msra.mxu0 0.0
    %2509 = vmatprep.subr.mxu0 0.0
    %2510 = vmatpush1.msra.mxu0 0.0
    %2511 = vmatprep.subr.mxu0 0.0
    %2512 = vmatpush1.msra.mxu0 0.0
    %2513 = vmatprep.subr.mxu0 0.0
    %2514 = vmatpush1.msra.mxu0 0.0
    %2515 = vmatprep.subr.mxu0 0.0
    %2516 = vmatpush1.msra.mxu0 0.0
    %2517 = vmatprep.subr.mxu0 0.0
    %2518 = vmatpush1.msra.mxu0 0.0
    %2519 = vmatprep.subr.mxu0 0.0
    %2520 = vmatpush1.msra.mxu0 0.0
    %2521 = vmatprep.subr.mxu0 0.0
    %2522 = vmatpush1.msra.mxu0 0.0
    %2523 = vmatprep.subr.mxu0 0.0
    %2524 = vmatpush1.msra.mxu0 0.0
    %2525 = vmatprep.subr.mxu0 0.0
    %2526 = vmatpush1.msra.mxu0 0.0
    %2527 = vmatprep.subr.mxu0 0.0
    %2528 = vmatpush1.msra.mxu0 0.0
    %2529 = vmatprep.subr.mxu0 0.0
    %2530 = vmatpush1.msra.mxu0 0.0
    %2531 = vmatprep.subr.mxu0 0.0
    %2532 = vmatpush1.msra.mxu0 0.0
    %2533 = vmatprep.mubr.f32.mxu0 0.0
    %2534 = vmatmul.mubr.f32.gmra.mrb[0].mxu0 %v2467
    %v2535 = vpop.f32.mrb[0].mxu0
    %v2536 = vadd.f32 %v2463, %v2535
    %v2537 = vpop.f32.mrb[0].mxu0
    %2538 = vdwg.mxu0
    %2539 = vst.msk [vmem:[#allocation2 + $0x8] sm:$0xff] %vm61, %v2536
    %v2540 = vld [vmem:[#allocation2] sm:$0xff]
    %v2541 = vld [vmem:[#allocation2 + $0x8] sm:$0xff]
    %s2542 = scalar_lea.vmem %s7, 1
    %v2543 = vld [vmem:[%s2542] sm:$0x1]
    %v2545 = vlaneseq
    %v2546 = vshrl.u32 %v2545, 7
    %v2547 = vsub.s32 0, %v2546
    %v2548 = vrot.slane %v2543, %v2547
    %v2550 = vadd.f32 %v2540, %v2548
    %v2551 = vadd.f32 %v2541, %v2548
    %v2552 = vadd.f32 %v2550, %v1479
    %v2553 = vadd.f32 %v2551, %v1480
    %s2554 = scalar_lea.vmem %s8, 1
    %v2555 = vld [vmem:[%s2554] sm:$0x1]
    %s2556 = scalar_lea.vmem %s9, 1
    %v2557 = vld [vmem:[%s2556] sm:$0x1]
    %v2558 = vsel %vm61, %v2552, 0.0
    %2559 = vadd.xlane.f32.xlu0 %v2558
    %v2560 = vpop.xlane.xlu0 %2559
    %v2561 = vsel %vm61, %v2553, 0.0
    %2562 = vadd.xlane.f32.xlu0 %v2561
    %v2563 = vpop.xlane.xlu0 %2562
    %v2564 = vmul.f32 %v2560, %v68
    %v2565 = vmul.f32 %v2563, %v68
    %v2566 = vsub.f32 %v2552, %v2564
    %v2567 = vsub.f32 %v2553, %v2565
    %v2568 = vmul.f32 %v2566, %v2566
    %v2569 = vmul.f32 %v2567, %v2567
    %v2570 = vsel %vm61, %v2568, 0.0
    %2571 = vadd.xlane.f32.xlu0 %v2570
    %v2572 = vpop.xlane.xlu0 %2571
    %v2573 = vsel %vm61, %v2569, 0.0
    %2574 = vadd.xlane.f32.xlu0 %v2573
    %v2575 = vpop.xlane.xlu0 %2574
    %v2576 = vmul.f32 %v2572, %v68
    %v2577 = vmul.f32 %v2575, %v68
    %v2578 = vadd.f32 %v2576, 1e-12
    %v2579 = vadd.f32 %v2577, 1e-12
    %v2580 = vrsqrt.pop %v2578
    %v2581 = vrsqrt.pop %v2579
    %v2582 = vmul.f32 %v2566, %v2580
    %v2583 = vmul.f32 %v2567, %v2581
    %v2585 = vlaneseq
    %v2586 = vshrl.u32 %v2585, 7
    %v2587 = vsub.s32 0, %v2586
    %v2588 = vrot.slane %v2555, %v2587
    %v2590 = vmul.f32 %v2582, %v2588
    %v2591 = vmul.f32 %v2583, %v2588
    %v2593 = vlaneseq
    %v2594 = vshrl.u32 %v2593, 7
    %v2595 = vsub.s32 0, %v2594
    %v2596 = vrot.slane %v2557, %v2595
    %v2598 = vadd.f32 %v2590, %v2596
    %v2599 = vadd.f32 %v2591, %v2596
    %s2600 = scalar_lea.vmem %s10, 32
    %v2601 = vld [vmem:[%s2600] sm:$0xff]
    %v2602 = vld [vmem:[%s2600 + $0x8] sm:$0xff]
    %v2603 = vld [vmem:[%s2600 + $0x10] sm:$0xff]
    %v2604 = vld [vmem:[%s2600 + $0x18] sm:$0xff]
    %s2605 = scalar_lea.vmem %s11, 1
    %v2606 = vld [vmem:[%s2605] sm:$0x1]
    %v2608 = vlaneseq
    %v2609 = vshrl.u32 %v2608, 7
    %v2610 = vsub.s32 0, %v2609
    %v2611 = vrot.slane %v2606, %v2610
    %v2614 = vsel %vm61, %v2598, 0
    %v2617 = vsel %vm61, %v2599, 0
    %2619 = vmatprep.subr.mxu0 0.0
    %2620 = vmatpush1.msra.mxu0 %v2601
    %2621 = vmatprep.subr.mxu0 0.0
    %2622 = vmatpush1.msra.mxu0 %v2602
    %2623 = vmatprep.subr.mxu0 0.0
    %2624 = vmatpush1.msra.mxu0 %v2603
    %2625 = vmatprep.subr.mxu0 0.0
    %2626 = vmatpush1.msra.mxu0 %v2604
    %2627 = vmatprep.subr.mxu0 0.0
    %2628 = vmatpush1.msra.mxu0 0.0
    %2629 = vmatprep.subr.mxu0 0.0
    %2630 = vmatpush1.msra.mxu0 0.0
    %2631 = vmatprep.subr.mxu0 0.0
    %2632 = vmatpush1.msra.mxu0 0.0
    %2633 = vmatprep.subr.mxu0 0.0
    %2634 = vmatpush1.msra.mxu0 0.0
    %2635 = vmatprep.subr.mxu0 0.0
    %2636 = vmatpush1.msra.mxu0 0.0
    %2637 = vmatprep.subr.mxu0 0.0
    %2638 = vmatpush1.msra.mxu0 0.0
    %2639 = vmatprep.subr.mxu0 0.0
    %2640 = vmatpush1.msra.mxu0 0.0
    %2641 = vmatprep.subr.mxu0 0.0
    %2642 = vmatpush1.msra.mxu0 0.0
    %2643 = vmatprep.subr.mxu0 0.0
    %2644 = vmatpush1.msra.mxu0 0.0
    %2645 = vmatprep.subr.mxu0 0.0
    %2646 = vmatpush1.msra.mxu0 0.0
    %2647 = vmatprep.subr.mxu0 0.0
    %2648 = vmatpush1.msra.mxu0 0.0
    %2649 = vmatprep.subr.mxu0 0.0
    %2650 = vmatpush1.msra.mxu0 0.0
    %2651 = vmatprep.subr.mxu0 0.0
    %2652 = vmatpush1.msra.mxu0 0.0
    %2653 = vmatprep.subr.mxu0 0.0
    %2654 = vmatpush1.msra.mxu0 0.0
    %2655 = vmatprep.subr.mxu0 0.0
    %2656 = vmatpush1.msra.mxu0 0.0
    %2657 = vmatprep.subr.mxu0 0.0
    %2658 = vmatpush1.msra.mxu0 0.0
    %2659 = vmatprep.subr.mxu0 0.0
    %2660 = vmatpush1.msra.mxu0 0.0
    %2661 = vmatprep.subr.mxu0 0.0
    %2662 = vmatpush1.msra.mxu0 0.0
    %2663 = vmatprep.subr.mxu0 0.0
    %2664 = vmatpush1.msra.mxu0 0.0
    %2665 = vmatprep.subr.mxu0 0.0
    %2666 = vmatpush1.msra.mxu0 0.0
    %2667 = vmatprep.subr.mxu0 0.0
    %2668 = vmatpush1.msra.mxu0 0.0
    %2669 = vmatprep.subr.mxu0 0.0
    %2670 = vmatpush1.msra.mxu0 0.0
    %2671 = vmatprep.subr.mxu0 0.0
    %2672 = vmatpush1.msra.mxu0 0.0
    %2673 = vmatprep.subr.mxu0 0.0
    %2674 = vmatpush1.msra.mxu0 0.0
    %2675 = vmatprep.subr.mxu0 0.0
    %2676 = vmatpush1.msra.mxu0 0.0
    %2677 = vmatprep.subr.mxu0 0.0
    %2678 = vmatpush1.msra.mxu0 0.0
    %2679 = vmatprep.subr.mxu0 0.0
    %2680 = vmatpush1.msra.mxu0 0.0
    %2681 = vmatprep.subr.mxu0 0.0
    %2682 = vmatpush1.msra.mxu0 0.0
    %2683 = vmatprep.mubr.f32.mxu0 0.0
    %2684 = vmatmul.mubr.f32.gmra.mrb[0].mxu0 %v2614
    %v2685 = vpop.f32.mrb[0].mxu0
    %v2686 = vadd.f32 %v2611, %v2685
    %v2687 = vpop.f32.mrb[0].mxu0
    %2688 = vmatprep.mubr.f32.mxu0 0.0
    %2689 = vmatmul.mubr.f32.gmra.mrb[0].mxu0 %v2617
    %v2690 = vpop.f32.mrb[0].mxu0
    %v2691 = vadd.f32 %v2611, %v2690
    %v2692 = vpop.f32.mrb[0].mxu0
    %2693 = vdwg.mxu0
    %v2694 = vmul.f32 %v2686, 0.5
    %v2695 = vmul.f32 %v2691, 0.5
    %v2696 = vmul.f32 %v2686, 0.044715
    %v2697 = vmul.f32 %v2691, 0.044715
    %v2698 = vmul.f32 %v2696, %v2686
    %v2699 = vmul.f32 %v2697, %v2691
    %v2700 = vmul.f32 %v2698, %v2686
    %v2701 = vmul.f32 %v2699, %v2691
    %v2702 = vadd.f32 %v2686, %v2700
    %v2703 = vadd.f32 %v2691, %v2701
    %v2704 = vmul.f32 %v2702, 0.7978846
    %v2705 = vmul.f32 %v2703, 0.7978846
    %v2706 = vtanh.pop %v2704
    %v2707 = vtanh.pop %v2705
    %v2708 = vadd.f32 %v2706, 1.0
    %v2709 = vadd.f32 %v2707, 1.0
    %v2710 = vmul.f32 %v2694, %v2708
    %v2711 = vmul.f32 %v2695, %v2709
    %s2712 = scalar_lea.vmem %s12, 64
    %v2713 = vld [vmem:[%s2712] sm:$0xff]
    %v2714 = vld [vmem:[%s2712 + $0x8] sm:$0xff]
    %v2715 = vld [vmem:[%s2712 + $0x10] sm:$0xff]
    %v2716 = vld [vmem:[%s2712 + $0x18] sm:$0xff]
    %v2717 = vld [vmem:[%s2712 + $0x20] sm:$0xff]
    %v2718 = vld [vmem:[%s2712 + $0x28] sm:$0xff]
    %v2719 = vld [vmem:[%s2712 + $0x30] sm:$0xff]
    %v2720 = vld [vmem:[%s2712 + $0x38] sm:$0xff]
    %s2721 = scalar_lea.vmem %s13, 1
    %v2722 = vld [vmem:[%s2721] sm:$0x1]
    %v2724 = vlaneseq
    %v2725 = vshrl.u32 %v2724, 7
    %v2726 = vsub.s32 0, %v2725
    %v2727 = vrot.slane %v2722, %v2726
    %v2730 = vsel %vm1353, %v2710, 0
    %v2733 = vsel %vm1353, %v2711, 0
    %2735 = vmatprep.subr.mxu0 0.0
    %2736 = vmatpush1.msra.mxu0 %v2713
    %2737 = vmatprep.subr.mxu0 0.0
    %2738 = vmatpush1.msra.mxu0 %v2714
    %2739 = vmatprep.subr.mxu0 0.0
    %2740 = vmatpush1.msra.mxu0 %v2715
    %2741 = vmatprep.subr.mxu0 0.0
    %2742 = vmatpush1.msra.mxu0 %v2716
    %2743 = vmatprep.subr.mxu0 0.0
    %2744 = vmatpush1.msra.mxu0 %v2717
    %2745 = vmatprep.subr.mxu0 0.0
    %2746 = vmatpush1.msra.mxu0 %v2718
    %2747 = vmatprep.subr.mxu0 0.0
    %2748 = vmatpush1.msra.mxu0 %v2719
    %2749 = vmatprep.subr.mxu0 0.0
    %2750 = vmatpush1.msra.mxu0 %v2720
    %2751 = vmatprep.subr.mxu0 0.0
    %2752 = vmatpush1.msra.mxu0 0.0
    %2753 = vmatprep.subr.mxu0 0.0
    %2754 = vmatpush1.msra.mxu0 0.0
    %2755 = vmatprep.subr.mxu0 0.0
    %2756 = vmatpush1.msra.mxu0 0.0
    %2757 = vmatprep.subr.mxu0 0.0
    %2758 = vmatpush1.msra.mxu0 0.0
    %2759 = vmatprep.subr.mxu0 0.0
    %2760 = vmatpush1.msra.mxu0 0.0
    %2761 = vmatprep.subr.mxu0 0.0
    %2762 = vmatpush1.msra.mxu0 0.0
    %2763 = vmatprep.subr.mxu0 0.0
    %2764 = vmatpush1.msra.mxu0 0.0
    %2765 = vmatprep.subr.mxu0 0.0
    %2766 = vmatpush1.msra.mxu0 0.0
    %2767 = vmatprep.subr.mxu0 0.0
    %2768 = vmatpush1.msra.mxu0 0.0
    %2769 = vmatprep.subr.mxu0 0.0
    %2770 = vmatpush1.msra.mxu0 0.0
    %2771 = vmatprep.subr.mxu0 0.0
    %2772 = vmatpush1.msra.mxu0 0.0
    %2773 = vmatprep.subr.mxu0 0.0
    %2774 = vmatpush1.msra.mxu0 0.0
    %2775 = vmatprep.subr.mxu0 0.0
    %2776 = vmatpush1.msra.mxu0 0.0
    %2777 = vmatprep.subr.mxu0 0.0
    %2778 = vmatpush1.msra.mxu0 0.0
    %2779 = vmatprep.subr.mxu0 0.0
    %2780 = vmatpush1.msra.mxu0 0.0
    %2781 = vmatprep.subr.mxu0 0.0
    %2782 = vmatpush1.msra.mxu0 0.0
    %2783 = vmatprep.subr.mxu0 0.0
    %2784 = vmatpush1.msra.mxu0 0.0
    %2785 = vmatprep.subr.mxu0 0.0
    %2786 = vmatpush1.msra.mxu0 0.0
    %2787 = vmatprep.subr.mxu0 0.0
    %2788 = vmatpush1.msra.mxu0 0.0
    %2789 = vmatprep.subr.mxu0 0.0
    %2790 = vmatpush1.msra.mxu0 0.0
    %2791 = vmatprep.subr.mxu0 0.0
    %2792 = vmatpush1.msra.mxu0 0.0
    %2793 = vmatprep.subr.mxu0 0.0
    %2794 = vmatpush1.msra.mxu0 0.0
    %2795 = vmatprep.subr.mxu0 0.0
    %2796 = vmatpush1.msra.mxu0 0.0
    %2797 = vmatprep.subr.mxu0 0.0
    %2798 = vmatpush1.msra.mxu0 0.0
    %2799 = vmatprep.mubr.f32.mxu0 0.0
    %2800 = vmatmul.mubr.f32.gmra.mrb[0].mxu0 %v2730
    %v2801 = vpop.f32.mrb[0].mxu0
    %v2802 = vadd.f32 %v2727, %v2801
    %v2803 = vpop.f32.mrb[0].mxu0
    %2804 = vmatprep.mubr.f32.mxu0 0.0
    %2805 = vmatmul.mubr.f32.gmra.mrb[0].mxu0 %v2733
    %v2806 = vpop.f32.mrb[0].mxu0
    %v2807 = vadd.f32 %v2727, %v2806
    %v2808 = vpop.f32.mrb[0].mxu0
    %2809 = vdwg.mxu0
    %v2810 = vadd.f32 %v2802, %v2598
    %v2811 = vadd.f32 %v2807, %v2599
    %s2812 = scalar_lea.vmem %s14, 1
    %v2813 = vld [vmem:[%s2812] sm:$0x1]
    %s2814 = scalar_lea.vmem %s15, 1
    %v2815 = vld [vmem:[%s2814] sm:$0x1]
    %v2816 = vsel %vm61, %v2810, 0.0
    %2817 = vadd.xlane.f32.xlu0 %v2816
    %v2818 = vpop.xlane.xlu0 %2817
    %v2819 = vsel %vm61, %v2811, 0.0
    %2820 = vadd.xlane.f32.xlu0 %v2819
    %v2821 = vpop.xlane.xlu0 %2820
    %v2822 = vmul.f32 %v2818, %v68
    %v2823 = vmul.f32 %v2821, %v68
    %v2824 = vsub.f32 %v2810, %v2822
    %v2825 = vsub.f32 %v2811, %v2823
    %v2826 = vmul.f32 %v2824, %v2824
    %v2827 = vmul.f32 %v2825, %v2825
    %v2828 = vsel %vm61, %v2826, 0.0
    %2829 = vadd.xlane.f32.xlu0 %v2828
    %v2830 = vpop.xlane.xlu0 %2829
    %v2831 = vsel %vm61, %v2827, 0.0
    %2832 = vadd.xlane.f32.xlu0 %v2831
    %v2833 = vpop.xlane.xlu0 %2832
    %v2834 = vmul.f32 %v2830, %v68
    %v2835 = vmul.f32 %v2833, %v68
    %v2836 = vadd.f32 %v2834, 1e-12
    %v2837 = vadd.f32 %v2835, 1e-12
    %v2838 = vrsqrt.pop %v2836
    %v2839 = vrsqrt.pop %v2837
    %v2840 = vmul.f32 %v2824, %v2838
    %v2841 = vmul.f32 %v2825, %v2839
    %v2843 = vlaneseq
    %v2844 = vshrl.u32 %v2843, 7
    %v2845 = vsub.s32 0, %v2844
    %v2846 = vrot.slane %v2813, %v2845
    %v2848 = vmul.f32 %v2840, %v2846
    %v2849 = vmul.f32 %v2841, %v2846
    %v2851 = vlaneseq
    %v2852 = vshrl.u32 %v2851, 7
    %v2853 = vsub.s32 0, %v2852
    %v2854 = vrot.slane %v2815, %v2853
    %v2856 = vadd.f32 %v2848, %v2854
    %v2857 = vadd.f32 %v2849, %v2854
    %v2859 = vsel %vm285, %v54, 0
    %2861 = vmatprep.subr.mxu0 0.0
    %2862 = vmatpush1.msra.mxu0 %v2856
    %2863 = vmatprep.subr.mxu0 0.0
    %2864 = vmatpush1.msra.mxu0 0.0
    %2865 = vmatprep.subr.mxu0 0.0
    %2866 = vmatpush1.msra.mxu0 0.0
    %2867 = vmatprep.subr.mxu0 0.0
    %2868 = vmatpush1.msra.mxu0 0.0
    %2869 = vmatprep.subr.mxu0 0.0
    %2870 = vmatpush1.msra.mxu0 0.0
    %2871 = vmatprep.subr.mxu0 0.0
    %2872 = vmatpush1.msra.mxu0 0.0
    %2873 = vmatprep.subr.mxu0 0.0
    %2874 = vmatpush1.msra.mxu0 0.0
    %2875 = vmatprep.subr.mxu0 0.0
    %2876 = vmatpush1.msra.mxu0 0.0
    %2877 = vmatprep.subr.mxu0 0.0
    %2878 = vmatpush1.msra.mxu0 0.0
    %2879 = vmatprep.subr.mxu0 0.0
    %2880 = vmatpush1.msra.mxu0 0.0
    %2881 = vmatprep.subr.mxu0 0.0
    %2882 = vmatpush1.msra.mxu0 0.0
    %2883 = vmatprep.subr.mxu0 0.0
    %2884 = vmatpush1.msra.mxu0 0.0
    %2885 = vmatprep.subr.mxu0 0.0
    %2886 = vmatpush1.msra.mxu0 0.0
    %2887 = vmatprep.subr.mxu0 0.0
    %2888 = vmatpush1.msra.mxu0 0.0
    %2889 = vmatprep.subr.mxu0 0.0
    %2890 = vmatpush1.msra.mxu0 0.0
    %2891 = vmatprep.subr.mxu0 0.0
    %2892 = vmatpush1.msra.mxu0 0.0
    %2893 = vmatprep.subr.mxu0 0.0
    %2894 = vmatpush1.msra.mxu0 0.0
    %2895 = vmatprep.subr.mxu0 0.0
    %2896 = vmatpush1.msra.mxu0 0.0
    %2897 = vmatprep.subr.mxu0 0.0
    %2898 = vmatpush1.msra.mxu0 0.0
    %2899 = vmatprep.subr.mxu0 0.0
    %2900 = vmatpush1.msra.mxu0 0.0
    %2901 = vmatprep.subr.mxu0 0.0
    %2902 = vmatpush1.msra.mxu0 0.0
    %2903 = vmatprep.subr.mxu0 0.0
    %2904 = vmatpush1.msra.mxu0 0.0
    %2905 = vmatprep.subr.mxu0 0.0
    %2906 = vmatpush1.msra.mxu0 0.0
    %2907 = vmatprep.subr.mxu0 0.0
    %2908 = vmatpush1.msra.mxu0 0.0
    %2909 = vmatprep.subr.mxu0 0.0
    %2910 = vmatpush1.msra.mxu0 0.0
    %2911 = vmatprep.subr.mxu0 0.0
    %2912 = vmatpush1.msra.mxu0 0.0
    %2913 = vmatprep.subr.mxu0 0.0
    %2914 = vmatpush1.msra.mxu0 0.0
    %2915 = vmatprep.subr.mxu0 0.0
    %2916 = vmatpush1.msra.mxu0 0.0
    %2917 = vmatprep.subr.mxu0 0.0
    %2918 = vmatpush1.msra.mxu0 0.0
    %2919 = vmatprep.subr.mxu0 0.0
    %2920 = vmatpush1.msra.mxu0 0.0
    %2921 = vmatprep.subr.mxu0 0.0
    %2922 = vmatpush1.msra.mxu0 0.0
    %2923 = vmatprep.subr.mxu0 0.0
    %2924 = vmatpush1.msra.mxu0 0.0
    %2925 = vmatprep.mubr.f32.mxu0 0.0
    %2926 = vmatmul.mubr.f32.gmra.mrb[0].mxu0 %v2859
    %v2927 = vpop.f32.mrb[0].mxu0
    %v2928 = vadd.f32 0.0, %v2927
    %v2929 = vpop.f32.mrb[0].mxu0
    %2930 = vdwg.mxu0
    %vm2931 = vcmask 57344
    %v2932 = vsel %vm2931, %v54, 0.0
    %2933 = vadd.xlane.f32.xlu0 %v2932
    %v2934 = vpop.xlane.xlu0 %2933
    %v2935 = vrcp.pop %v2934
    %v2936 = vmul.f32 %v2928, %v2935
    %vm2937 = vcmask 253952
    %2938 = vst.msk [vmem:[#allocation3] sm:$0x1] %vm2937, %v2936
    %v2939 = vrot.slane %v54, 1
    %v2940 = vsel %vm285, %v2939, 0
    %2942 = vmatprep.subr.mxu0 0.0
    %2943 = vmatpush1.msra.mxu0 %v2857
    %2944 = vmatprep.subr.mxu0 0.0
    %2945 = vmatpush1.msra.mxu0 0.0
    %2946 = vmatprep.subr.mxu0 0.0
    %2947 = vmatpush1.msra.mxu0 0.0
    %2948 = vmatprep.subr.mxu0 0.0
    %2949 = vmatpush1.msra.mxu0 0.0
    %2950 = vmatprep.subr.mxu0 0.0
    %2951 = vmatpush1.msra.mxu0 0.0
    %2952 = vmatprep.subr.mxu0 0.0
    %2953 = vmatpush1.msra.mxu0 0.0
    %2954 = vmatprep.subr.mxu0 0.0
    %2955 = vmatpush1.msra.mxu0 0.0
    %2956 = vmatprep.subr.mxu0 0.0
    %2957 = vmatpush1.msra.mxu0 0.0
    %2958 = vmatprep.subr.mxu0 0.0
    %2959 = vmatpush1.msra.mxu0 0.0
    %2960 = vmatprep.subr.mxu0 0.0
    %2961 = vmatpush1.msra.mxu0 0.0
    %2962 = vmatprep.subr.mxu0 0.0
    %2963 = vmatpush1.msra.mxu0 0.0
    %2964 = vmatprep.subr.mxu0 0.0
    %2965 = vmatpush1.msra.mxu0 0.0
    %2966 = vmatprep.subr.mxu0 0.0
    %2967 = vmatpush1.msra.mxu0 0.0
    %2968 = vmatprep.subr.mxu0 0.0
    %2969 = vmatpush1.msra.mxu0 0.0
    %2970 = vmatprep.subr.mxu0 0.0
    %2971 = vmatpush1.msra.mxu0 0.0
    %2972 = vmatprep.subr.mxu0 0.0
    %2973 = vmatpush1.msra.mxu0 0.0
    %2974 = vmatprep.subr.mxu0 0.0
    %2975 = vmatpush1.msra.mxu0 0.0
    %2976 = vmatprep.subr.mxu0 0.0
    %2977 = vmatpush1.msra.mxu0 0.0
    %2978 = vmatprep.subr.mxu0 0.0
    %2979 = vmatpush1.msra.mxu0 0.0
    %2980 = vmatprep.subr.mxu0 0.0
    %2981 = vmatpush1.msra.mxu0 0.0
    %2982 = vmatprep.subr.mxu0 0.0
    %2983 = vmatpush1.msra.mxu0 0.0
    %2984 = vmatprep.subr.mxu0 0.0
    %2985 = vmatpush1.msra.mxu0 0.0
    %2986 = vmatprep.subr.mxu0 0.0
    %2987 = vmatpush1.msra.mxu0 0.0
    %2988 = vmatprep.subr.mxu0 0.0
    %2989 = vmatpush1.msra.mxu0 0.0
    %2990 = vmatprep.subr.mxu0 0.0
    %2991 = vmatpush1.msra.mxu0 0.0
    %2992 = vmatprep.subr.mxu0 0.0
    %2993 = vmatpush1.msra.mxu0 0.0
    %2994 = vmatprep.subr.mxu0 0.0
    %2995 = vmatpush1.msra.mxu0 0.0
    %2996 = vmatprep.subr.mxu0 0.0
    %2997 = vmatpush1.msra.mxu0 0.0
    %2998 = vmatprep.subr.mxu0 0.0
    %2999 = vmatpush1.msra.mxu0 0.0
    %3000 = vmatprep.subr.mxu0 0.0
    %3001 = vmatpush1.msra.mxu0 0.0
    %3002 = vmatprep.subr.mxu0 0.0
    %3003 = vmatpush1.msra.mxu0 0.0
    %3004 = vmatprep.subr.mxu0 0.0
    %3005 = vmatpush1.msra.mxu0 0.0
    %3006 = vmatprep.mubr.f32.mxu0 0.0
    %3007 = vmatmul.mubr.f32.gmra.mrb[0].mxu0 %v2940
    %v3008 = vpop.f32.mrb[0].mxu0
    %v3009 = vadd.f32 0.0, %v3008
    %v3010 = vpop.f32.mrb[0].mxu0
    %3011 = vdwg.mxu0
    %vm3012 = vcmask 58369
    %v3013 = vsel %vm3012, %v54, 0.0
    %3014 = vadd.xlane.f32.xlu0 %v3013
    %v3015 = vpop.xlane.xlu0 %3014
    %v3017 = vrot.slane %v3015, 1
    %v3019 = vrcp.pop %v3017
    %v3020 = vmul.f32 %v3009, %v3019
    %3021 = vst.msk [vmem:[#allocation3 + $0x1] sm:$0x1] %vm2937, %v3020
    // Predicated region
    $region66: #{pearl_small_forward.1} parent=1 // pred_check
      _
    $region67: #{pearl_small_forward.1} parent=1 // pred_check_branch
      %3023 = sbr.rel (0) target = $region69
    $region68: #{pearl_small_forward.1} parent=1 // pred_region
      %s3025 = ssub.s32 32, 32
      %3026 = vsyncadd [#allocation4], %s3025
      %s3028 = sshll.u32 [#allocation3], 4
      %s3029 = int_to_ptr.vmem [resolvable:$true] %s3028
      %3031 = dma.vmem_to_hbm [thread:$0]  %s3029, 32, %s16, [#allocation4]
    $region69: #{pearl_small_forward.1} parent=1 // pred_fallthru
      _
    // Predicated region
    $region70: #{pearl_small_forward.1} parent=1 // pred_check
      _
    $region71: #{pearl_small_forward.1} parent=1 // pred_check_branch
      %3033 = sbr.rel (0) target = $region73
    $region72: #{pearl_small_forward.1} parent=1 // pred_region
      %3034 = dma.done [#allocation4], 32
    $region73: #{pearl_small_forward.1} parent=1 // pred_fallthru
      _
    %3035 = vsyncpa [#allocation4], 1

</llo_original>
